<compile_context>
chip_gen: v6e
topology: v6e:2x2x1
jax: 0.10.0
libtpu: 0.0.40
codegen_flags: <defaults>
</compile_context>

<pallas_src>
import functools

import jax
import jax.numpy as jnp
from jax.experimental import pallas as pl
from jax.experimental.pallas import tpu as pltpu

BN_EPS = 1e-5
LANE = 128
_MIB = 1024 * 1024


def _round_up(v, m):
    return (v + m - 1) // m * m


def _vmem_budget_bytes():
    """(tile-selection budget, scoped vmem limit) per TPU generation.

    v5e/v6e have 128 MiB VMEM per core, v7x only 64 MiB; unknown devices get the
    conservative (v7x-safe) numbers."""
    kind = ""
    try:
        kind = jax.devices()[0].device_kind.lower()
    except Exception:
        pass
    if ("v5" in kind) or ("v6" in kind):
        return 80 * _MIB, 100 * _MIB
    return 36 * _MIB, 48 * _MIB


def _estimate_conv_vmem(tile_h, w, cin_pad, cout_pad, cbytes):
    """Rough per-step VMEM working set: double-buffered pipeline blocks + in-kernel temps."""
    f32 = 4
    th = tile_h
    blocks = 2 * th * w * cin_pad * cbytes               # current rows (double-buffered)
    blocks += 2 * 2 * (2 * w * cin_pad * cbytes)          # top + bottom 2-row halos
    blocks += 2 * th * w * cout_pad * cbytes              # conv output block
    blocks += 2 * 9 * cin_pad * cout_pad * cbytes         # weights (worst case: 2 buffers)
    tmp = (th + 4) * w * cin_pad * f32                    # fused affine window in f32
    tmp += (th + 4) * (w + 4) * cin_pad * cbytes          # column-padded window
    tmp += th * w * cin_pad * cbytes                      # one im2col tap
    tmp += 2 * th * w * cout_pad * f32                    # f32 accumulator + dot result
    return blocks + tmp


def _pick_tile_h(h, w, cin_pad, cout_pad, cbytes, budget):
    cands = [t for t in range(h, 1, -1) if h % t == 0 and t % 2 == 0]
    if not cands:
        raise ValueError(f"H={h} must have an even divisor >= 2")
    for t in cands:
        if _estimate_conv_vmem(t, w, cin_pad, cout_pad, cbytes) <= budget:
            return t
    return cands[-1]


def _resident_spec(block_shape, index_map):
    """Block whose index map is constant across the grid -> single buffer if supported."""
    try:
        return pl.BlockSpec(block_shape, index_map, pipeline_mode=pl.Buffered(1))
    except Exception:  # older Pallas without pipeline_mode / Buffered
        return pl.BlockSpec(block_shape, index_map)


def _prep_weight(w_hwio, cin_pad, cout_pad, dtype):
    """(3,3,Cin,Cout) -> (3,3,cin_pad,cout_pad), zero-padded channels."""
    _, _, cin, cout = w_hwio.shape
    w = jnp.pad(w_hwio, ((0, 0), (0, 0), (0, cin_pad - cin), (0, cout_pad - cout)))
    return w.astype(dtype)


# ---------------------------------------------------------------------------
# Kernel 1: dilated 3x3 conv (dilation=2, stride=1, pad=2, no bias), spatially tiled.
#   - unpadded NHWC input; 2-row halos via clamped BlockSpecs, 2-col halo synthesized
#   - optional fused input-side BN affine + ReLU (conv2: folds BN1 + ReLU1)
#   - per-(batch, h-tile) BN statistic partials (sum / sum of squares) in f32
# ---------------------------------------------------------------------------
def _conv_kernel(xt_ref, xa_ref, xb_ref, w_ref, scale_ref, shift_ref,
                 y_ref, sum_ref, sq_ref,
                 *, tile_h, out_w, apply_input_bn_relu):
    # xt_ref : (1, 2,  W, Cin)  rows [h*TH-2, h*TH)        (clamped to block 0 at h == 0)
    # xa_ref : (1, TH, W, Cin)  rows [h*TH, (h+1)*TH)
    # xb_ref : (1, 2,  W, Cin)  rows [(h+1)*TH, (h+1)*TH+2) (clamped at the last tile)
    # w_ref  : (3, 3, Cin, Cout)
    # scale_ref / shift_ref : (1, Cin)  fused input BN affine (conv2 only)
    # y_ref  : (1, TH, W, Cout)                raw conv output
    # sum_ref / sq_ref : (1, 1, 1, Cout)       per-(batch, h-tile) BN partials
    h_idx = pl.program_id(1)
    n_h = pl.num_programs(1)
    th = tile_h
    w = out_w
    c_in = xa_ref.shape[-1]
    c_out = y_ref.shape[-1]
    cdt = w_ref.dtype

    top = xt_ref[0]                                   # (2,  W, Cin)
    core = xa_ref[0]                                  # (TH, W, Cin)
    bot = xb_ref[0]                                   # (2,  W, Cin)

    if apply_input_bn_relu:
        # Fused BN(prev) affine + ReLU on the raw previous-conv output, in f32.
        scale = scale_ref[...].reshape(1, 1, c_in)
        shift = shift_ref[...].reshape(1, 1, c_in)

        def act(v):
            return jnp.maximum(v.astype(jnp.float32) * scale + shift, 0.0).astype(cdt)

        top, core, bot = act(top), act(core), act(bot)
    else:
        top, core, bot = top.astype(cdt), core.astype(cdt), bot.astype(cdt)

    # Out-of-image halo rows (first tile's top strip / last tile's bottom strip were read
    # from a clamped block index) must be zero *after* any affine. Scalar-predicate selects
    # on the 2-row strips only -- no full-window iota masks on interior tiles.
    top = jnp.where(h_idx > 0, top, jnp.zeros_like(top))
    bot = jnp.where(h_idx < n_h - 1, bot, jnp.zeros_like(bot))

    window = jnp.concatenate([top, core, bot], axis=0)           # (TH+4, W, Cin)
    zcol = jnp.zeros((th + 4, 2, c_in), cdt)
    window = jnp.concatenate([zcol, window, zcol], axis=1)        # (TH+4, W+4, Cin)

    # 9 K=Cin_pad MXU dots (dilation-2 taps) accumulating into one f32 accumulator.
    acc = jnp.zeros((th * w, c_out), jnp.float32)
    for kh in range(3):
        for kw in range(3):
            tap = window[kh * 2: kh * 2 + th, kw * 2: kw * 2 + w, :].reshape(th * w, c_in)
            acc = acc + jnp.dot(tap, w_ref[kh, kw],
                                preferred_element_type=jnp.float32)

    # Lane-dense (Cout multiple of 128) store of the raw conv output.
    y_ref[...] = acc.reshape(1, th, w, c_out).astype(y_ref.dtype)

    # Per-(batch, h-tile) BN statistic partials (reduced in the wrapper, f32).
    sum_ref[...] = jnp.sum(acc, axis=0).reshape(1, 1, 1, c_out)
    sq_ref[...] = jnp.sum(acc * acc, axis=0).reshape(1, 1, 1, c_out)


def _dilated_conv_block(x, w4, scale, shift, *, tile_h, apply_input_bn_relu,
                        out_dtype, vmem_limit):
    n, h, w, cin_pad = x.shape
    cout_pad = w4.shape[-1]
    n_h = h // tile_h
    thb2 = tile_h // 2          # tile_h in units of 2-row halo blocks
    hb2 = h // 2                # number of 2-row blocks along H

    kernel = functools.partial(_conv_kernel, tile_h=tile_h, out_w=w,
                               apply_input_bn_relu=apply_input_bn_relu)

    return pl.pallas_call(
        kernel,
        out_shape=(
            jax.ShapeDtypeStruct((n, h, w, cout_pad), out_dtype),
            jax.ShapeDtypeStruct((n, n_h, 1, cout_pad), jnp.float32),
            jax.ShapeDtypeStruct((n, n_h, 1, cout_pad), jnp.float32),
        ),
        grid=(n, n_h),
        in_specs=[
            # 2-row top halo: rows [h*TH-2, h*TH), clamped into the image at h == 0.
            pl.BlockSpec((1, 2, w, cin_pad),
                         lambda b, hh: (b, jnp.maximum(hh * thb2 - 1, 0), 0, 0)),
            # current TH rows
            pl.BlockSpec((1, tile_h, w, cin_pad), lambda b, hh: (b, hh, 0, 0)),
            # 2-row bottom halo: rows [(h+1)*TH, (h+1)*TH+2), clamped at the last tile.
            pl.BlockSpec((1, 2, w, cin_pad),
                         lambda b, hh: (b, jnp.minimum((hh + 1) * thb2, hb2 - 1), 0, 0)),
            _resident_spec((3, 3, cin_pad, cout_pad), lambda b, hh: (0, 0, 0, 0)),
            _resident_spec((1, cin_pad), lambda b, hh: (0, 0)),
            _resident_spec((1, cin_pad), lambda b, hh: (0, 0)),
        ],
        out_specs=(
            pl.BlockSpec((1, tile_h, w, cout_pad), lambda b, hh: (b, hh, 0, 0)),
            pl.BlockSpec((1, 1, 1, cout_pad), lambda b, hh: (b, hh, 0, 0)),
            pl.BlockSpec((1, 1, 1, cout_pad), lambda b, hh: (b, hh, 0, 0)),
        ),
        compiler_params=pltpu.CompilerParams(
            dimension_semantics=("parallel", "parallel"),
            vmem_limit_bytes=vmem_limit),
    )(x, x, x, w4, scale, shift)


# ---------------------------------------------------------------------------
# Kernel 2: small lane-dense BN affine + ReLU epilogue (final block only).
# ---------------------------------------------------------------------------
def _bn_relu_kernel(y_ref, scale_ref, shift_ref, o_ref):
    c = y_ref.shape[-1]
    y = y_ref[...].astype(jnp.float32)
    s = scale_ref[...].reshape(1, 1, 1, c)
    t = shift_ref[...].reshape(1, 1, 1, c)
    o_ref[...] = jnp.maximum(y * s + t, 0.0).astype(o_ref.dtype)


def _bn_relu(y, scale, shift, *, tile_h, out_dtype, vmem_limit):
    n, h, w, c_pad = y.shape
    return pl.pallas_call(
        _bn_relu_kernel,
        out_shape=jax.ShapeDtypeStruct((n, h, w, c_pad), out_dtype),
        grid=(n, h // tile_h),
        in_specs=[
            pl.BlockSpec((1, tile_h, w, c_pad), lambda b, i: (b, i, 0, 0)),
            _resident_spec((1, c_pad), lambda b, i: (0, 0)),
            _resident_spec((1, c_pad), lambda b, i: (0, 0)),
        ],
        out_specs=pl.BlockSpec((1, tile_h, w, c_pad), lambda b, i: (b, i, 0, 0)),
        compiler_params=pltpu.CompilerParams(
            dimension_semantics=("parallel", "parallel"),
            vmem_limit_bytes=vmem_limit),
    )(y, scale, shift)


# ---------------------------------------------------------------------------
# DoubleConv forward (NCHW in / NCHW out, like the PyTorch module)
# ---------------------------------------------------------------------------
def double_conv_forward(x_nchw, w1, g1, b1, w2, g2, b2, *,
                        compute_dtype=jnp.bfloat16, out_dtype=jnp.float32,
                        tile_h=None):
    """w1: (3,3,Cin,Cmid), w2: (3,3,Cmid,Cout) (HWIO); g*, b*: (C,) BN gamma/beta."""
    x = jnp.transpose(x_nchw, (0, 2, 3, 1))                      # -> NHWC
    n, h, w, c_in = x.shape
    c_out = w1.shape[-1]
    c_in_pad = _round_up(c_in, LANE)
    c_pad = _round_up(c_out, LANE)
    # TODO(synk): layers with tiny channel counts (C <= 32) are padding-bound under this
    # channels-on-lanes layout; a W-on-lanes layout for those layers would avoid the pad.

    if h % 2 != 0:
        raise ValueError("H must be even (2-row halo blocks)")

    budget, vmem_limit = _vmem_budget_bytes()
    cbytes = jnp.dtype(compute_dtype).itemsize
    if tile_h is None:
        tile_h = _pick_tile_h(h, w, max(c_in_pad, c_pad), c_pad, cbytes, budget)
    if tile_h % 2 != 0 or h % tile_h != 0:
        raise ValueError("tile_h must be even and divide H")

    cnt = float(n * h * w)

    def bn_params(s_part, q_part, gamma, beta):
        s = jnp.sum(s_part, axis=(0, 1, 2))
        q = jnp.sum(q_part, axis=(0, 1, 2))
        mean = s / cnt
        # Single-pass E[x^2]-E[x]^2 in f32, clamped at 0.
        # TODO(synk): shifted / Welford-combined per-tile stats if |mean| >> std is expected.
        var = jnp.maximum(q / cnt - mean * mean, 0.0)
        g = jnp.pad(gamma.astype(jnp.float32), (0, c_pad - c_out))   # padded chans: gamma=0
        bb = jnp.pad(beta.astype(jnp.float32), (0, c_pad - c_out))
        scale = g * jax.lax.rsqrt(var + BN_EPS)
        shift = bb - mean * scale
        return scale.reshape(1, c_pad), shift.reshape(1, c_pad)

    # ---- conv1 (no input-side affine) ----
    x_p = jnp.pad(x, ((0, 0), (0, 0), (0, 0), (0, c_in_pad - c_in))).astype(compute_dtype)
    w1_p = _prep_weight(w1, c_in_pad, c_pad, compute_dtype)
    dummy = jnp.zeros((1, c_in_pad), jnp.float32)
    y1, s1, q1 = _dilated_conv_block(
        x_p, w1_p, dummy, dummy, tile_h=tile_h,
        apply_input_bn_relu=False, out_dtype=compute_dtype, vmem_limit=vmem_limit)
    scale1, shift1 = bn_params(s1, q1, g1, b1)

    # ---- conv2 with BN1 + ReLU1 fused into its input path (y1 stays unpadded NHWC) ----
    w2_p = _prep_weight(w2, c_pad, c_pad, compute_dtype)
    y2, s2, q2 = _dilated_conv_block(
        y1, w2_p, scale1, shift1, tile_h=tile_h,
        apply_input_bn_relu=True, out_dtype=compute_dtype, vmem_limit=vmem_limit)
    scale2, shift2 = bn_params(s2, q2, g2, b2)

    # ---- final BN2 + ReLU2 epilogue (lane-dense) ----
    # Note: BN2 stats come from the f32 accumulator; y2 was rounded to compute_dtype on
    # store (tiny mean/var mismatch in the bf16 path, absorbed by the tolerance).
    out_pad = _bn_relu(y2, scale2, shift2, tile_h=tile_h, out_dtype=out_dtype,
                       vmem_limit=vmem_limit)
    # TODO(synk): the channel strip + NCHW transpose are one extra output round trip in
    # HBM; callers that accept NHWC (or a bf16 out_dtype) can skip/cheapen them.
    out = out_pad[:, :, :, :c_out]
    return jnp.transpose(out, (0, 3, 1, 2))                      # -> NCHW


# ---------------------------------------------------------------------------
# Pure-JAX reference (for correctness check)
# ---------------------------------------------------------------------------
def ref_forward(x_nchw, w1_oihw, g1, b1, w2_oihw, g2, b2):
    def block(x, wt, g, b):
        y = jax.lax.conv_general_dilated(
            x, wt, window_strides=(1, 1), padding=((2, 2), (2, 2)),
            rhs_dilation=(2, 2), dimension_numbers=("NCHW", "OIHW", "NCHW"))
        m = jnp.mean(y, axis=(0, 2, 3), keepdims=True)
        v = jnp.mean((y - m) ** 2, axis=(0, 2, 3), keepdims=True)
        yn = (y - m) / jnp.sqrt(v + BN_EPS)
        yn = yn * g[None, :, None, None] + b[None, :, None, None]
        return jnp.maximum(yn, 0.0)

    return block(block(x_nchw, w1_oihw, g1, b1), w2_oihw, g2, b2)


if __name__ == "__main__":
    key = jax.random.PRNGKey(0)
    k_x, k_w1, k_w2 = jax.random.split(key, 3)

    N, C_IN, C_OUT, H, W = 2, 4, 8, 16, 16

    x = jax.random.normal(k_x, (N, C_IN, H, W), dtype=jnp.float32)

    # PyTorch shapes: Conv2d weight = (out, in, 3, 3); BN default init weight=1, bias=0
    w1_oihw = 0.1 * jax.random.normal(k_w1, (C_OUT, C_IN, 3, 3), dtype=jnp.float32)
    w2_oihw = 0.1 * jax.random.normal(k_w2, (C_OUT, C_OUT, 3, 3), dtype=jnp.float32)
    g1 = jnp.ones((C_OUT,), jnp.float32)
    b1 = jnp.zeros((C_OUT,), jnp.float32)
    g2 = jnp.ones((C_OUT,), jnp.float32)
    b2 = jnp.zeros((C_OUT,), jnp.float32)

    # Kernel weight layout: (kh, kw, Cin, Cout)
    w1 = jnp.transpose(w1_oihw, (2, 3, 1, 0))
    w2 = jnp.transpose(w2_oihw, (2, 3, 1, 0))

    ref = ref_forward(x, w1_oihw, g1, b1, w2_oihw, g2, b2)

    # f32 MXU-operand path, auto tile_h (single h-tile) -- exact-precision check.
    out = double_conv_forward(x, w1, g1, b1, w2, g2, b2, compute_dtype=jnp.float32)
    out = jax.block_until_ready(out)
    assert out.shape == (N, C_OUT, H, W)
    err = float(jnp.max(jnp.abs(out - ref)))
    assert jnp.allclose(out, ref, rtol=5e-3, atol=5e-3), f"f32 max abs err {err}"

    # f32 path with two h-tiles: exercises the clamped halo BlockSpecs / boundary masking.
    out_t = double_conv_forward(x, w1, g1, b1, w2, g2, b2,
                                compute_dtype=jnp.float32, tile_h=8)
    out_t = jax.block_until_ready(out_t)
    err_t = float(jnp.max(jnp.abs(out_t - ref)))
    assert jnp.allclose(out_t, ref, rtol=5e-3, atol=5e-3), f"tiled f32 max abs err {err_t}"

    # Default bf16 MXU-operand path (f32 accumulation & BN math): looser tolerance.
    out_bf16 = double_conv_forward(x, w1, g1, b1, w2, g2, b2)
    out_bf16 = jax.block_until_ready(out_bf16)
    err_b = float(jnp.max(jnp.abs(out_bf16 - ref)))
    assert jnp.allclose(out_bf16, ref, rtol=0.1, atol=0.1), f"bf16 max abs err {err_b}"

    print("KERNEL_OK")
</pallas_src>

<mosaic_0001>
module attributes {stable_mosaic.version = 11 : i64} {
  func.func @_conv_kernel(%arg0: i32, %arg1: i32, %arg2: memref<1x2x16x128xf32, #tpu.memory_space<vmem>>, %arg3: memref<1x16x16x128xf32, #tpu.memory_space<vmem>>, %arg4: memref<1x2x16x128xf32, #tpu.memory_space<vmem>>, %arg5: memref<3x3x128x128xf32, #tpu.memory_space<vmem>>, %arg6: memref<1x128xf32, #tpu.memory_space<vmem>>, %arg7: memref<1x128xf32, #tpu.memory_space<vmem>>, %arg8: memref<1x16x16x128xf32, #tpu.memory_space<vmem>>, %arg9: memref<1x1x1x128xf32, #tpu.memory_space<vmem>>, %arg10: memref<1x1x1x128xf32, #tpu.memory_space<vmem>>) attributes {dimension_semantics = [#tpu.dimension_semantics<parallel>, #tpu.dimension_semantics<parallel>], iteration_bounds = array<i64: 2, 1>, scalar_prefetch = 0 : i64, scratch_operands = 0 : i64, tpu.core_type = #tpu.core_type<tc>, window_params = [{transform_indices = @transform_0, window_bounds = array<i64: 1, 2, 16, 128>}, {transform_indices = @transform_1, window_bounds = array<i64: 1, 16, 16, 128>}, {transform_indices = @transform_2, window_bounds = array<i64: 1, 2, 16, 128>}, {pipeline_mode = #tpu.pipeline_mode<synchronous>, transform_indices = @transform_3, window_bounds = array<i64: 3, 3, 128, 128>}, {pipeline_mode = #tpu.pipeline_mode<synchronous>, transform_indices = @transform_4, window_bounds = array<i64: 1, 128>}, {pipeline_mode = #tpu.pipeline_mode<synchronous>, transform_indices = @transform_5, window_bounds = array<i64: 1, 128>}, {transform_indices = @transform_6, window_bounds = array<i64: 1, 16, 16, 128>}, {transform_indices = @transform_7, window_bounds = array<i64: 1, 1, 1, 128>}, {transform_indices = @transform_8, window_bounds = array<i64: 1, 1, 1, 128>}]} {
    %c0 = arith.constant 0 : index
    %c0_0 = arith.constant 0 : index
    %c0_1 = arith.constant 0 : index
    %c0_2 = arith.constant 0 : index
    %0 = vector.load %arg2[%c0, %c0_0, %c0_1, %c0_2] : memref<1x2x16x128xf32, #tpu.memory_space<vmem>>, vector<1x2x16x128xf32>
    %1 = vector.shape_cast %0 : vector<1x2x16x128xf32> to vector<2x16x128xf32>
    %c0_3 = arith.constant 0 : index
    %c0_4 = arith.constant 0 : index
    %c0_5 = arith.constant 0 : index
    %c0_6 = arith.constant 0 : index
    %2 = vector.load %arg3[%c0_3, %c0_4, %c0_5, %c0_6] : memref<1x16x16x128xf32, #tpu.memory_space<vmem>>, vector<1x16x16x128xf32>
    %3 = vector.shape_cast %2 : vector<1x16x16x128xf32> to vector<16x16x128xf32>
    %c0_7 = arith.constant 0 : index
    %c0_8 = arith.constant 0 : index
    %c0_9 = arith.constant 0 : index
    %c0_10 = arith.constant 0 : index
    %4 = vector.load %arg4[%c0_7, %c0_8, %c0_9, %c0_10] : memref<1x2x16x128xf32, #tpu.memory_space<vmem>>, vector<1x2x16x128xf32>
    %5 = vector.shape_cast %4 : vector<1x2x16x128xf32> to vector<2x16x128xf32>
    %c0_i32 = arith.constant 0 : i32
    %6 = arith.cmpi sgt, %arg1, %c0_i32 : i32
    %cst = arith.constant 0.000000e+00 : f32
    %7 = vector.broadcast %cst : f32 to vector<2x16x128xf32>
    %8 = arith.select %6, %1, %7 : vector<2x16x128xf32>
    %c0_i32_11 = arith.constant 0 : i32
    %9 = arith.cmpi slt, %arg1, %c0_i32_11 : i32
    %cst_12 = arith.constant 0.000000e+00 : f32
    %10 = vector.broadcast %cst_12 : f32 to vector<2x16x128xf32>
    %11 = arith.select %9, %5, %10 : vector<2x16x128xf32>
    %12 = tpu.concatenate %8, %3, %11 in 0 : vector<2x16x128xf32>, vector<16x16x128xf32>, vector<2x16x128xf32> -> vector<20x16x128xf32>
    %cst_13 = arith.constant 0.000000e+00 : f32
    %13 = vector.broadcast %cst_13 : f32 to vector<20x2x128xf32>
    %14 = tpu.concatenate %13, %12, %13 in 1 : vector<20x2x128xf32>, vector<20x16x128xf32>, vector<20x2x128xf32> -> vector<20x20x128xf32>
    %cst_14 = arith.constant 0.000000e+00 : f32
    %15 = vector.broadcast %cst_14 : f32 to vector<256x128xf32>
    %16 = vector.extract_strided_slice %14 {offsets = [0, 0, 0], sizes = [16, 16, 128], strides = [1, 1, 1]} : vector<20x20x128xf32> to vector<16x16x128xf32>
    %17 = vector.shape_cast %16 : vector<16x16x128xf32> to vector<256x128xf32>
    %c0_15 = arith.constant 0 : index
    %c0_16 = arith.constant 0 : index
    %c0_17 = arith.constant 0 : index
    %c0_18 = arith.constant 0 : index
    %18 = vector.load %arg5[%c0_15, %c0_16, %c0_17, %c0_18] : memref<3x3x128x128xf32, #tpu.memory_space<vmem>>, vector<1x1x128x128xf32>
    %19 = vector.shape_cast %18 : vector<1x1x128x128xf32> to vector<128x128xf32>
    %cst_19 = arith.constant dense<0.000000e+00> : vector<256x128xf32>
    %20 = tpu.matmul %17, %19, %cst_19 {dimension_numbers = #tpu.dot_dimension_numbers<[1], [0], [0], [1], [0, 0, 1, 1], [], []>} : vector<256x128xf32>, vector<128x128xf32>, vector<256x128xf32> -> vector<256x128xf32>
    %21 = arith.addf %15, %20 : vector<256x128xf32>
    %22 = vector.extract_strided_slice %14 {offsets = [0, 2, 0], sizes = [16, 16, 128], strides = [1, 1, 1]} : vector<20x20x128xf32> to vector<16x16x128xf32>
    %23 = vector.shape_cast %22 : vector<16x16x128xf32> to vector<256x128xf32>
    %c0_20 = arith.constant 0 : index
    %c1 = arith.constant 1 : index
    %c0_21 = arith.constant 0 : index
    %c0_22 = arith.constant 0 : index
    %24 = vector.load %arg5[%c0_20, %c1, %c0_21, %c0_22] : memref<3x3x128x128xf32, #tpu.memory_space<vmem>>, vector<1x1x128x128xf32>
    %25 = vector.shape_cast %24 : vector<1x1x128x128xf32> to vector<128x128xf32>
    %cst_23 = arith.constant dense<0.000000e+00> : vector<256x128xf32>
    %26 = tpu.matmul %23, %25, %cst_23 {dimension_numbers = #tpu.dot_dimension_numbers<[1], [0], [0], [1], [0, 0, 1, 1], [], []>} : vector<256x128xf32>, vector<128x128xf32>, vector<256x128xf32> -> vector<256x128xf32>
    %27 = arith.addf %21, %26 : vector<256x128xf32>
    %28 = vector.extract_strided_slice %14 {offsets = [0, 4, 0], sizes = [16, 16, 128], strides = [1, 1, 1]} : vector<20x20x128xf32> to vector<16x16x128xf32>
    %29 = vector.shape_cast %28 : vector<16x16x128xf32> to vector<256x128xf32>
    %c0_24 = arith.constant 0 : index
    %c2 = arith.constant 2 : index
    %c0_25 = arith.constant 0 : index
    %c0_26 = arith.constant 0 : index
    %30 = vector.load %arg5[%c0_24, %c2, %c0_25, %c0_26] : memref<3x3x128x128xf32, #tpu.memory_space<vmem>>, vector<1x1x128x128xf32>
    %31 = vector.shape_cast %30 : vector<1x1x128x128xf32> to vector<128x128xf32>
    %cst_27 = arith.constant dense<0.000000e+00> : vector<256x128xf32>
    %32 = tpu.matmul %29, %31, %cst_27 {dimension_numbers = #tpu.dot_dimension_numbers<[1], [0], [0], [1], [0, 0, 1, 1], [], []>} : vector<256x128xf32>, vector<128x128xf32>, vector<256x128xf32> -> vector<256x128xf32>
    %33 = arith.addf %27, %32 : vector<256x128xf32>
    %34 = vector.extract_strided_slice %14 {offsets = [2, 0, 0], sizes = [16, 16, 128], strides = [1, 1, 1]} : vector<20x20x128xf32> to vector<16x16x128xf32>
    %35 = vector.shape_cast %34 : vector<16x16x128xf32> to vector<256x128xf32>
    %c1_28 = arith.constant 1 : index
    %c0_29 = arith.constant 0 : index
    %c0_30 = arith.constant 0 : index
    %c0_31 = arith.constant 0 : index
    %36 = vector.load %arg5[%c1_28, %c0_29, %c0_30, %c0_31] : memref<3x3x128x128xf32, #tpu.memory_space<vmem>>, vector<1x1x128x128xf32>
    %37 = vector.shape_cast %36 : vector<1x1x128x128xf32> to vector<128x128xf32>
    %cst_32 = arith.constant dense<0.000000e+00> : vector<256x128xf32>
    %38 = tpu.matmul %35, %37, %cst_32 {dimension_numbers = #tpu.dot_dimension_numbers<[1], [0], [0], [1], [0, 0, 1, 1], [], []>} : vector<256x128xf32>, vector<128x128xf32>, vector<256x128xf32> -> vector<256x128xf32>
    %39 = arith.addf %33, %38 : vector<256x128xf32>
    %40 = vector.extract_strided_slice %14 {offsets = [2, 2, 0], sizes = [16, 16, 128], strides = [1, 1, 1]} : vector<20x20x128xf32> to vector<16x16x128xf32>
    %41 = vector.shape_cast %40 : vector<16x16x128xf32> to vector<256x128xf32>
    %c1_33 = arith.constant 1 : index
    %c1_34 = arith.constant 1 : index
    %c0_35 = arith.constant 0 : index
    %c0_36 = arith.constant 0 : index
    %42 = vector.load %arg5[%c1_33, %c1_34, %c0_35, %c0_36] : memref<3x3x128x128xf32, #tpu.memory_space<vmem>>, vector<1x1x128x128xf32>
    %43 = vector.shape_cast %42 : vector<1x1x128x128xf32> to vector<128x128xf32>
    %cst_37 = arith.constant dense<0.000000e+00> : vector<256x128xf32>
    %44 = tpu.matmul %41, %43, %cst_37 {dimension_numbers = #tpu.dot_dimension_numbers<[1], [0], [0], [1], [0, 0, 1, 1], [], []>} : vector<256x128xf32>, vector<128x128xf32>, vector<256x128xf32> -> vector<256x128xf32>
    %45 = arith.addf %39, %44 : vector<256x128xf32>
    %46 = vector.extract_strided_slice %14 {offsets = [2, 4, 0], sizes = [16, 16, 128], strides = [1, 1, 1]} : vector<20x20x128xf32> to vector<16x16x128xf32>
    %47 = vector.shape_cast %46 : vector<16x16x128xf32> to vector<256x128xf32>
    %c1_38 = arith.constant 1 : index
    %c2_39 = arith.constant 2 : index
    %c0_40 = arith.constant 0 : index
    %c0_41 = arith.constant 0 : index
    %48 = vector.load %arg5[%c1_38, %c2_39, %c0_40, %c0_41] : memref<3x3x128x128xf32, #tpu.memory_space<vmem>>, vector<1x1x128x128xf32>
    %49 = vector.shape_cast %48 : vector<1x1x128x128xf32> to vector<128x128xf32>
    %cst_42 = arith.constant dense<0.000000e+00> : vector<256x128xf32>
    %50 = tpu.matmul %47, %49, %cst_42 {dimension_numbers = #tpu.dot_dimension_numbers<[1], [0], [0], [1], [0, 0, 1, 1], [], []>} : vector<256x128xf32>, vector<128x128xf32>, vector<256x128xf32> -> vector<256x128xf32>
    %51 = arith.addf %45, %50 : vector<256x128xf32>
    %52 = vector.extract_strided_slice %14 {offsets = [4, 0, 0], sizes = [16, 16, 128], strides = [1, 1, 1]} : vector<20x20x128xf32> to vector<16x16x128xf32>
    %53 = vector.shape_cast %52 : vector<16x16x128xf32> to vector<256x128xf32>
    %c2_43 = arith.constant 2 : index
    %c0_44 = arith.constant 0 : index
    %c0_45 = arith.constant 0 : index
    %c0_46 = arith.constant 0 : index
    %54 = vector.load %arg5[%c2_43, %c0_44, %c0_45, %c0_46] : memref<3x3x128x128xf32, #tpu.memory_space<vmem>>, vector<1x1x128x128xf32>
    %55 = vector.shape_cast %54 : vector<1x1x128x128xf32> to vector<128x128xf32>
    %cst_47 = arith.constant dense<0.000000e+00> : vector<256x128xf32>
    %56 = tpu.matmul %53, %55, %cst_47 {dimension_numbers = #tpu.dot_dimension_numbers<[1], [0], [0], [1], [0, 0, 1, 1], [], []>} : vector<256x128xf32>, vector<128x128xf32>, vector<256x128xf32> -> vector<256x128xf32>
    %57 = arith.addf %51, %56 : vector<256x128xf32>
    %58 = vector.extract_strided_slice %14 {offsets = [4, 2, 0], sizes = [16, 16, 128], strides = [1, 1, 1]} : vector<20x20x128xf32> to vector<16x16x128xf32>
    %59 = vector.shape_cast %58 : vector<16x16x128xf32> to vector<256x128xf32>
    %c2_48 = arith.constant 2 : index
    %c1_49 = arith.constant 1 : index
    %c0_50 = arith.constant 0 : index
    %c0_51 = arith.constant 0 : index
    %60 = vector.load %arg5[%c2_48, %c1_49, %c0_50, %c0_51] : memref<3x3x128x128xf32, #tpu.memory_space<vmem>>, vector<1x1x128x128xf32>
    %61 = vector.shape_cast %60 : vector<1x1x128x128xf32> to vector<128x128xf32>
    %cst_52 = arith.constant dense<0.000000e+00> : vector<256x128xf32>
    %62 = tpu.matmul %59, %61, %cst_52 {dimension_numbers = #tpu.dot_dimension_numbers<[1], [0], [0], [1], [0, 0, 1, 1], [], []>} : vector<256x128xf32>, vector<128x128xf32>, vector<256x128xf32> -> vector<256x128xf32>
    %63 = arith.addf %57, %62 : vector<256x128xf32>
    %64 = vector.extract_strided_slice %14 {offsets = [4, 4, 0], sizes = [16, 16, 128], strides = [1, 1, 1]} : vector<20x20x128xf32> to vector<16x16x128xf32>
    %65 = vector.shape_cast %64 : vector<16x16x128xf32> to vector<256x128xf32>
    %c2_53 = arith.constant 2 : index
    %c2_54 = arith.constant 2 : index
    %c0_55 = arith.constant 0 : index
    %c0_56 = arith.constant 0 : index
    %66 = vector.load %arg5[%c2_53, %c2_54, %c0_55, %c0_56] : memref<3x3x128x128xf32, #tpu.memory_space<vmem>>, vector<1x1x128x128xf32>
    %67 = vector.shape_cast %66 : vector<1x1x128x128xf32> to vector<128x128xf32>
    %cst_57 = arith.constant dense<0.000000e+00> : vector<256x128xf32>
    %68 = tpu.matmul %65, %67, %cst_57 {dimension_numbers = #tpu.dot_dimension_numbers<[1], [0], [0], [1], [0, 0, 1, 1], [], []>} : vector<256x128xf32>, vector<128x128xf32>, vector<256x128xf32> -> vector<256x128xf32>
    %69 = arith.addf %63, %68 : vector<256x128xf32>
    %70 = vector.shape_cast %69 : vector<256x128xf32> to vector<1x16x16x128xf32>
    %c0_58 = arith.constant 0 : index
    %c0_59 = arith.constant 0 : index
    %c0_60 = arith.constant 0 : index
    %c0_61 = arith.constant 0 : index
    %71 = vector.load %arg8[%c0_58, %c0_59, %c0_60, %c0_61] : memref<1x16x16x128xf32, #tpu.memory_space<vmem>>, vector<1x16x16x128xf32>
    tpu.vector_store %arg8[%c0_58, %c0_59, %c0_60, %c0_61], %70 {strides = array<i32>} : memref<1x16x16x128xf32, #tpu.memory_space<vmem>>, vector<1x16x16x128xf32>,
    %cst_62 = arith.constant dense<0.000000e+00> : vector<128xf32>
    %72 = vector.multi_reduction <add>, %69, %cst_62 [0] : vector<256x128xf32> to vector<128xf32>
    %73 = vector.shape_cast %72 : vector<128xf32> to vector<1x1x1x128xf32>
    %c0_63 = arith.constant 0 : index
    %c0_64 = arith.constant 0 : index
    %c0_65 = arith.constant 0 : index
    %c0_66 = arith.constant 0 : index
    %74 = vector.load %arg9[%c0_63, %c0_64, %c0_65, %c0_66] : memref<1x1x1x128xf32, #tpu.memory_space<vmem>>, vector<1x1x1x128xf32>
    tpu.vector_store %arg9[%c0_63, %c0_64, %c0_65, %c0_66], %73 {strides = array<i32>} : memref<1x1x1x128xf32, #tpu.memory_space<vmem>>, vector<1x1x1x128xf32>,
    %75 = arith.mulf %69, %69 : vector<256x128xf32>
    %cst_67 = arith.constant dense<0.000000e+00> : vector<128xf32>
    %76 = vector.multi_reduction <add>, %75, %cst_67 [0] : vector<256x128xf32> to vector<128xf32>
    %77 = vector.shape_cast %76 : vector<128xf32> to vector<1x1x1x128xf32>
    %c0_68 = arith.constant 0 : index
    %c0_69 = arith.constant 0 : index
    %c0_70 = arith.constant 0 : index
    %c0_71 = arith.constant 0 : index
    %78 = vector.load %arg10[%c0_68, %c0_69, %c0_70, %c0_71] : memref<1x1x1x128xf32, #tpu.memory_space<vmem>>, vector<1x1x1x128xf32>
    tpu.vector_store %arg10[%c0_68, %c0_69, %c0_70, %c0_71], %77 {strides = array<i32>} : memref<1x1x1x128xf32, #tpu.memory_space<vmem>>, vector<1x1x1x128xf32>,
    return
  }
  func.func @transform_0(%arg0: i32, %arg1: i32) -> (i32, i32, i32, i32) {
    %c8_i32 = arith.constant 8 : i32
    %0 = arith.muli %arg1, %c8_i32 : i32
    %c1_i32 = arith.constant 1 : i32
    %1 = arith.subi %0, %c1_i32 : i32
    %c0_i32 = arith.constant 0 : i32
    %2 = arith.maxsi %1, %c0_i32 : i32
    %c0_i32_0 = arith.constant 0 : i32
    %c0_i32_1 = arith.constant 0 : i32
    %c0_i32_2 = arith.constant 0 : i32
    return %arg0, %2, %c0_i32_0, %c0_i32_1 : i32, i32, i32, i32
  }
  func.func @transform_1(%arg0: i32, %arg1: i32) -> (i32, i32, i32, i32) {
    %c0_i32 = arith.constant 0 : i32
    %c0_i32_0 = arith.constant 0 : i32
    %c0_i32_1 = arith.constant 0 : i32
    return %arg0, %arg1, %c0_i32, %c0_i32_0 : i32, i32, i32, i32
  }
  func.func @transform_2(%arg0: i32, %arg1: i32) -> (i32, i32, i32, i32) {
    %c1_i32 = arith.constant 1 : i32
    %0 = arith.addi %arg1, %c1_i32 : i32
    %c8_i32 = arith.constant 8 : i32
    %1 = arith.muli %0, %c8_i32 : i32
    %c7_i32 = arith.constant 7 : i32
    %2 = arith.minsi %1, %c7_i32 : i32
    %c0_i32 = arith.constant 0 : i32
    %c0_i32_0 = arith.constant 0 : i32
    %c0_i32_1 = arith.constant 0 : i32
    return %arg0, %2, %c0_i32, %c0_i32_0 : i32, i32, i32, i32
  }
  func.func @transform_3(%arg0: i32, %arg1: i32) -> (i32, i32, i32, i32) {
    %c0_i32 = arith.constant 0 : i32
    %c0_i32_0 = arith.constant 0 : i32
    %c0_i32_1 = arith.constant 0 : i32
    %c0_i32_2 = arith.constant 0 : i32
    %c0_i32_3 = arith.constant 0 : i32
    return %c0_i32, %c0_i32_0, %c0_i32_1, %c0_i32_2 : i32, i32, i32, i32
  }
  func.func @transform_4(%arg0: i32, %arg1: i32) -> (i32, i32) {
    %c0_i32 = arith.constant 0 : i32
    %c0_i32_0 = arith.constant 0 : i32
    %c0_i32_1 = arith.constant 0 : i32
    return %c0_i32, %c0_i32_0 : i32, i32
  }
  func.func @transform_5(%arg0: i32, %arg1: i32) -> (i32, i32) {
    %c0_i32 = arith.constant 0 : i32
    %c0_i32_0 = arith.constant 0 : i32
    %c0_i32_1 = arith.constant 0 : i32
    return %c0_i32, %c0_i32_0 : i32, i32
  }
  func.func @transform_6(%arg0: i32, %arg1: i32) -> (i32, i32, i32, i32) {
    %c0_i32 = arith.constant 0 : i32
    %c0_i32_0 = arith.constant 0 : i32
    %c0_i32_1 = arith.constant 0 : i32
    return %arg0, %arg1, %c0_i32, %c0_i32_0 : i32, i32, i32, i32
  }
  func.func @transform_7(%arg0: i32, %arg1: i32) -> (i32, i32, i32, i32) {
    %c0_i32 = arith.constant 0 : i32
    %c0_i32_0 = arith.constant 0 : i32
    %c0_i32_1 = arith.constant 0 : i32
    return %arg0, %arg1, %c0_i32, %c0_i32_0 : i32, i32, i32, i32
  }
  func.func @transform_8(%arg0: i32, %arg1: i32) -> (i32, i32, i32, i32) {
    %c0_i32 = arith.constant 0 : i32
    %c0_i32_0 = arith.constant 0 : i32
    %c0_i32_1 = arith.constant 0 : i32
    return %arg0, %arg1, %c0_i32, %c0_i32_0 : i32, i32, i32, i32
  }
}

</mosaic_0001>

<llo_original>
// kernel: tpu_custom_call.1
$region0: #{tpu_custom_call.1}
  #allocation0 [shape = 'u32[]', space=smem, size = 0x4, offset = 0x4, fixed_abs, tag = 'smem constant byte address 0x4 - core index']
  #allocation1 [shape = 'u32[144,128]{1,0:T(1,128)}', space=vmem, size = 0x12000, scoped, tag = 'internal scratch']
  %s0 = inlined_call_operand.hbm [shape: f32[2,16,16,128], index: 0, kind: input, shape index: {}]
  %s1 = inlined_call_operand.hbm [shape: f32[2,16,16,128], index: 1, kind: input, shape index: {}]
  %s2 = inlined_call_operand.hbm [shape: f32[2,16,16,128], index: 2, kind: input, shape index: {}]
  %s3 = inlined_call_operand.hbm [shape: f32[3,3,128,128], index: 3, kind: input, shape index: {}]
  %s4 = inlined_call_operand.vmem [shape: f32[1,128], index: 4, kind: input, shape index: {}]
  %s5 = inlined_call_operand.vmem [shape: f32[1,128], index: 5, kind: input, shape index: {}]
  %s6 = inlined_call_operand.hbm [shape: f32[2,16,16,128], index: 6, kind: output, shape index: {0}]
  %s7 = inlined_call_operand.hbm [shape: f32[2,1,1,128], index: 7, kind: output, shape index: {1}]
  %s8 = inlined_call_operand.hbm [shape: f32[2,1,1,128], index: 8, kind: output, shape index: {2}]
  %9 = xla_tuple %s6, %s7, %s8
  %s10 = sld [smem:[#allocation0]]
  $region89: #{tpu_custom_call.1} parent=0
    _
  %s12 = ssub.s32 1, %s10
  %s13 = scalar_select 0, %s12, %s10
  $region1: #{tpu_custom_call.1} parent=0
    #allocation2 [shape = 'u8[32768]{0}', space=vmem, size = 0x8000, scoped, tag = 'input window, operand 0']
    #allocation3 [shape = 's32[2]{0}', space=sflag, size = 0x8, scoped, tag = 'scoped memory for tpu_custom_call.1']
    #allocation4 [shape = 's32[2]{0}', space=sflag, size = 0x8, scoped, tag = 'scoped memory for tpu_custom_call.1']
    #allocation5 [shape = 'u8[262144]{0}', space=vmem, size = 0x40000, scoped, tag = 'input window, operand 1']
    #allocation6 [shape = 's32[2]{0}', space=sflag, size = 0x8, scoped, tag = 'scoped memory for tpu_custom_call.1']
    #allocation7 [shape = 'u8[32768]{0}', space=vmem, size = 0x8000, scoped, tag = 'input window, operand 2']
    #allocation8 [shape = 'u8[589824]{0}', space=vmem, size = 0x90000, scoped, tag = 'input window, operand 3, single buffered']
    #allocation9 [shape = 's32[1]{0}', space=sflag, size = 0x4, scoped, tag = 'scoped memory for tpu_custom_call.1']
    #allocation10 [shape = 'u8[262144]{0}', space=vmem, size = 0x40000, scoped, tag = 'output window, operand 0']
    #allocation11 [shape = 'u8[1024]{0}', space=vmem, size = 0x400, scoped, tag = 'output window, operand 1']
    #allocation12 [shape = 's32[2]{0}', space=sflag, size = 0x8, scoped, tag = 'scoped memory for tpu_custom_call.1']
    #allocation13 [shape = 'u8[1024]{0}', space=vmem, size = 0x400, scoped, tag = 'output window, operand 2']
    %14 = vsyncpa [#allocation3], 0
    %s15 = scalar_lea.sflag [#allocation3], 1
    %16 = vsyncpa %s15, 0
    %17 = vsyncpa [#allocation6], 0
    %s18 = scalar_lea.sflag [#allocation6], 1
    %19 = vsyncpa %s18, 0
    %20 = vsyncpa [#allocation9], 0
    %21 = vsyncpa [#allocation4], 0
    %s22 = scalar_lea.sflag [#allocation4], 1
    %23 = vsyncpa %s22, 0
    %24 = vsyncpa [#allocation12], 0
    %s25 = scalar_lea.sflag [#allocation12], 1
    %26 = vsyncpa %s25, 0
    loop: start=0, step=1, limit=4
    $region2: #{tpu_custom_call.1} parent=1 // loop_pre_header
      _
    $region3: #{tpu_custom_call.1} parent=1 // loop_header
      %s28 = sphi 0, %s32
      %p29 = scmp.ge.s32.totalorder %s28, 4
      %s35 = sphi 0, %s47
      %s36 = sphi 0, %s43
      %s37 = sphi 0, %s35
      %s38 = sphi 0, %s36
      %s39 = sphi 0, %s37
      %s40 = sphi 0, %s38
      %s60 = sphi 0, %s62
      %s63 = sphi 0, %s60
      %s64 = sphi 0, %s63
      %s80 = sphi 0, %s64
      %s88 = sphi 0, %s90
      %s91 = sphi 0, %s88
      %s92 = sphi 0, %s91
      %s108 = sphi 0, %s92
      %s124 = sphi 0, %s126
      %s127 = sphi 0, %s124
      %s128 = sphi 0, %s127
      %s144 = sphi 0, %s128
      %s148 = sphi 0, %s148
      %s150 = sphi 0, %s148
      %s151 = sphi 0, %s150
      %s165 = sphi 0, %s151
      %s169 = sphi 0, %s169
      %s171 = sphi 0, %s169
      %s172 = sphi 0, %s171
      %s186 = sphi 0, %s172
      %s190 = sphi 0, %s190
      %s192 = sphi 0, %s190
      %s193 = sphi 0, %s192
      %s207 = sphi 0, %s193
      %s215 = sphi 0, %s217
      %s218 = sphi 0, %s215
      %s219 = sphi 0, %s218
      %s235 = sphi 0, %s219
      %s243 = sphi 0, %s245
      %s246 = sphi 0, %s243
      %s247 = sphi 0, %s246
      %s263 = sphi 0, %s247
      %s271 = sphi 0, %s273
      %s274 = sphi 0, %s271
      %s275 = sphi 0, %s274
      %s291 = sphi 0, %s275
    $region4: #{tpu_custom_call.1} parent=1 // loop_header_branch
      %31 = sbr.rel (%p29) target = $region8
    $region5: #{tpu_custom_call.1} parent=1 // loop_body
      %s33 = ssub.s32 %s28, 1
      %s34 = ssub.s32 %s28, 2
      %s41 = sadd.s32 1, %s36
      %p42 = scmp.ge.s32.totalorder %s41, 1
      %s43 = scalar_select %p42, 0, %s41
      %s44 = sadd.s32 1, %s35
      %s45 = scalar_select %p42, %s44, %s35
      %p46 = scmp.ge.s32.totalorder %s45, 2
      %s47 = scalar_select %p46, 0, %s45
      %s48 = smul.u32 %s36, 8
      %s49 = ssub.s32 %s48, 1
      %p50 = scmp.gt.s32.totalorder %s49, 0
      %s51 = scalar_select %p50, %s49, 0
      %s52 = smul.u32 %s43, 8
      %s53 = ssub.s32 %s52, 1
      %p54 = scmp.gt.s32.totalorder %s53, 0
      %s55 = scalar_select %p54, %s53, 0
      %s56 = ssub.s32 %s35, %s47
      %s57 = ssub.s32 %s51, %s55
      %s58 = sor.u32 %s56, %s57
      %p59 = scmp.eq.s32.totalorder %s58, 0
      %s61 = sadd.s32 %s60, 1
      %s62 = scalar_select %p59, %s60, %s61
      %p65 = pneg %p59
      %p66 = scmp.eq.s32.totalorder %s28, 1
      %p67 = por %p65, %p66
      %p68 = scmp.ne.s32.totalorder %s60, %s63
      %p69 = scmp.eq.s32.totalorder %s28, 0
      %p70 = por %p68, %p69
      %p71 = scmp.ne.s32.totalorder %s60, %s63
      %p72 = scmp.eq.s32.totalorder %s33, 1
      %p73 = por %p71, %p72
      %p74 = scmp.ne.s32.totalorder %s63, %s64
      %p75 = scmp.eq.s32.totalorder %s33, 0
      %p76 = por %p74, %p75
      %p77 = scmp.ne.s32.totalorder %s63, %s64
      %p78 = scmp.eq.s32.totalorder %s34, 1
      %p79 = por %p77, %p78
      %p81 = scmp.ne.s32.totalorder %s64, %s80
      %p82 = scmp.eq.s32.totalorder %s34, 0
      %p83 = por %p81, %p82
      %s84 = ssub.s32 %s35, %s47
      %s85 = ssub.s32 %s36, %s43
      %s86 = sor.u32 %s84, %s85
      %p87 = scmp.eq.s32.totalorder %s86, 0
      %s89 = sadd.s32 %s88, 1
      %s90 = scalar_select %p87, %s88, %s89
      %p93 = pneg %p87
      %p94 = scmp.eq.s32.totalorder %s28, 1
      %p95 = por %p93, %p94
      %p96 = scmp.ne.s32.totalorder %s88, %s91
      %p97 = scmp.eq.s32.totalorder %s28, 0
      %p98 = por %p96, %p97
      %p99 = scmp.ne.s32.totalorder %s88, %s91
      %p100 = scmp.eq.s32.totalorder %s33, 1
      %p101 = por %p99, %p100
      %p102 = scmp.ne.s32.totalorder %s91, %s92
      %p103 = scmp.eq.s32.totalorder %s33, 0
      %p104 = por %p102, %p103
      %p105 = scmp.ne.s32.totalorder %s91, %s92
      %p106 = scmp.eq.s32.totalorder %s34, 1
      %p107 = por %p105, %p106
      %p109 = scmp.ne.s32.totalorder %s92, %s108
      %p110 = scmp.eq.s32.totalorder %s34, 0
      %p111 = por %p109, %p110
      %s112 = sadd.s32 %s36, 1
      %s113 = smul.u32 %s112, 8
      %p114 = scmp.lt.s32.totalorder %s113, 7
      %s115 = scalar_select %p114, %s113, 7
      %s116 = sadd.s32 %s43, 1
      %s117 = smul.u32 %s116, 8
      %p118 = scmp.lt.s32.totalorder %s117, 7
      %s119 = scalar_select %p118, %s117, 7
      %s120 = ssub.s32 %s35, %s47
      %s121 = ssub.s32 %s115, %s119
      %s122 = sor.u32 %s120, %s121
      %p123 = scmp.eq.s32.totalorder %s122, 0
      %s125 = sadd.s32 %s124, 1
      %s126 = scalar_select %p123, %s124, %s125
      %p129 = pneg %p123
      %p130 = scmp.eq.s32.totalorder %s28, 1
      %p131 = por %p129, %p130
      %p132 = scmp.ne.s32.totalorder %s124, %s127
      %p133 = scmp.eq.s32.totalorder %s28, 0
      %p134 = por %p132, %p133
      %p135 = scmp.ne.s32.totalorder %s124, %s127
      %p136 = scmp.eq.s32.totalorder %s33, 1
      %p137 = por %p135, %p136
      %p138 = scmp.ne.s32.totalorder %s127, %s128
      %p139 = scmp.eq.s32.totalorder %s33, 0
      %p140 = por %p138, %p139
      %p141 = scmp.ne.s32.totalorder %s127, %s128
      %p142 = scmp.eq.s32.totalorder %s34, 1
      %p143 = por %p141, %p142
      %p145 = scmp.ne.s32.totalorder %s128, %s144
      %p146 = scmp.eq.s32.totalorder %s34, 0
      %p147 = por %p145, %p146
      %s149 = sadd.s32 %s148, 1
      %p152 = scmp.eq.s32.totalorder %s28, 1
      %p153 = scmp.ne.s32.totalorder %s148, %s150
      %p154 = scmp.eq.s32.totalorder %s28, 0
      %p155 = por %p153, %p154
      %p156 = scmp.ne.s32.totalorder %s148, %s150
      %p157 = scmp.eq.s32.totalorder %s33, 1
      %p158 = por %p156, %p157
      %p159 = scmp.ne.s32.totalorder %s150, %s151
      %p160 = scmp.eq.s32.totalorder %s33, 0
      %p161 = por %p159, %p160
      %p162 = scmp.ne.s32.totalorder %s150, %s151
      %p163 = scmp.eq.s32.totalorder %s34, 1
      %p164 = por %p162, %p163
      %p166 = scmp.ne.s32.totalorder %s151, %s165
      %p167 = scmp.eq.s32.totalorder %s34, 0
      %p168 = por %p166, %p167
      %s170 = sadd.s32 %s169, 1
      %p173 = scmp.eq.s32.totalorder %s28, 1
      %p174 = scmp.ne.s32.totalorder %s169, %s171
      %p175 = scmp.eq.s32.totalorder %s28, 0
      %p176 = por %p174, %p175
      %p177 = scmp.ne.s32.totalorder %s169, %s171
      %p178 = scmp.eq.s32.totalorder %s33, 1
      %p179 = por %p177, %p178
      %p180 = scmp.ne.s32.totalorder %s171, %s172
      %p181 = scmp.eq.s32.totalorder %s33, 0
      %p182 = por %p180, %p181
      %p183 = scmp.ne.s32.totalorder %s171, %s172
      %p184 = scmp.eq.s32.totalorder %s34, 1
      %p185 = por %p183, %p184
      %p187 = scmp.ne.s32.totalorder %s172, %s186
      %p188 = scmp.eq.s32.totalorder %s34, 0
      %p189 = por %p187, %p188
      %s191 = sadd.s32 %s190, 1
      %p194 = scmp.eq.s32.totalorder %s28, 1
      %p195 = scmp.ne.s32.totalorder %s190, %s192
      %p196 = scmp.eq.s32.totalorder %s28, 0
      %p197 = por %p195, %p196
      %p198 = scmp.ne.s32.totalorder %s190, %s192
      %p199 = scmp.eq.s32.totalorder %s33, 1
      %p200 = por %p198, %p199
      %p201 = scmp.ne.s32.totalorder %s192, %s193
      %p202 = scmp.eq.s32.totalorder %s33, 0
      %p203 = por %p201, %p202
      %p204 = scmp.ne.s32.totalorder %s192, %s193
      %p205 = scmp.eq.s32.totalorder %s34, 1
      %p206 = por %p204, %p205
      %p208 = scmp.ne.s32.totalorder %s193, %s207
      %p209 = scmp.eq.s32.totalorder %s34, 0
      %p210 = por %p208, %p209
      %s211 = ssub.s32 %s35, %s47
      %s212 = ssub.s32 %s36, %s43
      %s213 = sor.u32 %s211, %s212
      %p214 = scmp.eq.s32.totalorder %s213, 0
      %s216 = sadd.s32 %s215, 1
      %s217 = scalar_select %p214, %s215, %s216
      %p220 = pneg %p214
      %p221 = scmp.eq.s32.totalorder %s28, 1
      %p222 = por %p220, %p221
      %p223 = scmp.ne.s32.totalorder %s215, %s218
      %p224 = scmp.eq.s32.totalorder %s28, 0
      %p225 = por %p223, %p224
      %p226 = scmp.ne.s32.totalorder %s215, %s218
      %p227 = scmp.eq.s32.totalorder %s33, 1
      %p228 = por %p226, %p227
      %p229 = scmp.ne.s32.totalorder %s218, %s219
      %p230 = scmp.eq.s32.totalorder %s33, 0
      %p231 = por %p229, %p230
      %p232 = scmp.ne.s32.totalorder %s218, %s219
      %p233 = scmp.eq.s32.totalorder %s34, 1
      %p234 = por %p232, %p233
      %p236 = scmp.ne.s32.totalorder %s219, %s235
      %p237 = scmp.eq.s32.totalorder %s34, 0
      %p238 = por %p236, %p237
      %s239 = ssub.s32 %s35, %s47
      %s240 = ssub.s32 %s36, %s43
      %s241 = sor.u32 %s239, %s240
      %p242 = scmp.eq.s32.totalorder %s241, 0
      %s244 = sadd.s32 %s243, 1
      %s245 = scalar_select %p242, %s243, %s244
      %p248 = pneg %p242
      %p249 = scmp.eq.s32.totalorder %s28, 1
      %p250 = por %p248, %p249
      %p251 = scmp.ne.s32.totalorder %s243, %s246
      %p252 = scmp.eq.s32.totalorder %s28, 0
      %p253 = por %p251, %p252
      %p254 = scmp.ne.s32.totalorder %s243, %s246
      %p255 = scmp.eq.s32.totalorder %s33, 1
      %p256 = por %p254, %p255
      %p257 = scmp.ne.s32.totalorder %s246, %s247
      %p258 = scmp.eq.s32.totalorder %s33, 0
      %p259 = por %p257, %p258
      %p260 = scmp.ne.s32.totalorder %s246, %s247
      %p261 = scmp.eq.s32.totalorder %s34, 1
      %p262 = por %p260, %p261
      %p264 = scmp.ne.s32.totalorder %s247, %s263
      %p265 = scmp.eq.s32.totalorder %s34, 0
      %p266 = por %p264, %p265
      %s267 = ssub.s32 %s35, %s47
      %s268 = ssub.s32 %s36, %s43
      %s269 = sor.u32 %s267, %s268
      %p270 = scmp.eq.s32.totalorder %s269, 0
      %s272 = sadd.s32 %s271, 1
      %s273 = scalar_select %p270, %s271, %s272
      %p276 = pneg %p270
      %p277 = scmp.eq.s32.totalorder %s28, 1
      %p278 = por %p276, %p277
      %p279 = scmp.ne.s32.totalorder %s271, %s274
      %p280 = scmp.eq.s32.totalorder %s28, 0
      %p281 = por %p279, %p280
      %p282 = scmp.ne.s32.totalorder %s271, %s274
      %p283 = scmp.eq.s32.totalorder %s33, 1
      %p284 = por %p282, %p283
      %p285 = scmp.ne.s32.totalorder %s274, %s275
      %p286 = scmp.eq.s32.totalorder %s33, 0
      %p287 = por %p285, %p286
      %p288 = scmp.ne.s32.totalorder %s274, %s275
      %p289 = scmp.eq.s32.totalorder %s34, 1
      %p290 = por %p288, %p289
      %p292 = scmp.ne.s32.totalorder %s275, %s291
      %p293 = scmp.eq.s32.totalorder %s34, 0
      %p294 = por %p292, %p293
      %p295 = scmp.le.s32.totalorder 1, %s28
      %p296 = scmp.lt.s32.totalorder %s28, 3
      %p297 = pnand %p295, %p296
      %p298 = pneg %p297
      // Predicated region
      $region9: #{tpu_custom_call.1} parent=5 // pred_check
        _
      $region10: #{tpu_custom_call.1} parent=5 // pred_check_branch
        %300 = sbr.rel (%p297) target = $region12
      $region11: #{tpu_custom_call.1} parent=5 // pred_region
        %s301 = ssub.s32 %s28, 1
        // Predicated region
        $region13: #{tpu_custom_call.1} parent=11 // pred_check
          %p302 = pneg %p161
        $region14: #{tpu_custom_call.1} parent=11 // pred_check_branch
          %304 = sbr.rel (%p302) target = $region16
        $region15: #{tpu_custom_call.1} parent=11 // pred_region
          %s306 = ssub.s32 18432, 18432
          %307 = vsyncadd [#allocation9], %s306
          %s308 = sshll.u32 [#allocation8], 4
          %s309 = int_to_ptr.vmem [resolvable:$true] %s308
          %314 = dma.hbm_to_vmem [thread:$0]  %s3, 18432, %s309, [#allocation9], 128, 128, 8
        $region16: #{tpu_custom_call.1} parent=11 // pred_fallthru
          _
        // Predicated region
        $region17: #{tpu_custom_call.1} parent=11 // pred_check
          %p315 = pneg %p182
        $region18: #{tpu_custom_call.1} parent=11 // pred_check_branch
          %317 = sbr.rel (%p315) target = $region20
        $region19: #{tpu_custom_call.1} parent=11 // pred_region
          _
        $region20: #{tpu_custom_call.1} parent=11 // pred_fallthru
          _
        // Predicated region
        $region21: #{tpu_custom_call.1} parent=11 // pred_check
          %p318 = pneg %p203
        $region22: #{tpu_custom_call.1} parent=11 // pred_check_branch
          %320 = sbr.rel (%p318) target = $region24
        $region23: #{tpu_custom_call.1} parent=11 // pred_region
          _
        $region24: #{tpu_custom_call.1} parent=11 // pred_fallthru
          _
      $region12: #{tpu_custom_call.1} parent=5 // pred_fallthru
        _
      %p321 = scmp.lt.s32.totalorder %s28, 2
      // Predicated region
      $region25: #{tpu_custom_call.1} parent=5 // pred_check
        %p322 = pneg %p321
      $region26: #{tpu_custom_call.1} parent=5 // pred_check_branch
        %324 = sbr.rel (%p322) target = $region28
      $region27: #{tpu_custom_call.1} parent=5 // pred_region
        // Predicated region
        $region29: #{tpu_custom_call.1} parent=27 // pred_check
          %p325 = pneg %p70
        $region30: #{tpu_custom_call.1} parent=27 // pred_check_branch
          %327 = sbr.rel (%p325) target = $region32
        $region31: #{tpu_custom_call.1} parent=27 // pred_region
          %s328 = sand.u32 %s60, 1
          %s329 = scalar_lea.sflag [#allocation3], %s328
          %s330 = sand.u32 %s60, 1
          %s331 = smul.addr %s330, 32
          %s332 = scalar_lea.vmem [#allocation2], %s331
          %s333 = smul.u32 %s36, 8
          %s334 = ssub.s32 %s333, 1
          %p335 = scmp.gt.s32.totalorder %s334, 0
          %s336 = scalar_select %p335, %s334, 0
          %s337 = smul.u32 2, %s336
          %s339 = ssub.s32 512, 512
          %340 = vsyncadd %s329, %s339
          %s341 = smul.addr %s337, 2
          %s342 = smul.addr %s35, 32
          %s343 = sadd.s32 %s341, %s342
          %s344 = smul.addr %s343, 128
          %s345 = scalar_lea.hbm %s0, %s344
          %s346 = sshll.u32 %s332, 4
          %s347 = int_to_ptr.vmem [resolvable:$true] %s346
          %352 = dma.hbm_to_vmem [thread:$0]  %s345, 512, %s347, %s329, 128, 128, 8
        $region32: #{tpu_custom_call.1} parent=27 // pred_fallthru
          _
        // Predicated region
        $region33: #{tpu_custom_call.1} parent=27 // pred_check
          %p353 = pneg %p98
        $region34: #{tpu_custom_call.1} parent=27 // pred_check_branch
          %355 = sbr.rel (%p353) target = $region36
        $region35: #{tpu_custom_call.1} parent=27 // pred_region
          %s356 = sand.u32 %s28, 1
          %s357 = scalar_lea.sflag [#allocation6], %s356
          %s358 = sand.u32 %s88, 1
          %s359 = smul.addr %s358, 256
          %s360 = scalar_lea.vmem [#allocation5], %s359
          %s361 = smul.u32 16, %s36
          %s363 = ssub.s32 4096, 4096
          %364 = vsyncadd %s357, %s363
          %s365 = smul.addr %s361, 2
          %s366 = smul.addr %s35, 32
          %s367 = sadd.s32 %s365, %s366
          %s368 = smul.addr %s367, 128
          %s369 = scalar_lea.hbm %s1, %s368
          %s370 = sshll.u32 %s360, 4
          %s371 = int_to_ptr.vmem [resolvable:$true] %s370
          %376 = dma.hbm_to_vmem [thread:$0]  %s369, 4096, %s371, %s357, 128, 128, 8
        $region36: #{tpu_custom_call.1} parent=27 // pred_fallthru
          _
        // Predicated region
        $region37: #{tpu_custom_call.1} parent=27 // pred_check
          %p377 = pneg %p134
        $region38: #{tpu_custom_call.1} parent=27 // pred_check_branch
          %379 = sbr.rel (%p377) target = $region40
        $region39: #{tpu_custom_call.1} parent=27 // pred_region
          %s380 = sand.u32 %s28, 1
          %s381 = scalar_lea.sflag [#allocation6], %s380
          %s382 = sand.u32 %s124, 1
          %s383 = smul.addr %s382, 32
          %s384 = scalar_lea.vmem [#allocation7], %s383
          %s385 = sadd.s32 %s36, 1
          %s386 = smul.u32 %s385, 8
          %p387 = scmp.lt.s32.totalorder %s386, 7
          %s388 = scalar_select %p387, %s386, 7
          %s389 = smul.u32 2, %s388
          %s391 = ssub.s32 512, 512
          %392 = vsyncadd %s381, %s391
          %s393 = smul.addr %s389, 2
          %s394 = smul.addr %s35, 32
          %s395 = sadd.s32 %s393, %s394
          %s396 = smul.addr %s395, 128
          %s397 = scalar_lea.hbm %s2, %s396
          %s398 = sshll.u32 %s384, 4
          %s399 = int_to_ptr.vmem [resolvable:$true] %s398
          %404 = dma.hbm_to_vmem [thread:$0]  %s397, 512, %s399, %s381, 128, 128, 8
        $region40: #{tpu_custom_call.1} parent=27 // pred_fallthru
          _
      $region28: #{tpu_custom_call.1} parent=5 // pred_fallthru
        _
      %p405 = scmp.le.s32.totalorder 1, %s28
      %p406 = scmp.lt.s32.totalorder %s28, 3
      %p407 = pnand %p405, %p406
      %p408 = pneg %p407
      // Predicated region
      $region41: #{tpu_custom_call.1} parent=5 // pred_check
        _
      $region42: #{tpu_custom_call.1} parent=5 // pred_check_branch
        %410 = sbr.rel (%p407) target = $region44
      $region43: #{tpu_custom_call.1} parent=5 // pred_region
        %s411 = ssub.s32 %s28, 1
        %s412 = sand.u32 %s63, 1
        %s413 = scalar_lea.sflag [#allocation3], %s412
        %s414 = sand.u32 %s63, 1
        %s415 = smul.addr %s414, 32
        %s416 = scalar_lea.vmem [#allocation2], %s415
        // Predicated region
        $region45: #{tpu_custom_call.1} parent=43 // pred_check
          %p417 = pneg %p76
        $region46: #{tpu_custom_call.1} parent=43 // pred_check_branch
          %419 = sbr.rel (%p417) target = $region48
        $region47: #{tpu_custom_call.1} parent=43 // pred_region
          %420 = dma.done %s413, 512
        $region48: #{tpu_custom_call.1} parent=43 // pred_fallthru
          _
        %s421 = sand.u32 %s33, 1
        %s422 = scalar_lea.sflag [#allocation6], %s421
        %s423 = sand.u32 %s91, 1
        %s424 = smul.addr %s423, 256
        %s425 = scalar_lea.vmem [#allocation5], %s424
        // Predicated region
        $region49: #{tpu_custom_call.1} parent=43 // pred_check
          %p426 = pneg %p104
        $region50: #{tpu_custom_call.1} parent=43 // pred_check_branch
          %428 = sbr.rel (%p426) target = $region52
        $region51: #{tpu_custom_call.1} parent=43 // pred_region
          %429 = dma.done %s422, 4096
        $region52: #{tpu_custom_call.1} parent=43 // pred_fallthru
          _
        %s430 = sand.u32 %s33, 1
        %s431 = scalar_lea.sflag [#allocation6], %s430
        %s432 = sand.u32 %s127, 1
        %s433 = smul.addr %s432, 32
        %s434 = scalar_lea.vmem [#allocation7], %s433
        // Predicated region
        $region53: #{tpu_custom_call.1} parent=43 // pred_check
          %p435 = pneg %p140
        $region54: #{tpu_custom_call.1} parent=43 // pred_check_branch
          %437 = sbr.rel (%p435) target = $region56
        $region55: #{tpu_custom_call.1} parent=43 // pred_region
          %438 = dma.done %s431, 512
        $region56: #{tpu_custom_call.1} parent=43 // pred_fallthru
          _
        // Predicated region
        $region57: #{tpu_custom_call.1} parent=43 // pred_check
          %p439 = pneg %p161
        $region58: #{tpu_custom_call.1} parent=43 // pred_check_branch
          %441 = sbr.rel (%p439) target = $region60
        $region59: #{tpu_custom_call.1} parent=43 // pred_region
          %442 = dma.done [#allocation9], 18432
        $region60: #{tpu_custom_call.1} parent=43 // pred_fallthru
          _
        %s443 = sand.u32 %s63, 1
        %s444 = scalar_lea.sflag [#allocation3], %s443
        %s445 = sand.u32 %s63, 1
        %s446 = smul.addr %s445, 32
        %s447 = scalar_lea.vmem [#allocation2], %s446
        %p448 = pneg %p76
        %p449 = pneg %p73
        %s450 = sand.u32 %s33, 1
        %s451 = scalar_lea.sflag [#allocation6], %s450
        %s452 = sand.u32 %s91, 1
        %s453 = smul.addr %s452, 256
        %s454 = scalar_lea.vmem [#allocation5], %s453
        %p455 = pneg %p104
        %p456 = pneg %p101
        %s457 = sand.u32 %s33, 1
        %s458 = scalar_lea.sflag [#allocation6], %s457
        %s459 = sand.u32 %s127, 1
        %s460 = smul.addr %s459, 32
        %s461 = scalar_lea.vmem [#allocation7], %s460
        %p462 = pneg %p140
        %p463 = pneg %p137
        %p464 = pneg %p161
        %p465 = pneg %p158
        %p466 = pneg %p182
        %p467 = pneg %p179
        %p468 = pneg %p203
        %p469 = pneg %p200
        %p470 = pneg %p231
        %p471 = pneg %p228
        %s472 = sand.u32 %s218, 1
        %s473 = scalar_lea.sflag [#allocation4], %s472
        %s474 = sand.u32 %s218, 1
        %s475 = smul.addr %s474, 256
        %s476 = scalar_lea.vmem [#allocation10], %s475
        %p477 = pneg %p259
        %p478 = pneg %p256
        %s479 = sand.u32 %s33, 1
        %s480 = scalar_lea.sflag [#allocation12], %s479
        %s481 = sand.u32 %s246, 1
        %s482 = scalar_lea.vmem [#allocation11], %s481
        %p483 = pneg %p287
        %p484 = pneg %p284
        %s485 = sand.u32 %s33, 1
        %s486 = scalar_lea.sflag [#allocation12], %s485
        %s487 = sand.u32 %s274, 1
        %s488 = scalar_lea.vmem [#allocation13], %s487
        %s489 = smul.u32 %s38, 8
        %s490 = ssub.s32 %s489, 1
        %p491 = scmp.gt.s32.totalorder %s490, 0
        %s492 = scalar_select %p491, %s490, 0
        %s493 = smul.u32 2, %s492
        %s494 = smul.u32 16, %s38
        %s495 = sadd.s32 %s38, 1
        %s496 = smul.u32 %s495, 8
        %p497 = scmp.lt.s32.totalorder %s496, 7
        %s498 = scalar_select %p497, %s496, 7
        %s499 = smul.u32 2, %s498
        %s500 = smul.u32 16, %s38
        %v501 = vld [vmem:[%s416] sm:$0xff]
        %v502 = vld [vmem:[%s416 + $0x8] sm:$0xff]
        %v503 = vld [vmem:[%s416 + $0x10] sm:$0xff]
        %v504 = vld [vmem:[%s416 + $0x18] sm:$0xff]
        %v505 = vld [vmem:[%s425] sm:$0xff]
        %v506 = vld [vmem:[%s425 + $0x8] sm:$0xff]
        %v507 = vld [vmem:[%s425 + $0x10] sm:$0xff]
        %v508 = vld [vmem:[%s425 + $0x18] sm:$0xff]
        %v509 = vld [vmem:[%s425 + $0x20] sm:$0xff]
        %v510 = vld [vmem:[%s425 + $0x28] sm:$0xff]
        %v511 = vld [vmem:[%s425 + $0x30] sm:$0xff]
        %v512 = vld [vmem:[%s425 + $0x38] sm:$0xff]
        %v513 = vld [vmem:[%s425 + $0x40] sm:$0xff]
        %v514 = vld [vmem:[%s425 + $0x48] sm:$0xff]
        %v515 = vld [vmem:[%s425 + $0x50] sm:$0xff]
        %v516 = vld [vmem:[%s425 + $0x58] sm:$0xff]
        %v517 = vld [vmem:[%s425 + $0x60] sm:$0xff]
        %v518 = vld [vmem:[%s425 + $0x68] sm:$0xff]
        %v519 = vld [vmem:[%s425 + $0x70] sm:$0xff]
        %v520 = vld [vmem:[%s425 + $0x78] sm:$0xff]
        %v521 = vld [vmem:[%s425 + $0x80] sm:$0xff]
        %v522 = vld [vmem:[%s425 + $0x88] sm:$0xff]
        %v523 = vld [vmem:[%s425 + $0x90] sm:$0xff]
        %v524 = vld [vmem:[%s425 + $0x98] sm:$0xff]
        %v525 = vld [vmem:[%s425 + $0xa0] sm:$0xff]
        %v526 = vld [vmem:[%s425 + $0xa8] sm:$0xff]
        %v527 = vld [vmem:[%s425 + $0xb0] sm:$0xff]
        %v528 = vld [vmem:[%s425 + $0xb8] sm:$0xff]
        %v529 = vld [vmem:[%s425 + $0xc0] sm:$0xff]
        %v530 = vld [vmem:[%s425 + $0xc8] sm:$0xff]
        %v531 = vld [vmem:[%s425 + $0xd0] sm:$0xff]
        %v532 = vld [vmem:[%s425 + $0xd8] sm:$0xff]
        %v533 = vld [vmem:[%s425 + $0xe0] sm:$0xff]
        %v534 = vld [vmem:[%s425 + $0xe8] sm:$0xff]
        %v535 = vld [vmem:[%s425 + $0xf0] sm:$0xff]
        %v536 = vld [vmem:[%s425 + $0xf8] sm:$0xff]
        %v537 = vld [vmem:[%s434] sm:$0xff]
        %v538 = vld [vmem:[%s434 + $0x8] sm:$0xff]
        %v539 = vld [vmem:[%s434 + $0x10] sm:$0xff]
        %v540 = vld [vmem:[%s434 + $0x18] sm:$0xff]
        %p541 = scmp.gt.s32.totalorder %s38, 0
        %s542 = scalar_select %p541, 1, 0
        %v543 = vstv %s542
        %vm544 = vcmp.eq.s32.totalorder %v543, 1
        %v545 = vsel %vm544, %v501, 0.0
        %v546 = vsel %vm544, %v502, 0.0
        %v547 = vsel %vm544, %v503, 0.0
        %v548 = vsel %vm544, %v504, 0.0
        %p549 = scmp.lt.s32.totalorder %s38, 0
        %s550 = scalar_select %p549, 1, 0
        %v551 = vstv %s550
        %vm552 = vcmp.eq.s32.totalorder %v551, 1
        %v553 = vsel %vm552, %v537, 0.0
        %v554 = vsel %vm552, %v538, 0.0
        %v555 = vsel %vm552, %v539, 0.0
        %v556 = vsel %vm552, %v540, 0.0
        %vm597 = vcmask 1041408
        %v598 = vrot.slane %v545, 6
        %v599 = vrot.slane %v546, 6
        %v600 = vsel %vm597, %v598, %v599
        %v601 = vrot.slane %v547, 6
        %v602 = vrot.slane %v548, 6
        %v603 = vsel %vm597, %v601, %v602
        %v604 = vrot.slane %v505, 6
        %v605 = vrot.slane %v506, 6
        %v606 = vsel %vm597, %v604, %v605
        %v607 = vrot.slane %v507, 6
        %v608 = vrot.slane %v508, 6
        %v609 = vsel %vm597, %v607, %v608
        %v610 = vrot.slane %v509, 6
        %v611 = vrot.slane %v510, 6
        %v612 = vsel %vm597, %v610, %v611
        %v613 = vrot.slane %v511, 6
        %v614 = vrot.slane %v512, 6
        %v615 = vsel %vm597, %v613, %v614
        %v616 = vrot.slane %v513, 6
        %v617 = vrot.slane %v514, 6
        %v618 = vsel %vm597, %v616, %v617
        %v619 = vrot.slane %v515, 6
        %v620 = vrot.slane %v516, 6
        %v621 = vsel %vm597, %v619, %v620
        %v622 = vrot.slane %v517, 6
        %v623 = vrot.slane %v518, 6
        %v624 = vsel %vm597, %v622, %v623
        %v625 = vrot.slane %v519, 6
        %v626 = vrot.slane %v520, 6
        %v627 = vsel %vm597, %v625, %v626
        %v628 = vrot.slane %v521, 6
        %v629 = vrot.slane %v522, 6
        %v630 = vsel %vm597, %v628, %v629
        %v631 = vrot.slane %v523, 6
        %v632 = vrot.slane %v524, 6
        %v633 = vsel %vm597, %v631, %v632
        %v634 = vrot.slane %v525, 6
        %v635 = vrot.slane %v526, 6
        %v636 = vsel %vm597, %v634, %v635
        %v637 = vrot.slane %v527, 6
        %v638 = vrot.slane %v528, 6
        %v639 = vsel %vm597, %v637, %v638
        %v640 = vrot.slane %v529, 6
        %v641 = vrot.slane %v530, 6
        %v642 = vsel %vm597, %v640, %v641
        %v643 = vrot.slane %v531, 6
        %v644 = vrot.slane %v532, 6
        %v645 = vsel %vm597, %v643, %v644
        %v646 = vrot.slane %v533, 6
        %v647 = vrot.slane %v534, 6
        %v648 = vsel %vm597, %v646, %v647
        %v649 = vrot.slane %v535, 6
        %v650 = vrot.slane %v536, 6
        %v651 = vsel %vm597, %v649, %v650
        %v652 = vrot.slane %v553, 6
        %v653 = vrot.slane %v554, 6
        %v654 = vsel %vm597, %v652, %v653
        %v655 = vrot.slane %v555, 6
        %v656 = vrot.slane %v556, 6
        %v657 = vsel %vm597, %v655, %v656
        %v718 = vsel %vm597, 0.0, %v598
        %v719 = vsel %vm597, 0.0, %v601
        %v720 = vsel %vm597, 0.0, %v604
        %v721 = vsel %vm597, 0.0, %v607
        %v722 = vsel %vm597, 0.0, %v610
        %v723 = vsel %vm597, 0.0, %v613
        %v724 = vsel %vm597, 0.0, %v616
        %v725 = vsel %vm597, 0.0, %v619
        %v726 = vsel %vm597, 0.0, %v622
        %v727 = vsel %vm597, 0.0, %v625
        %v728 = vsel %vm597, 0.0, %v628
        %v729 = vsel %vm597, 0.0, %v631
        %v730 = vsel %vm597, 0.0, %v634
        %v731 = vsel %vm597, 0.0, %v637
        %v732 = vsel %vm597, 0.0, %v640
        %v733 = vsel %vm597, 0.0, %v643
        %v734 = vsel %vm597, 0.0, %v646
        %v735 = vsel %vm597, 0.0, %v649
        %v736 = vsel %vm597, 0.0, %v652
        %v737 = vsel %vm597, 0.0, %v655
        %v738 = vsel %vm597, %v599, 0.0
        %v739 = vsel %vm597, %v602, 0.0
        %v740 = vsel %vm597, %v605, 0.0
        %v741 = vsel %vm597, %v608, 0.0
        %v742 = vsel %vm597, %v611, 0.0
        %v743 = vsel %vm597, %v614, 0.0
        %v744 = vsel %vm597, %v617, 0.0
        %v745 = vsel %vm597, %v620, 0.0
        %v746 = vsel %vm597, %v623, 0.0
        %v747 = vsel %vm597, %v626, 0.0
        %v748 = vsel %vm597, %v629, 0.0
        %v749 = vsel %vm597, %v632, 0.0
        %v750 = vsel %vm597, %v635, 0.0
        %v751 = vsel %vm597, %v638, 0.0
        %v752 = vsel %vm597, %v641, 0.0
        %v753 = vsel %vm597, %v644, 0.0
        %v754 = vsel %vm597, %v647, 0.0
        %v755 = vsel %vm597, %v650, 0.0
        %v756 = vsel %vm597, %v653, 0.0
        %v757 = vsel %vm597, %v656, 0.0
        %v758 = vld [vmem:[#allocation8] sm:$0xff]
        %v759 = vld [vmem:[#allocation8 + $0x8] sm:$0xff]
        %v760 = vld [vmem:[#allocation8 + $0x10] sm:$0xff]
        %v761 = vld [vmem:[#allocation8 + $0x18] sm:$0xff]
        %v762 = vld [vmem:[#allocation8 + $0x20] sm:$0xff]
        %v763 = vld [vmem:[#allocation8 + $0x28] sm:$0xff]
        %v764 = vld [vmem:[#allocation8 + $0x30] sm:$0xff]
        %v765 = vld [vmem:[#allocation8 + $0x38] sm:$0xff]
        %v766 = vld [vmem:[#allocation8 + $0x40] sm:$0xff]
        %v767 = vld [vmem:[#allocation8 + $0x48] sm:$0xff]
        %v768 = vld [vmem:[#allocation8 + $0x50] sm:$0xff]
        %v769 = vld [vmem:[#allocation8 + $0x58] sm:$0xff]
        %v770 = vld [vmem:[#allocation8 + $0x60] sm:$0xff]
        %v771 = vld [vmem:[#allocation8 + $0x68] sm:$0xff]
        %v772 = vld [vmem:[#allocation8 + $0x70] sm:$0xff]
        %v773 = vld [vmem:[#allocation8 + $0x78] sm:$0xff]
        %vm806 = vcmask 1045504
        %v807 = vrot.slane %v718, 2
        %v808 = vrot.slane %v600, 2
        %v809 = vsel %vm806, %v807, %v808
        %v810 = vrot.slane %v738, 2
        %v811 = vsel %vm806, %v808, %v810
        %v812 = vrot.slane %v719, 2
        %v813 = vrot.slane %v603, 2
        %v814 = vsel %vm806, %v812, %v813
        %v815 = vrot.slane %v739, 2
        %v816 = vsel %vm806, %v813, %v815
        %v817 = vrot.slane %v720, 2
        %v818 = vrot.slane %v606, 2
        %v819 = vsel %vm806, %v817, %v818
        %v820 = vrot.slane %v740, 2
        %v821 = vsel %vm806, %v818, %v820
        %v822 = vrot.slane %v721, 2
        %v823 = vrot.slane %v609, 2
        %v824 = vsel %vm806, %v822, %v823
        %v825 = vrot.slane %v741, 2
        %v826 = vsel %vm806, %v823, %v825
        %v827 = vrot.slane %v722, 2
        %v828 = vrot.slane %v612, 2
        %v829 = vsel %vm806, %v827, %v828
        %v830 = vrot.slane %v742, 2
        %v831 = vsel %vm806, %v828, %v830
        %v832 = vrot.slane %v723, 2
        %v833 = vrot.slane %v615, 2
        %v834 = vsel %vm806, %v832, %v833
        %v835 = vrot.slane %v743, 2
        %v836 = vsel %vm806, %v833, %v835
        %v837 = vrot.slane %v724, 2
        %v838 = vrot.slane %v618, 2
        %v839 = vsel %vm806, %v837, %v838
        %v840 = vrot.slane %v744, 2
        %v841 = vsel %vm806, %v838, %v840
        %v842 = vrot.slane %v725, 2
        %v843 = vrot.slane %v621, 2
        %v844 = vsel %vm806, %v842, %v843
        %v845 = vrot.slane %v745, 2
        %v846 = vsel %vm806, %v843, %v845
        %v847 = vrot.slane %v726, 2
        %v848 = vrot.slane %v624, 2
        %v849 = vsel %vm806, %v847, %v848
        %v850 = vrot.slane %v746, 2
        %v851 = vsel %vm806, %v848, %v850
        %v852 = vrot.slane %v727, 2
        %v853 = vrot.slane %v627, 2
        %v854 = vsel %vm806, %v852, %v853
        %v855 = vrot.slane %v747, 2
        %v856 = vsel %vm806, %v853, %v855
        %v857 = vrot.slane %v728, 2
        %v858 = vrot.slane %v630, 2
        %v859 = vsel %vm806, %v857, %v858
        %v860 = vrot.slane %v748, 2
        %v861 = vsel %vm806, %v858, %v860
        %v862 = vrot.slane %v729, 2
        %v863 = vrot.slane %v633, 2
        %v864 = vsel %vm806, %v862, %v863
        %v865 = vrot.slane %v749, 2
        %v866 = vsel %vm806, %v863, %v865
        %v867 = vrot.slane %v730, 2
        %v868 = vrot.slane %v636, 2
        %v869 = vsel %vm806, %v867, %v868
        %v870 = vrot.slane %v750, 2
        %v871 = vsel %vm806, %v868, %v870
        %v872 = vrot.slane %v731, 2
        %v873 = vrot.slane %v639, 2
        %v874 = vsel %vm806, %v872, %v873
        %v875 = vrot.slane %v751, 2
        %v876 = vsel %vm806, %v873, %v875
        %v877 = vrot.slane %v732, 2
        %v878 = vrot.slane %v642, 2
        %v879 = vsel %vm806, %v877, %v878
        %v880 = vrot.slane %v752, 2
        %v881 = vsel %vm806, %v878, %v880
        %v882 = vrot.slane %v733, 2
        %v883 = vrot.slane %v645, 2
        %v884 = vsel %vm806, %v882, %v883
        %v885 = vrot.slane %v753, 2
        %v886 = vsel %vm806, %v883, %v885
        %s919 = scalar_lea.vmem [#allocation8], 128
        %v920 = vld [vmem:[%s919] sm:$0xff]
        %v921 = vld [vmem:[%s919 + $0x8] sm:$0xff]
        %v922 = vld [vmem:[%s919 + $0x10] sm:$0xff]
        %v923 = vld [vmem:[%s919 + $0x18] sm:$0xff]
        %v924 = vld [vmem:[%s919 + $0x20] sm:$0xff]
        %v925 = vld [vmem:[%s919 + $0x28] sm:$0xff]
        %v926 = vld [vmem:[%s919 + $0x30] sm:$0xff]
        %v927 = vld [vmem:[%s919 + $0x38] sm:$0xff]
        %v928 = vld [vmem:[%s919 + $0x40] sm:$0xff]
        %v929 = vld [vmem:[%s919 + $0x48] sm:$0xff]
        %v930 = vld [vmem:[%s919 + $0x50] sm:$0xff]
        %v931 = vld [vmem:[%s919 + $0x58] sm:$0xff]
        %v932 = vld [vmem:[%s919 + $0x60] sm:$0xff]
        %v933 = vld [vmem:[%s919 + $0x68] sm:$0xff]
        %v934 = vld [vmem:[%s919 + $0x70] sm:$0xff]
        %v935 = vld [vmem:[%s919 + $0x78] sm:$0xff]
        %936 = vmatprep.subr.mxu0 0.0
        %937 = vmatpush1.msra.mxu0 %v935
        %938 = vmatprep.subr.mxu0 0.0
        %939 = vmatpush1.msra.mxu0 %v934
        %940 = vmatprep.subr.mxu0 0.0
        %941 = vmatpush1.msra.mxu0 %v933
        %942 = vmatprep.subr.mxu0 0.0
        %943 = vmatpush1.msra.mxu0 %v932
        %944 = vmatprep.subr.mxu0 0.0
        %945 = vmatpush1.msra.mxu0 %v931
        %946 = vmatprep.subr.mxu0 0.0
        %947 = vmatpush1.msra.mxu0 %v930
        %948 = vmatprep.subr.mxu0 0.0
        %949 = vmatpush1.msra.mxu0 %v929
        %950 = vmatprep.subr.mxu0 0.0
        %951 = vmatpush1.msra.mxu0 %v928
        %952 = vmatprep.subr.mxu0 0.0
        %953 = vmatpush1.msra.mxu0 %v927
        %954 = vmatprep.subr.mxu0 0.0
        %955 = vmatpush1.msra.mxu0 %v926
        %956 = vmatprep.subr.mxu0 0.0
        %957 = vmatpush1.msra.mxu0 %v925
        %958 = vmatprep.subr.mxu0 0.0
        %959 = vmatpush1.msra.mxu0 %v924
        %960 = vmatprep.subr.mxu0 0.0
        %961 = vmatpush1.msra.mxu0 %v923
        %962 = vmatprep.subr.mxu0 0.0
        %963 = vmatpush1.msra.mxu0 %v922
        %964 = vmatprep.subr.mxu0 0.0
        %965 = vmatpush1.msra.mxu0 %v921
        %966 = vmatprep.subr.mxu0 0.0
        %967 = vmatpush1.msra.mxu0 %v920
        %968 = vmatprep.subr.mxu0 0.0
        %969 = vmatpush2.msra.mxu0 0.0
        %970 = vmatprep.subr.mxu0 0.0
        %971 = vmatpush2.msra.mxu0 0.0
        %972 = vmatprep.subr.mxu0 0.0
        %973 = vmatpush2.msra.mxu0 0.0
        %974 = vmatprep.subr.mxu0 0.0
        %975 = vmatpush2.msra.mxu0 0.0
        %976 = vmatprep.subr.mxu0 0.0
        %977 = vmatpush2.msra.mxu0 0.0
        %978 = vmatprep.subr.mxu0 0.0
        %979 = vmatpush2.msra.mxu0 0.0
        %980 = vmatprep.subr.mxu0 0.0
        %981 = vmatpush2.msra.mxu0 0.0
        %982 = vmatprep.subr.mxu0 0.0
        %983 = vmatpush2.msra.mxu0 0.0
        %984 = vmatprep.subr.mxu0 0.0
        %985 = vmatpush2.msra.mxu0 0.0
        %986 = vmatprep.subr.mxu0 0.0
        %987 = vmatpush2.msra.mxu0 0.0
        %988 = vmatprep.subr.mxu0 0.0
        %989 = vmatpush2.msra.mxu0 0.0
        %990 = vmatprep.subr.mxu0 0.0
        %991 = vmatpush2.msra.mxu0 0.0
        %992 = vmatprep.subr.mxu0 0.0
        %993 = vmatpush2.msra.mxu0 0.0
        %994 = vmatprep.subr.mxu0 0.0
        %995 = vmatpush2.msra.mxu0 0.0
        %996 = vmatprep.subr.mxu0 0.0
        %997 = vmatpush2.msra.mxu0 0.0
        %998 = vmatprep.subr.mxu0 0.0
        %999 = vmatpush2.msra.mxu0 0.0
        %1000 = vmatprep.mubr.f32.mxu0 0.0
        %1001 = vmatmul.mubr.f32.gmra.mxu0 %v809
        %v1002 = vpop.f32.mrf.mxu0
        %v1003 = vadd.f32 0.0, %v1002
        %v1004 = vpop.f32.mrf.mxu0
        %1005 = vmatprep.mubr.f32.mxu0 0.0
        %1006 = vmatmul.mubr.f32.gmra.mxu0 %v811
        %v1007 = vpop.f32.mrf.mxu0
        %v1008 = vadd.f32 0.0, %v1007
        %v1009 = vpop.f32.mrf.mxu0
        %1010 = vmatprep.mubr.f32.mxu0 0.0
        %1011 = vmatmul.mubr.f32.gmra.mxu0 %v814
        %v1012 = vpop.f32.mrf.mxu0
        %v1013 = vadd.f32 0.0, %v1012
        %v1014 = vpop.f32.mrf.mxu0
        %1015 = vmatprep.mubr.f32.mxu0 0.0
        %1016 = vmatmul.mubr.f32.gmra.mxu0 %v816
        %v1017 = vpop.f32.mrf.mxu0
        %v1018 = vadd.f32 0.0, %v1017
        %v1019 = vpop.f32.mrf.mxu0
        %1020 = vmatprep.mubr.f32.mxu0 0.0
        %1021 = vmatmul.mubr.f32.gmra.mxu0 %v819
        %v1022 = vpop.f32.mrf.mxu0
        %v1023 = vadd.f32 0.0, %v1022
        %v1024 = vpop.f32.mrf.mxu0
        %1025 = vmatprep.mubr.f32.mxu0 0.0
        %1026 = vmatmul.mubr.f32.gmra.mxu0 %v821
        %v1027 = vpop.f32.mrf.mxu0
        %v1028 = vadd.f32 0.0, %v1027
        %v1029 = vpop.f32.mrf.mxu0
        %1030 = vmatprep.mubr.f32.mxu0 0.0
        %1031 = vmatmul.mubr.f32.gmra.mxu0 %v824
        %v1032 = vpop.f32.mrf.mxu0
        %v1033 = vadd.f32 0.0, %v1032
        %v1034 = vpop.f32.mrf.mxu0
        %1035 = vmatprep.mubr.f32.mxu0 0.0
        %1036 = vmatmul.mubr.f32.gmra.mxu0 %v826
        %v1037 = vpop.f32.mrf.mxu0
        %v1038 = vadd.f32 0.0, %v1037
        %v1039 = vpop.f32.mrf.mxu0
        %1040 = vmatprep.mubr.f32.mxu0 0.0
        %1041 = vmatmul.mubr.f32.gmra.mxu0 %v829
        %v1042 = vpop.f32.mrf.mxu0
        %v1043 = vadd.f32 0.0, %v1042
        %v1044 = vpop.f32.mrf.mxu0
        %1045 = vmatprep.mubr.f32.mxu0 0.0
        %1046 = vmatmul.mubr.f32.gmra.mxu0 %v831
        %v1047 = vpop.f32.mrf.mxu0
        %v1048 = vadd.f32 0.0, %v1047
        %v1049 = vpop.f32.mrf.mxu0
        %1050 = vmatprep.mubr.f32.mxu0 0.0
        %1051 = vmatmul.mubr.f32.gmra.mxu0 %v834
        %v1052 = vpop.f32.mrf.mxu0
        %v1053 = vadd.f32 0.0, %v1052
        %v1054 = vpop.f32.mrf.mxu0
        %1055 = vmatprep.mubr.f32.mxu0 0.0
        %1056 = vmatmul.mubr.f32.gmra.mxu0 %v836
        %v1057 = vpop.f32.mrf.mxu0
        %v1058 = vadd.f32 0.0, %v1057
        %v1059 = vpop.f32.mrf.mxu0
        %1060 = vmatprep.mubr.f32.mxu0 0.0
        %1061 = vmatmul.mubr.f32.gmra.mxu0 %v839
        %v1062 = vpop.f32.mrf.mxu0
        %v1063 = vadd.f32 0.0, %v1062
        %v1064 = vpop.f32.mrf.mxu0
        %1065 = vmatprep.mubr.f32.mxu0 0.0
        %1066 = vmatmul.mubr.f32.gmra.mxu0 %v841
        %v1067 = vpop.f32.mrf.mxu0
        %v1068 = vadd.f32 0.0, %v1067
        %v1069 = vpop.f32.mrf.mxu0
        %1070 = vmatprep.mubr.f32.mxu0 0.0
        %1071 = vmatmul.mubr.f32.gmra.mxu0 %v844
        %v1072 = vpop.f32.mrf.mxu0
        %v1073 = vadd.f32 0.0, %v1072
        %v1074 = vpop.f32.mrf.mxu0
        %1075 = vmatprep.mubr.f32.mxu0 0.0
        %1076 = vmatmul.mubr.f32.gmra.mxu0 %v846
        %v1077 = vpop.f32.mrf.mxu0
        %v1078 = vadd.f32 0.0, %v1077
        %v1079 = vpop.f32.mrf.mxu0
        %1080 = vmatprep.mubr.f32.mxu0 0.0
        %1081 = vmatmul.mubr.f32.gmra.mxu0 %v849
        %v1082 = vpop.f32.mrf.mxu0
        %v1083 = vadd.f32 0.0, %v1082
        %v1084 = vpop.f32.mrf.mxu0
        %1085 = vmatprep.mubr.f32.mxu0 0.0
        %1086 = vmatmul.mubr.f32.gmra.mxu0 %v851
        %v1087 = vpop.f32.mrf.mxu0
        %v1088 = vadd.f32 0.0, %v1087
        %v1089 = vpop.f32.mrf.mxu0
        %1090 = vmatprep.mubr.f32.mxu0 0.0
        %1091 = vmatmul.mubr.f32.gmra.mxu0 %v854
        %v1092 = vpop.f32.mrf.mxu0
        %v1093 = vadd.f32 0.0, %v1092
        %v1094 = vpop.f32.mrf.mxu0
        %1095 = vmatprep.mubr.f32.mxu0 0.0
        %1096 = vmatmul.mubr.f32.gmra.mxu0 %v856
        %v1097 = vpop.f32.mrf.mxu0
        %v1098 = vadd.f32 0.0, %v1097
        %v1099 = vpop.f32.mrf.mxu0
        %1100 = vmatprep.mubr.f32.mxu0 0.0
        %1101 = vmatmul.mubr.f32.gmra.mxu0 %v859
        %v1102 = vpop.f32.mrf.mxu0
        %v1103 = vadd.f32 0.0, %v1102
        %v1104 = vpop.f32.mrf.mxu0
        %1105 = vmatprep.mubr.f32.mxu0 0.0
        %1106 = vmatmul.mubr.f32.gmra.mxu0 %v861
        %v1107 = vpop.f32.mrf.mxu0
        %v1108 = vadd.f32 0.0, %v1107
        %v1109 = vpop.f32.mrf.mxu0
        %1110 = vmatprep.mubr.f32.mxu0 0.0
        %1111 = vmatmul.mubr.f32.gmra.mxu0 %v864
        %v1112 = vpop.f32.mrf.mxu0
        %v1113 = vadd.f32 0.0, %v1112
        %v1114 = vpop.f32.mrf.mxu0
        %1115 = vmatprep.mubr.f32.mxu0 0.0
        %1116 = vmatmul.mubr.f32.gmra.mxu0 %v866
        %v1117 = vpop.f32.mrf.mxu0
        %v1118 = vadd.f32 0.0, %v1117
        %v1119 = vpop.f32.mrf.mxu0
        %1120 = vmatprep.mubr.f32.mxu0 0.0
        %1121 = vmatmul.mubr.f32.gmra.mxu0 %v869
        %v1122 = vpop.f32.mrf.mxu0
        %v1123 = vadd.f32 0.0, %v1122
        %v1124 = vpop.f32.mrf.mxu0
        %1125 = vmatprep.mubr.f32.mxu0 0.0
        %1126 = vmatmul.mubr.f32.gmra.mxu0 %v871
        %v1127 = vpop.f32.mrf.mxu0
        %v1128 = vadd.f32 0.0, %v1127
        %v1129 = vpop.f32.mrf.mxu0
        %1130 = vmatprep.mubr.f32.mxu0 0.0
        %1131 = vmatmul.mubr.f32.gmra.mxu0 %v874
        %v1132 = vpop.f32.mrf.mxu0
        %v1133 = vadd.f32 0.0, %v1132
        %v1134 = vpop.f32.mrf.mxu0
        %1135 = vmatprep.mubr.f32.mxu0 0.0
        %1136 = vmatmul.mubr.f32.gmra.mxu0 %v876
        %v1137 = vpop.f32.mrf.mxu0
        %v1138 = vadd.f32 0.0, %v1137
        %v1139 = vpop.f32.mrf.mxu0
        %1140 = vmatprep.mubr.f32.mxu0 0.0
        %1141 = vmatmul.mubr.f32.gmra.mxu0 %v879
        %v1142 = vpop.f32.mrf.mxu0
        %v1143 = vadd.f32 0.0, %v1142
        %v1144 = vpop.f32.mrf.mxu0
        %1145 = vmatprep.mubr.f32.mxu0 0.0
        %1146 = vmatmul.mubr.f32.gmra.mxu0 %v881
        %v1147 = vpop.f32.mrf.mxu0
        %v1148 = vadd.f32 0.0, %v1147
        %v1149 = vpop.f32.mrf.mxu0
        %1150 = vmatprep.mubr.f32.mxu0 0.0
        %1151 = vmatmul.mubr.f32.gmra.mxu0 %v884
        %v1152 = vpop.f32.mrf.mxu0
        %v1153 = vadd.f32 0.0, %v1152
        %v1154 = vpop.f32.mrf.mxu0
        %1155 = vmatprep.mubr.f32.mxu0 0.0
        %1156 = vmatmul.mubr.f32.gmra.mxu0 %v886
        %v1157 = vpop.f32.mrf.mxu0
        %v1158 = vadd.f32 0.0, %v1157
        %v1159 = vpop.f32.mrf.mxu0
        %1160 = vdwg.mxu0
        %1161 = vmatprep.subr.mxu0 0.0
        %1162 = vmatpush1.msra.mxu0 %v773
        %1163 = vmatprep.subr.mxu0 0.0
        %1164 = vmatpush1.msra.mxu0 %v772
        %1165 = vmatprep.subr.mxu0 0.0
        %1166 = vmatpush1.msra.mxu0 %v771
        %1167 = vmatprep.subr.mxu0 0.0
        %1168 = vmatpush1.msra.mxu0 %v770
        %1169 = vmatprep.subr.mxu0 0.0
        %1170 = vmatpush1.msra.mxu0 %v769
        %1171 = vmatprep.subr.mxu0 0.0
        %1172 = vmatpush1.msra.mxu0 %v768
        %1173 = vmatprep.subr.mxu0 0.0
        %1174 = vmatpush1.msra.mxu0 %v767
        %1175 = vmatprep.subr.mxu0 0.0
        %1176 = vmatpush1.msra.mxu0 %v766
        %1177 = vmatprep.subr.mxu0 0.0
        %1178 = vmatpush1.msra.mxu0 %v765
        %1179 = vmatprep.subr.mxu0 0.0
        %1180 = vmatpush1.msra.mxu0 %v764
        %1181 = vmatprep.subr.mxu0 0.0
        %1182 = vmatpush1.msra.mxu0 %v763
        %1183 = vmatprep.subr.mxu0 0.0
        %1184 = vmatpush1.msra.mxu0 %v762
        %1185 = vmatprep.subr.mxu0 0.0
        %1186 = vmatpush1.msra.mxu0 %v761
        %1187 = vmatprep.subr.mxu0 0.0
        %1188 = vmatpush1.msra.mxu0 %v760
        %1189 = vmatprep.subr.mxu0 0.0
        %1190 = vmatpush1.msra.mxu0 %v759
        %1191 = vmatprep.subr.mxu0 0.0
        %1192 = vmatpush1.msra.mxu0 %v758
        %1193 = vmatprep.subr.mxu0 0.0
        %1194 = vmatpush2.msra.mxu0 0.0
        %1195 = vmatprep.subr.mxu0 0.0
        %1196 = vmatpush2.msra.mxu0 0.0
        %1197 = vmatprep.subr.mxu0 0.0
        %1198 = vmatpush2.msra.mxu0 0.0
        %1199 = vmatprep.subr.mxu0 0.0
        %1200 = vmatpush2.msra.mxu0 0.0
        %1201 = vmatprep.subr.mxu0 0.0
        %1202 = vmatpush2.msra.mxu0 0.0
        %1203 = vmatprep.subr.mxu0 0.0
        %1204 = vmatpush2.msra.mxu0 0.0
        %1205 = vmatprep.subr.mxu0 0.0
        %1206 = vmatpush2.msra.mxu0 0.0
        %1207 = vmatprep.subr.mxu0 0.0
        %1208 = vmatpush2.msra.mxu0 0.0
        %1209 = vmatprep.subr.mxu0 0.0
        %1210 = vmatpush2.msra.mxu0 0.0
        %1211 = vmatprep.subr.mxu0 0.0
        %1212 = vmatpush2.msra.mxu0 0.0
        %1213 = vmatprep.subr.mxu0 0.0
        %1214 = vmatpush2.msra.mxu0 0.0
        %1215 = vmatprep.subr.mxu0 0.0
        %1216 = vmatpush2.msra.mxu0 0.0
        %1217 = vmatprep.subr.mxu0 0.0
        %1218 = vmatpush2.msra.mxu0 0.0
        %1219 = vmatprep.subr.mxu0 0.0
        %1220 = vmatpush2.msra.mxu0 0.0
        %1221 = vmatprep.subr.mxu0 0.0
        %1222 = vmatpush2.msra.mxu0 0.0
        %1223 = vmatprep.subr.mxu0 0.0
        %1224 = vmatpush2.msra.mxu0 0.0
        %1225 = vmatprep.mubr.f32.mxu0 0.0
        %1226 = vmatmul.mubr.f32.gmra.mxu0 %v718
        %v1227 = vpop.f32.mrf.mxu0
        %v1228 = vadd.f32 %v1003, %v1227
        %v1229 = vpop.f32.mrf.mxu0
        %1230 = vmatprep.mubr.f32.mxu0 0.0
        %1231 = vmatmul.mubr.f32.gmra.mxu0 %v600
        %v1232 = vpop.f32.mrf.mxu0
        %v1233 = vadd.f32 %v1008, %v1232
        %v1234 = vpop.f32.mrf.mxu0
        %1235 = vmatprep.mubr.f32.mxu0 0.0
        %1236 = vmatmul.mubr.f32.gmra.mxu0 %v719
        %v1237 = vpop.f32.mrf.mxu0
        %v1238 = vadd.f32 %v1013, %v1237
        %v1239 = vpop.f32.mrf.mxu0
        %1240 = vmatprep.mubr.f32.mxu0 0.0
        %1241 = vmatmul.mubr.f32.gmra.mxu0 %v603
        %v1242 = vpop.f32.mrf.mxu0
        %v1243 = vadd.f32 %v1018, %v1242
        %v1244 = vpop.f32.mrf.mxu0
        %1245 = vmatprep.mubr.f32.mxu0 0.0
        %1246 = vmatmul.mubr.f32.gmra.mxu0 %v720
        %v1247 = vpop.f32.mrf.mxu0
        %v1248 = vadd.f32 %v1023, %v1247
        %v1249 = vpop.f32.mrf.mxu0
        %1250 = vmatprep.mubr.f32.mxu0 0.0
        %1251 = vmatmul.mubr.f32.gmra.mxu0 %v606
        %v1252 = vpop.f32.mrf.mxu0
        %v1253 = vadd.f32 %v1028, %v1252
        %v1254 = vpop.f32.mrf.mxu0
        %1255 = vmatprep.mubr.f32.mxu0 0.0
        %1256 = vmatmul.mubr.f32.gmra.mxu0 %v721
        %v1257 = vpop.f32.mrf.mxu0
        %v1258 = vadd.f32 %v1033, %v1257
        %v1259 = vpop.f32.mrf.mxu0
        %1260 = vmatprep.mubr.f32.mxu0 0.0
        %1261 = vmatmul.mubr.f32.gmra.mxu0 %v609
        %v1262 = vpop.f32.mrf.mxu0
        %v1263 = vadd.f32 %v1038, %v1262
        %v1264 = vpop.f32.mrf.mxu0
        %1265 = vmatprep.mubr.f32.mxu0 0.0
        %1266 = vmatmul.mubr.f32.gmra.mxu0 %v722
        %v1267 = vpop.f32.mrf.mxu0
        %v1268 = vadd.f32 %v1043, %v1267
        %v1269 = vpop.f32.mrf.mxu0
        %1270 = vmatprep.mubr.f32.mxu0 0.0
        %1271 = vmatmul.mubr.f32.gmra.mxu0 %v612
        %v1272 = vpop.f32.mrf.mxu0
        %v1273 = vadd.f32 %v1048, %v1272
        %v1274 = vpop.f32.mrf.mxu0
        %1275 = vmatprep.mubr.f32.mxu0 0.0
        %1276 = vmatmul.mubr.f32.gmra.mxu0 %v723
        %v1277 = vpop.f32.mrf.mxu0
        %v1278 = vadd.f32 %v1053, %v1277
        %v1279 = vpop.f32.mrf.mxu0
        %1280 = vmatprep.mubr.f32.mxu0 0.0
        %1281 = vmatmul.mubr.f32.gmra.mxu0 %v615
        %v1282 = vpop.f32.mrf.mxu0
        %v1283 = vadd.f32 %v1058, %v1282
        %v1284 = vpop.f32.mrf.mxu0
        %1285 = vmatprep.mubr.f32.mxu0 0.0
        %1286 = vmatmul.mubr.f32.gmra.mxu0 %v724
        %v1287 = vpop.f32.mrf.mxu0
        %v1288 = vadd.f32 %v1063, %v1287
        %v1289 = vpop.f32.mrf.mxu0
        %1290 = vmatprep.mubr.f32.mxu0 0.0
        %1291 = vmatmul.mubr.f32.gmra.mxu0 %v618
        %v1292 = vpop.f32.mrf.mxu0
        %v1293 = vadd.f32 %v1068, %v1292
        %v1294 = vpop.f32.mrf.mxu0
        %1295 = vmatprep.mubr.f32.mxu0 0.0
        %1296 = vmatmul.mubr.f32.gmra.mxu0 %v725
        %v1297 = vpop.f32.mrf.mxu0
        %v1298 = vadd.f32 %v1073, %v1297
        %v1299 = vpop.f32.mrf.mxu0
        %1300 = vmatprep.mubr.f32.mxu0 0.0
        %1301 = vmatmul.mubr.f32.gmra.mxu0 %v621
        %v1302 = vpop.f32.mrf.mxu0
        %v1303 = vadd.f32 %v1078, %v1302
        %v1304 = vpop.f32.mrf.mxu0
        %1305 = vmatprep.mubr.f32.mxu0 0.0
        %1306 = vmatmul.mubr.f32.gmra.mxu0 %v726
        %v1307 = vpop.f32.mrf.mxu0
        %v1308 = vadd.f32 %v1083, %v1307
        %v1309 = vpop.f32.mrf.mxu0
        %1310 = vmatprep.mubr.f32.mxu0 0.0
        %1311 = vmatmul.mubr.f32.gmra.mxu0 %v624
        %v1312 = vpop.f32.mrf.mxu0
        %v1313 = vadd.f32 %v1088, %v1312
        %v1314 = vpop.f32.mrf.mxu0
        %1315 = vmatprep.mubr.f32.mxu0 0.0
        %1316 = vmatmul.mubr.f32.gmra.mxu0 %v727
        %v1317 = vpop.f32.mrf.mxu0
        %v1318 = vadd.f32 %v1093, %v1317
        %v1319 = vpop.f32.mrf.mxu0
        %1320 = vmatprep.mubr.f32.mxu0 0.0
        %1321 = vmatmul.mubr.f32.gmra.mxu0 %v627
        %v1322 = vpop.f32.mrf.mxu0
        %v1323 = vadd.f32 %v1098, %v1322
        %v1324 = vpop.f32.mrf.mxu0
        %1325 = vmatprep.mubr.f32.mxu0 0.0
        %1326 = vmatmul.mubr.f32.gmra.mxu0 %v728
        %v1327 = vpop.f32.mrf.mxu0
        %v1328 = vadd.f32 %v1103, %v1327
        %v1329 = vpop.f32.mrf.mxu0
        %1330 = vmatprep.mubr.f32.mxu0 0.0
        %1331 = vmatmul.mubr.f32.gmra.mxu0 %v630
        %v1332 = vpop.f32.mrf.mxu0
        %v1333 = vadd.f32 %v1108, %v1332
        %v1334 = vpop.f32.mrf.mxu0
        %1335 = vmatprep.mubr.f32.mxu0 0.0
        %1336 = vmatmul.mubr.f32.gmra.mxu0 %v729
        %v1337 = vpop.f32.mrf.mxu0
        %v1338 = vadd.f32 %v1113, %v1337
        %v1339 = vpop.f32.mrf.mxu0
        %1340 = vmatprep.mubr.f32.mxu0 0.0
        %1341 = vmatmul.mubr.f32.gmra.mxu0 %v633
        %v1342 = vpop.f32.mrf.mxu0
        %v1343 = vadd.f32 %v1118, %v1342
        %v1344 = vpop.f32.mrf.mxu0
        %1345 = vmatprep.mubr.f32.mxu0 0.0
        %1346 = vmatmul.mubr.f32.gmra.mxu0 %v730
        %v1347 = vpop.f32.mrf.mxu0
        %v1348 = vadd.f32 %v1123, %v1347
        %v1349 = vpop.f32.mrf.mxu0
        %1350 = vmatprep.mubr.f32.mxu0 0.0
        %1351 = vmatmul.mubr.f32.gmra.mxu0 %v636
        %v1352 = vpop.f32.mrf.mxu0
        %v1353 = vadd.f32 %v1128, %v1352
        %v1354 = vpop.f32.mrf.mxu0
        %1355 = vmatprep.mubr.f32.mxu0 0.0
        %1356 = vmatmul.mubr.f32.gmra.mxu0 %v731
        %v1357 = vpop.f32.mrf.mxu0
        %v1358 = vadd.f32 %v1133, %v1357
        %v1359 = vpop.f32.mrf.mxu0
        %1360 = vmatprep.mubr.f32.mxu0 0.0
        %1361 = vmatmul.mubr.f32.gmra.mxu0 %v639
        %v1362 = vpop.f32.mrf.mxu0
        %v1363 = vadd.f32 %v1138, %v1362
        %v1364 = vpop.f32.mrf.mxu0
        %1365 = vmatprep.mubr.f32.mxu0 0.0
        %1366 = vmatmul.mubr.f32.gmra.mxu0 %v732
        %v1367 = vpop.f32.mrf.mxu0
        %v1368 = vadd.f32 %v1143, %v1367
        %v1369 = vpop.f32.mrf.mxu0
        %1370 = vmatprep.mubr.f32.mxu0 0.0
        %1371 = vmatmul.mubr.f32.gmra.mxu0 %v642
        %v1372 = vpop.f32.mrf.mxu0
        %v1373 = vadd.f32 %v1148, %v1372
        %v1374 = vpop.f32.mrf.mxu0
        %1375 = vmatprep.mubr.f32.mxu0 0.0
        %1376 = vmatmul.mubr.f32.gmra.mxu0 %v733
        %v1377 = vpop.f32.mrf.mxu0
        %v1378 = vadd.f32 %v1153, %v1377
        %v1379 = vpop.f32.mrf.mxu0
        %1380 = vmatprep.mubr.f32.mxu0 0.0
        %1381 = vmatmul.mubr.f32.gmra.mxu0 %v645
        %v1382 = vpop.f32.mrf.mxu0
        %v1383 = vadd.f32 %v1158, %v1382
        %v1384 = vpop.f32.mrf.mxu0
        %1385 = vdwg.mxu0
        %vm1386 = vcmask 1043456
        %v1387 = vrot.slane %v718, 4
        %v1388 = vrot.slane %v600, 4
        %v1389 = vsel %vm1386, %v1387, %v1388
        %v1390 = vrot.slane %v738, 4
        %v1391 = vsel %vm1386, %v1388, %v1390
        %v1392 = vrot.slane %v719, 4
        %v1393 = vrot.slane %v603, 4
        %v1394 = vsel %vm1386, %v1392, %v1393
        %v1395 = vrot.slane %v739, 4
        %v1396 = vsel %vm1386, %v1393, %v1395
        %v1397 = vrot.slane %v720, 4
        %v1398 = vrot.slane %v606, 4
        %v1399 = vsel %vm1386, %v1397, %v1398
        %v1400 = vrot.slane %v740, 4
        %v1401 = vsel %vm1386, %v1398, %v1400
        %v1402 = vrot.slane %v721, 4
        %v1403 = vrot.slane %v609, 4
        %v1404 = vsel %vm1386, %v1402, %v1403
        %v1405 = vrot.slane %v741, 4
        %v1406 = vsel %vm1386, %v1403, %v1405
        %v1407 = vrot.slane %v722, 4
        %v1408 = vrot.slane %v612, 4
        %v1409 = vsel %vm1386, %v1407, %v1408
        %v1410 = vrot.slane %v742, 4
        %v1411 = vsel %vm1386, %v1408, %v1410
        %v1412 = vrot.slane %v723, 4
        %v1413 = vrot.slane %v615, 4
        %v1414 = vsel %vm1386, %v1412, %v1413
        %v1415 = vrot.slane %v743, 4
        %v1416 = vsel %vm1386, %v1413, %v1415
        %v1417 = vrot.slane %v724, 4
        %v1418 = vrot.slane %v618, 4
        %v1419 = vsel %vm1386, %v1417, %v1418
        %v1420 = vrot.slane %v744, 4
        %v1421 = vsel %vm1386, %v1418, %v1420
        %v1422 = vrot.slane %v725, 4
        %v1423 = vrot.slane %v621, 4
        %v1424 = vsel %vm1386, %v1422, %v1423
        %v1425 = vrot.slane %v745, 4
        %v1426 = vsel %vm1386, %v1423, %v1425
        %v1427 = vrot.slane %v726, 4
        %v1428 = vrot.slane %v624, 4
        %v1429 = vsel %vm1386, %v1427, %v1428
        %v1430 = vrot.slane %v746, 4
        %v1431 = vsel %vm1386, %v1428, %v1430
        %v1432 = vrot.slane %v727, 4
        %v1433 = vrot.slane %v627, 4
        %v1434 = vsel %vm1386, %v1432, %v1433
        %v1435 = vrot.slane %v747, 4
        %v1436 = vsel %vm1386, %v1433, %v1435
        %v1437 = vrot.slane %v728, 4
        %v1438 = vrot.slane %v630, 4
        %v1439 = vsel %vm1386, %v1437, %v1438
        %v1440 = vrot.slane %v748, 4
        %v1441 = vsel %vm1386, %v1438, %v1440
        %v1442 = vrot.slane %v729, 4
        %v1443 = vrot.slane %v633, 4
        %v1444 = vsel %vm1386, %v1442, %v1443
        %v1445 = vrot.slane %v749, 4
        %v1446 = vsel %vm1386, %v1443, %v1445
        %v1447 = vrot.slane %v730, 4
        %v1448 = vrot.slane %v636, 4
        %v1449 = vsel %vm1386, %v1447, %v1448
        %v1450 = vrot.slane %v750, 4
        %v1451 = vsel %vm1386, %v1448, %v1450
        %v1452 = vrot.slane %v731, 4
        %v1453 = vrot.slane %v639, 4
        %v1454 = vsel %vm1386, %v1452, %v1453
        %v1455 = vrot.slane %v751, 4
        %v1456 = vsel %vm1386, %v1453, %v1455
        %v1457 = vrot.slane %v732, 4
        %v1458 = vrot.slane %v642, 4
        %v1459 = vsel %vm1386, %v1457, %v1458
        %v1460 = vrot.slane %v752, 4
        %v1461 = vsel %vm1386, %v1458, %v1460
        %v1462 = vrot.slane %v733, 4
        %v1463 = vrot.slane %v645, 4
        %v1464 = vsel %vm1386, %v1462, %v1463
        %v1465 = vrot.slane %v753, 4
        %v1466 = vsel %vm1386, %v1463, %v1465
        %s1499 = scalar_lea.vmem [#allocation8], 256
        %v1500 = vld [vmem:[%s1499] sm:$0xff]
        %v1501 = vld [vmem:[%s1499 + $0x8] sm:$0xff]
        %v1502 = vld [vmem:[%s1499 + $0x10] sm:$0xff]
        %v1503 = vld [vmem:[%s1499 + $0x18] sm:$0xff]
        %v1504 = vld [vmem:[%s1499 + $0x20] sm:$0xff]
        %v1505 = vld [vmem:[%s1499 + $0x28] sm:$0xff]
        %v1506 = vld [vmem:[%s1499 + $0x30] sm:$0xff]
        %v1507 = vld [vmem:[%s1499 + $0x38] sm:$0xff]
        %v1508 = vld [vmem:[%s1499 + $0x40] sm:$0xff]
        %v1509 = vld [vmem:[%s1499 + $0x48] sm:$0xff]
        %v1510 = vld [vmem:[%s1499 + $0x50] sm:$0xff]
        %v1511 = vld [vmem:[%s1499 + $0x58] sm:$0xff]
        %v1512 = vld [vmem:[%s1499 + $0x60] sm:$0xff]
        %v1513 = vld [vmem:[%s1499 + $0x68] sm:$0xff]
        %v1514 = vld [vmem:[%s1499 + $0x70] sm:$0xff]
        %v1515 = vld [vmem:[%s1499 + $0x78] sm:$0xff]
        %1516 = vmatprep.subr.mxu0 0.0
        %1517 = vmatpush1.msra.mxu0 %v1515
        %1518 = vmatprep.subr.mxu0 0.0
        %1519 = vmatpush1.msra.mxu0 %v1514
        %1520 = vmatprep.subr.mxu0 0.0
        %1521 = vmatpush1.msra.mxu0 %v1513
        %1522 = vmatprep.subr.mxu0 0.0
        %1523 = vmatpush1.msra.mxu0 %v1512
        %1524 = vmatprep.subr.mxu0 0.0
        %1525 = vmatpush1.msra.mxu0 %v1511
        %1526 = vmatprep.subr.mxu0 0.0
        %1527 = vmatpush1.msra.mxu0 %v1510
        %1528 = vmatprep.subr.mxu0 0.0
        %1529 = vmatpush1.msra.mxu0 %v1509
        %1530 = vmatprep.subr.mxu0 0.0
        %1531 = vmatpush1.msra.mxu0 %v1508
        %1532 = vmatprep.subr.mxu0 0.0
        %1533 = vmatpush1.msra.mxu0 %v1507
        %1534 = vmatprep.subr.mxu0 0.0
        %1535 = vmatpush1.msra.mxu0 %v1506
        %1536 = vmatprep.subr.mxu0 0.0
        %1537 = vmatpush1.msra.mxu0 %v1505
        %1538 = vmatprep.subr.mxu0 0.0
        %1539 = vmatpush1.msra.mxu0 %v1504
        %1540 = vmatprep.subr.mxu0 0.0
        %1541 = vmatpush1.msra.mxu0 %v1503
        %1542 = vmatprep.subr.mxu0 0.0
        %1543 = vmatpush1.msra.mxu0 %v1502
        %1544 = vmatprep.subr.mxu0 0.0
        %1545 = vmatpush1.msra.mxu0 %v1501
        %1546 = vmatprep.subr.mxu0 0.0
        %1547 = vmatpush1.msra.mxu0 %v1500
        %1548 = vmatprep.subr.mxu0 0.0
        %1549 = vmatpush2.msra.mxu0 0.0
        %1550 = vmatprep.subr.mxu0 0.0
        %1551 = vmatpush2.msra.mxu0 0.0
        %1552 = vmatprep.subr.mxu0 0.0
        %1553 = vmatpush2.msra.mxu0 0.0
        %1554 = vmatprep.subr.mxu0 0.0
        %1555 = vmatpush2.msra.mxu0 0.0
        %1556 = vmatprep.subr.mxu0 0.0
        %1557 = vmatpush2.msra.mxu0 0.0
        %1558 = vmatprep.subr.mxu0 0.0
        %1559 = vmatpush2.msra.mxu0 0.0
        %1560 = vmatprep.subr.mxu0 0.0
        %1561 = vmatpush2.msra.mxu0 0.0
        %1562 = vmatprep.subr.mxu0 0.0
        %1563 = vmatpush2.msra.mxu0 0.0
        %1564 = vmatprep.subr.mxu0 0.0
        %1565 = vmatpush2.msra.mxu0 0.0
        %1566 = vmatprep.subr.mxu0 0.0
        %1567 = vmatpush2.msra.mxu0 0.0
        %1568 = vmatprep.subr.mxu0 0.0
        %1569 = vmatpush2.msra.mxu0 0.0
        %1570 = vmatprep.subr.mxu0 0.0
        %1571 = vmatpush2.msra.mxu0 0.0
        %1572 = vmatprep.subr.mxu0 0.0
        %1573 = vmatpush2.msra.mxu0 0.0
        %1574 = vmatprep.subr.mxu0 0.0
        %1575 = vmatpush2.msra.mxu0 0.0
        %1576 = vmatprep.subr.mxu0 0.0
        %1577 = vmatpush2.msra.mxu0 0.0
        %1578 = vmatprep.subr.mxu0 0.0
        %1579 = vmatpush2.msra.mxu0 0.0
        %1580 = vmatprep.mubr.f32.mxu0 0.0
        %1581 = vmatmul.mubr.f32.gmra.mxu0 %v1389
        %v1582 = vpop.f32.mrf.mxu0
        %v1583 = vadd.f32 0.0, %v1582
        %v1584 = vpop.f32.mrf.mxu0
        %1585 = vmatprep.mubr.f32.mxu0 0.0
        %1586 = vmatmul.mubr.f32.gmra.mxu0 %v1391
        %v1587 = vpop.f32.mrf.mxu0
        %v1588 = vadd.f32 0.0, %v1587
        %v1589 = vpop.f32.mrf.mxu0
        %1590 = vmatprep.mubr.f32.mxu0 0.0
        %1591 = vmatmul.mubr.f32.gmra.mxu0 %v1394
        %v1592 = vpop.f32.mrf.mxu0
        %v1593 = vadd.f32 0.0, %v1592
        %v1594 = vpop.f32.mrf.mxu0
        %1595 = vmatprep.mubr.f32.mxu0 0.0
        %1596 = vmatmul.mubr.f32.gmra.mxu0 %v1396
        %v1597 = vpop.f32.mrf.mxu0
        %v1598 = vadd.f32 0.0, %v1597
        %v1599 = vpop.f32.mrf.mxu0
        %1600 = vmatprep.mubr.f32.mxu0 0.0
        %1601 = vmatmul.mubr.f32.gmra.mxu0 %v1399
        %v1602 = vpop.f32.mrf.mxu0
        %v1603 = vadd.f32 0.0, %v1602
        %v1604 = vpop.f32.mrf.mxu0
        %1605 = vmatprep.mubr.f32.mxu0 0.0
        %1606 = vmatmul.mubr.f32.gmra.mxu0 %v1401
        %v1607 = vpop.f32.mrf.mxu0
        %v1608 = vadd.f32 0.0, %v1607
        %v1609 = vpop.f32.mrf.mxu0
        %1610 = vmatprep.mubr.f32.mxu0 0.0
        %1611 = vmatmul.mubr.f32.gmra.mxu0 %v1404
        %v1612 = vpop.f32.mrf.mxu0
        %v1613 = vadd.f32 0.0, %v1612
        %v1614 = vpop.f32.mrf.mxu0
        %1615 = vmatprep.mubr.f32.mxu0 0.0
        %1616 = vmatmul.mubr.f32.gmra.mxu0 %v1406
        %v1617 = vpop.f32.mrf.mxu0
        %v1618 = vadd.f32 0.0, %v1617
        %v1619 = vpop.f32.mrf.mxu0
        %1620 = vmatprep.mubr.f32.mxu0 0.0
        %1621 = vmatmul.mubr.f32.gmra.mxu0 %v1409
        %v1622 = vpop.f32.mrf.mxu0
        %v1623 = vadd.f32 0.0, %v1622
        %v1624 = vpop.f32.mrf.mxu0
        %1625 = vmatprep.mubr.f32.mxu0 0.0
        %1626 = vmatmul.mubr.f32.gmra.mxu0 %v1411
        %v1627 = vpop.f32.mrf.mxu0
        %v1628 = vadd.f32 0.0, %v1627
        %v1629 = vpop.f32.mrf.mxu0
        %1630 = vmatprep.mubr.f32.mxu0 0.0
        %1631 = vmatmul.mubr.f32.gmra.mxu0 %v1414
        %v1632 = vpop.f32.mrf.mxu0
        %v1633 = vadd.f32 0.0, %v1632
        %v1634 = vpop.f32.mrf.mxu0
        %1635 = vmatprep.mubr.f32.mxu0 0.0
        %1636 = vmatmul.mubr.f32.gmra.mxu0 %v1416
        %v1637 = vpop.f32.mrf.mxu0
        %v1638 = vadd.f32 0.0, %v1637
        %v1639 = vpop.f32.mrf.mxu0
        %1640 = vmatprep.mubr.f32.mxu0 0.0
        %1641 = vmatmul.mubr.f32.gmra.mxu0 %v1419
        %v1642 = vpop.f32.mrf.mxu0
        %v1643 = vadd.f32 0.0, %v1642
        %v1644 = vpop.f32.mrf.mxu0
        %1645 = vmatprep.mubr.f32.mxu0 0.0
        %1646 = vmatmul.mubr.f32.gmra.mxu0 %v1421
        %v1647 = vpop.f32.mrf.mxu0
        %v1648 = vadd.f32 0.0, %v1647
        %v1649 = vpop.f32.mrf.mxu0
        %1650 = vmatprep.mubr.f32.mxu0 0.0
        %1651 = vmatmul.mubr.f32.gmra.mxu0 %v1424
        %v1652 = vpop.f32.mrf.mxu0
        %v1653 = vadd.f32 0.0, %v1652
        %v1654 = vpop.f32.mrf.mxu0
        %1655 = vmatprep.mubr.f32.mxu0 0.0
        %1656 = vmatmul.mubr.f32.gmra.mxu0 %v1426
        %v1657 = vpop.f32.mrf.mxu0
        %v1658 = vadd.f32 0.0, %v1657
        %v1659 = vpop.f32.mrf.mxu0
        %1660 = vmatprep.mubr.f32.mxu0 0.0
        %1661 = vmatmul.mubr.f32.gmra.mxu0 %v1429
        %v1662 = vpop.f32.mrf.mxu0
        %v1663 = vadd.f32 0.0, %v1662
        %v1664 = vpop.f32.mrf.mxu0
        %1665 = vmatprep.mubr.f32.mxu0 0.0
        %1666 = vmatmul.mubr.f32.gmra.mxu0 %v1431
        %v1667 = vpop.f32.mrf.mxu0
        %v1668 = vadd.f32 0.0, %v1667
        %v1669 = vpop.f32.mrf.mxu0
        %1670 = vmatprep.mubr.f32.mxu0 0.0
        %1671 = vmatmul.mubr.f32.gmra.mxu0 %v1434
        %v1672 = vpop.f32.mrf.mxu0
        %v1673 = vadd.f32 0.0, %v1672
        %v1674 = vpop.f32.mrf.mxu0
        %1675 = vmatprep.mubr.f32.mxu0 0.0
        %1676 = vmatmul.mubr.f32.gmra.mxu0 %v1436
        %v1677 = vpop.f32.mrf.mxu0
        %v1678 = vadd.f32 0.0, %v1677
        %v1679 = vpop.f32.mrf.mxu0
        %1680 = vmatprep.mubr.f32.mxu0 0.0
        %1681 = vmatmul.mubr.f32.gmra.mxu0 %v1439
        %v1682 = vpop.f32.mrf.mxu0
        %v1683 = vadd.f32 0.0, %v1682
        %v1684 = vpop.f32.mrf.mxu0
        %1685 = vmatprep.mubr.f32.mxu0 0.0
        %1686 = vmatmul.mubr.f32.gmra.mxu0 %v1441
        %v1687 = vpop.f32.mrf.mxu0
        %v1688 = vadd.f32 0.0, %v1687
        %v1689 = vpop.f32.mrf.mxu0
        %1690 = vmatprep.mubr.f32.mxu0 0.0
        %1691 = vmatmul.mubr.f32.gmra.mxu0 %v1444
        %v1692 = vpop.f32.mrf.mxu0
        %v1693 = vadd.f32 0.0, %v1692
        %v1694 = vpop.f32.mrf.mxu0
        %1695 = vmatprep.mubr.f32.mxu0 0.0
        %1696 = vmatmul.mubr.f32.gmra.mxu0 %v1446
        %v1697 = vpop.f32.mrf.mxu0
        %v1698 = vadd.f32 0.0, %v1697
        %v1699 = vpop.f32.mrf.mxu0
        %1700 = vmatprep.mubr.f32.mxu0 0.0
        %1701 = vmatmul.mubr.f32.gmra.mxu0 %v1449
        %v1702 = vpop.f32.mrf.mxu0
        %v1703 = vadd.f32 0.0, %v1702
        %v1704 = vpop.f32.mrf.mxu0
        %1705 = vmatprep.mubr.f32.mxu0 0.0
        %1706 = vmatmul.mubr.f32.gmra.mxu0 %v1451
        %v1707 = vpop.f32.mrf.mxu0
        %v1708 = vadd.f32 0.0, %v1707
        %v1709 = vpop.f32.mrf.mxu0
        %1710 = vmatprep.mubr.f32.mxu0 0.0
        %1711 = vmatmul.mubr.f32.gmra.mxu0 %v1454
        %v1712 = vpop.f32.mrf.mxu0
        %v1713 = vadd.f32 0.0, %v1712
        %v1714 = vpop.f32.mrf.mxu0
        %1715 = vmatprep.mubr.f32.mxu0 0.0
        %1716 = vmatmul.mubr.f32.gmra.mxu0 %v1456
        %v1717 = vpop.f32.mrf.mxu0
        %v1718 = vadd.f32 0.0, %v1717
        %v1719 = vpop.f32.mrf.mxu0
        %1720 = vmatprep.mubr.f32.mxu0 0.0
        %1721 = vmatmul.mubr.f32.gmra.mxu0 %v1459
        %v1722 = vpop.f32.mrf.mxu0
        %v1723 = vadd.f32 0.0, %v1722
        %v1724 = vpop.f32.mrf.mxu0
        %1725 = vmatprep.mubr.f32.mxu0 0.0
        %1726 = vmatmul.mubr.f32.gmra.mxu0 %v1461
        %v1727 = vpop.f32.mrf.mxu0
        %v1728 = vadd.f32 0.0, %v1727
        %v1729 = vpop.f32.mrf.mxu0
        %1730 = vmatprep.mubr.f32.mxu0 0.0
        %1731 = vmatmul.mubr.f32.gmra.mxu0 %v1464
        %v1732 = vpop.f32.mrf.mxu0
        %v1733 = vadd.f32 0.0, %v1732
        %v1734 = vpop.f32.mrf.mxu0
        %1735 = vmatprep.mubr.f32.mxu0 0.0
        %1736 = vmatmul.mubr.f32.gmra.mxu0 %v1466
        %v1737 = vpop.f32.mrf.mxu0
        %v1738 = vadd.f32 0.0, %v1737
        %v1739 = vpop.f32.mrf.mxu0
        %1740 = vdwg.mxu0
        %v1741 = vadd.f32 %v1228, %v1583
        %v1742 = vadd.f32 %v1233, %v1588
        %v1743 = vadd.f32 %v1238, %v1593
        %v1744 = vadd.f32 %v1243, %v1598
        %v1745 = vadd.f32 %v1248, %v1603
        %v1746 = vadd.f32 %v1253, %v1608
        %v1747 = vadd.f32 %v1258, %v1613
        %v1748 = vadd.f32 %v1263, %v1618
        %v1749 = vadd.f32 %v1268, %v1623
        %v1750 = vadd.f32 %v1273, %v1628
        %v1751 = vadd.f32 %v1278, %v1633
        %v1752 = vadd.f32 %v1283, %v1638
        %v1753 = vadd.f32 %v1288, %v1643
        %v1754 = vadd.f32 %v1293, %v1648
        %v1755 = vadd.f32 %v1298, %v1653
        %v1756 = vadd.f32 %v1303, %v1658
        %v1757 = vadd.f32 %v1308, %v1663
        %v1758 = vadd.f32 %v1313, %v1668
        %v1759 = vadd.f32 %v1318, %v1673
        %v1760 = vadd.f32 %v1323, %v1678
        %v1761 = vadd.f32 %v1328, %v1683
        %v1762 = vadd.f32 %v1333, %v1688
        %v1763 = vadd.f32 %v1338, %v1693
        %v1764 = vadd.f32 %v1343, %v1698
        %v1765 = vadd.f32 %v1348, %v1703
        %v1766 = vadd.f32 %v1353, %v1708
        %v1767 = vadd.f32 %v1358, %v1713
        %v1768 = vadd.f32 %v1363, %v1718
        %v1769 = vadd.f32 %v1368, %v1723
        %v1770 = vadd.f32 %v1373, %v1728
        %v1771 = vadd.f32 %v1378, %v1733
        %v1772 = vadd.f32 %v1383, %v1738
        %s1773 = scalar_lea.vmem [#allocation8], 384
        %v1774 = vld [vmem:[%s1773] sm:$0xff]
        %v1775 = vld [vmem:[%s1773 + $0x8] sm:$0xff]
        %v1776 = vld [vmem:[%s1773 + $0x10] sm:$0xff]
        %v1777 = vld [vmem:[%s1773 + $0x18] sm:$0xff]
        %v1778 = vld [vmem:[%s1773 + $0x20] sm:$0xff]
        %v1779 = vld [vmem:[%s1773 + $0x28] sm:$0xff]
        %v1780 = vld [vmem:[%s1773 + $0x30] sm:$0xff]
        %v1781 = vld [vmem:[%s1773 + $0x38] sm:$0xff]
        %v1782 = vld [vmem:[%s1773 + $0x40] sm:$0xff]
        %v1783 = vld [vmem:[%s1773 + $0x48] sm:$0xff]
        %v1784 = vld [vmem:[%s1773 + $0x50] sm:$0xff]
        %v1785 = vld [vmem:[%s1773 + $0x58] sm:$0xff]
        %v1786 = vld [vmem:[%s1773 + $0x60] sm:$0xff]
        %v1787 = vld [vmem:[%s1773 + $0x68] sm:$0xff]
        %v1788 = vld [vmem:[%s1773 + $0x70] sm:$0xff]
        %v1789 = vld [vmem:[%s1773 + $0x78] sm:$0xff]
        %1790 = vmatprep.subr.mxu0 0.0
        %1791 = vmatpush1.msra.mxu0 %v1789
        %1792 = vmatprep.subr.mxu0 0.0
        %1793 = vmatpush1.msra.mxu0 %v1788
        %1794 = vmatprep.subr.mxu0 0.0
        %1795 = vmatpush1.msra.mxu0 %v1787
        %1796 = vmatprep.subr.mxu0 0.0
        %1797 = vmatpush1.msra.mxu0 %v1786
        %1798 = vmatprep.subr.mxu0 0.0
        %1799 = vmatpush1.msra.mxu0 %v1785
        %1800 = vmatprep.subr.mxu0 0.0
        %1801 = vmatpush1.msra.mxu0 %v1784
        %1802 = vmatprep.subr.mxu0 0.0
        %1803 = vmatpush1.msra.mxu0 %v1783
        %1804 = vmatprep.subr.mxu0 0.0
        %1805 = vmatpush1.msra.mxu0 %v1782
        %1806 = vmatprep.subr.mxu0 0.0
        %1807 = vmatpush1.msra.mxu0 %v1781
        %1808 = vmatprep.subr.mxu0 0.0
        %1809 = vmatpush1.msra.mxu0 %v1780
        %1810 = vmatprep.subr.mxu0 0.0
        %1811 = vmatpush1.msra.mxu0 %v1779
        %1812 = vmatprep.subr.mxu0 0.0
        %1813 = vmatpush1.msra.mxu0 %v1778
        %1814 = vmatprep.subr.mxu0 0.0
        %1815 = vmatpush1.msra.mxu0 %v1777
        %1816 = vmatprep.subr.mxu0 0.0
        %1817 = vmatpush1.msra.mxu0 %v1776
        %1818 = vmatprep.subr.mxu0 0.0
        %1819 = vmatpush1.msra.mxu0 %v1775
        %1820 = vmatprep.subr.mxu0 0.0
        %1821 = vmatpush1.msra.mxu0 %v1774
        %1822 = vmatprep.subr.mxu0 0.0
        %1823 = vmatpush2.msra.mxu0 0.0
        %1824 = vmatprep.subr.mxu0 0.0
        %1825 = vmatpush2.msra.mxu0 0.0
        %1826 = vmatprep.subr.mxu0 0.0
        %1827 = vmatpush2.msra.mxu0 0.0
        %1828 = vmatprep.subr.mxu0 0.0
        %1829 = vmatpush2.msra.mxu0 0.0
        %1830 = vmatprep.subr.mxu0 0.0
        %1831 = vmatpush2.msra.mxu0 0.0
        %1832 = vmatprep.subr.mxu0 0.0
        %1833 = vmatpush2.msra.mxu0 0.0
        %1834 = vmatprep.subr.mxu0 0.0
        %1835 = vmatpush2.msra.mxu0 0.0
        %1836 = vmatprep.subr.mxu0 0.0
        %1837 = vmatpush2.msra.mxu0 0.0
        %1838 = vmatprep.subr.mxu0 0.0
        %1839 = vmatpush2.msra.mxu0 0.0
        %1840 = vmatprep.subr.mxu0 0.0
        %1841 = vmatpush2.msra.mxu0 0.0
        %1842 = vmatprep.subr.mxu0 0.0
        %1843 = vmatpush2.msra.mxu0 0.0
        %1844 = vmatprep.subr.mxu0 0.0
        %1845 = vmatpush2.msra.mxu0 0.0
        %1846 = vmatprep.subr.mxu0 0.0
        %1847 = vmatpush2.msra.mxu0 0.0
        %1848 = vmatprep.subr.mxu0 0.0
        %1849 = vmatpush2.msra.mxu0 0.0
        %1850 = vmatprep.subr.mxu0 0.0
        %1851 = vmatpush2.msra.mxu0 0.0
        %1852 = vmatprep.subr.mxu0 0.0
        %1853 = vmatpush2.msra.mxu0 0.0
        %1854 = vmatprep.mubr.f32.mxu0 0.0
        %1855 = vmatmul.mubr.f32.gmra.mxu0 %v720
        %v1856 = vpop.f32.mrf.mxu0
        %v1857 = vadd.f32 0.0, %v1856
        %v1858 = vpop.f32.mrf.mxu0
        %1859 = vmatprep.mubr.f32.mxu0 0.0
        %1860 = vmatmul.mubr.f32.gmra.mxu0 %v606
        %v1861 = vpop.f32.mrf.mxu0
        %v1862 = vadd.f32 0.0, %v1861
        %v1863 = vpop.f32.mrf.mxu0
        %1864 = vmatprep.mubr.f32.mxu0 0.0
        %1865 = vmatmul.mubr.f32.gmra.mxu0 %v721
        %v1866 = vpop.f32.mrf.mxu0
        %v1867 = vadd.f32 0.0, %v1866
        %v1868 = vpop.f32.mrf.mxu0
        %1869 = vmatprep.mubr.f32.mxu0 0.0
        %1870 = vmatmul.mubr.f32.gmra.mxu0 %v609
        %v1871 = vpop.f32.mrf.mxu0
        %v1872 = vadd.f32 0.0, %v1871
        %v1873 = vpop.f32.mrf.mxu0
        %1874 = vmatprep.mubr.f32.mxu0 0.0
        %1875 = vmatmul.mubr.f32.gmra.mxu0 %v722
        %v1876 = vpop.f32.mrf.mxu0
        %v1877 = vadd.f32 0.0, %v1876
        %v1878 = vpop.f32.mrf.mxu0
        %1879 = vmatprep.mubr.f32.mxu0 0.0
        %1880 = vmatmul.mubr.f32.gmra.mxu0 %v612
        %v1881 = vpop.f32.mrf.mxu0
        %v1882 = vadd.f32 0.0, %v1881
        %v1883 = vpop.f32.mrf.mxu0
        %1884 = vmatprep.mubr.f32.mxu0 0.0
        %1885 = vmatmul.mubr.f32.gmra.mxu0 %v723
        %v1886 = vpop.f32.mrf.mxu0
        %v1887 = vadd.f32 0.0, %v1886
        %v1888 = vpop.f32.mrf.mxu0
        %1889 = vmatprep.mubr.f32.mxu0 0.0
        %1890 = vmatmul.mubr.f32.gmra.mxu0 %v615
        %v1891 = vpop.f32.mrf.mxu0
        %v1892 = vadd.f32 0.0, %v1891
        %v1893 = vpop.f32.mrf.mxu0
        %1894 = vmatprep.mubr.f32.mxu0 0.0
        %1895 = vmatmul.mubr.f32.gmra.mxu0 %v724
        %v1896 = vpop.f32.mrf.mxu0
        %v1897 = vadd.f32 0.0, %v1896
        %v1898 = vpop.f32.mrf.mxu0
        %1899 = vmatprep.mubr.f32.mxu0 0.0
        %1900 = vmatmul.mubr.f32.gmra.mxu0 %v618
        %v1901 = vpop.f32.mrf.mxu0
        %v1902 = vadd.f32 0.0, %v1901
        %v1903 = vpop.f32.mrf.mxu0
        %1904 = vmatprep.mubr.f32.mxu0 0.0
        %1905 = vmatmul.mubr.f32.gmra.mxu0 %v725
        %v1906 = vpop.f32.mrf.mxu0
        %v1907 = vadd.f32 0.0, %v1906
        %v1908 = vpop.f32.mrf.mxu0
        %1909 = vmatprep.mubr.f32.mxu0 0.0
        %1910 = vmatmul.mubr.f32.gmra.mxu0 %v621
        %v1911 = vpop.f32.mrf.mxu0
        %v1912 = vadd.f32 0.0, %v1911
        %v1913 = vpop.f32.mrf.mxu0
        %1914 = vmatprep.mubr.f32.mxu0 0.0
        %1915 = vmatmul.mubr.f32.gmra.mxu0 %v726
        %v1916 = vpop.f32.mrf.mxu0
        %v1917 = vadd.f32 0.0, %v1916
        %v1918 = vpop.f32.mrf.mxu0
        %1919 = vmatprep.mubr.f32.mxu0 0.0
        %1920 = vmatmul.mubr.f32.gmra.mxu0 %v624
        %v1921 = vpop.f32.mrf.mxu0
        %v1922 = vadd.f32 0.0, %v1921
        %v1923 = vpop.f32.mrf.mxu0
        %1924 = vmatprep.mubr.f32.mxu0 0.0
        %1925 = vmatmul.mubr.f32.gmra.mxu0 %v727
        %v1926 = vpop.f32.mrf.mxu0
        %v1927 = vadd.f32 0.0, %v1926
        %v1928 = vpop.f32.mrf.mxu0
        %1929 = vmatprep.mubr.f32.mxu0 0.0
        %1930 = vmatmul.mubr.f32.gmra.mxu0 %v627
        %v1931 = vpop.f32.mrf.mxu0
        %v1932 = vadd.f32 0.0, %v1931
        %v1933 = vpop.f32.mrf.mxu0
        %1934 = vmatprep.mubr.f32.mxu0 0.0
        %1935 = vmatmul.mubr.f32.gmra.mxu0 %v728
        %v1936 = vpop.f32.mrf.mxu0
        %v1937 = vadd.f32 0.0, %v1936
        %v1938 = vpop.f32.mrf.mxu0
        %1939 = vmatprep.mubr.f32.mxu0 0.0
        %1940 = vmatmul.mubr.f32.gmra.mxu0 %v630
        %v1941 = vpop.f32.mrf.mxu0
        %v1942 = vadd.f32 0.0, %v1941
        %v1943 = vpop.f32.mrf.mxu0
        %1944 = vmatprep.mubr.f32.mxu0 0.0
        %1945 = vmatmul.mubr.f32.gmra.mxu0 %v729
        %v1946 = vpop.f32.mrf.mxu0
        %v1947 = vadd.f32 0.0, %v1946
        %v1948 = vpop.f32.mrf.mxu0
        %1949 = vmatprep.mubr.f32.mxu0 0.0
        %1950 = vmatmul.mubr.f32.gmra.mxu0 %v633
        %v1951 = vpop.f32.mrf.mxu0
        %v1952 = vadd.f32 0.0, %v1951
        %v1953 = vpop.f32.mrf.mxu0
        %1954 = vmatprep.mubr.f32.mxu0 0.0
        %1955 = vmatmul.mubr.f32.gmra.mxu0 %v730
        %v1956 = vpop.f32.mrf.mxu0
        %v1957 = vadd.f32 0.0, %v1956
        %v1958 = vpop.f32.mrf.mxu0
        %1959 = vmatprep.mubr.f32.mxu0 0.0
        %1960 = vmatmul.mubr.f32.gmra.mxu0 %v636
        %v1961 = vpop.f32.mrf.mxu0
        %v1962 = vadd.f32 0.0, %v1961
        %v1963 = vpop.f32.mrf.mxu0
        %1964 = vmatprep.mubr.f32.mxu0 0.0
        %1965 = vmatmul.mubr.f32.gmra.mxu0 %v731
        %v1966 = vpop.f32.mrf.mxu0
        %v1967 = vadd.f32 0.0, %v1966
        %v1968 = vpop.f32.mrf.mxu0
        %1969 = vmatprep.mubr.f32.mxu0 0.0
        %1970 = vmatmul.mubr.f32.gmra.mxu0 %v639
        %v1971 = vpop.f32.mrf.mxu0
        %v1972 = vadd.f32 0.0, %v1971
        %v1973 = vpop.f32.mrf.mxu0
        %1974 = vmatprep.mubr.f32.mxu0 0.0
        %1975 = vmatmul.mubr.f32.gmra.mxu0 %v732
        %v1976 = vpop.f32.mrf.mxu0
        %v1977 = vadd.f32 0.0, %v1976
        %v1978 = vpop.f32.mrf.mxu0
        %1979 = vmatprep.mubr.f32.mxu0 0.0
        %1980 = vmatmul.mubr.f32.gmra.mxu0 %v642
        %v1981 = vpop.f32.mrf.mxu0
        %v1982 = vadd.f32 0.0, %v1981
        %v1983 = vpop.f32.mrf.mxu0
        %1984 = vmatprep.mubr.f32.mxu0 0.0
        %1985 = vmatmul.mubr.f32.gmra.mxu0 %v733
        %v1986 = vpop.f32.mrf.mxu0
        %v1987 = vadd.f32 0.0, %v1986
        %v1988 = vpop.f32.mrf.mxu0
        %1989 = vmatprep.mubr.f32.mxu0 0.0
        %1990 = vmatmul.mubr.f32.gmra.mxu0 %v645
        %v1991 = vpop.f32.mrf.mxu0
        %v1992 = vadd.f32 0.0, %v1991
        %v1993 = vpop.f32.mrf.mxu0
        %1994 = vmatprep.mubr.f32.mxu0 0.0
        %1995 = vmatmul.mubr.f32.gmra.mxu0 %v734
        %v1996 = vpop.f32.mrf.mxu0
        %v1997 = vadd.f32 0.0, %v1996
        %v1998 = vpop.f32.mrf.mxu0
        %1999 = vmatprep.mubr.f32.mxu0 0.0
        %2000 = vmatmul.mubr.f32.gmra.mxu0 %v648
        %v2001 = vpop.f32.mrf.mxu0
        %v2002 = vadd.f32 0.0, %v2001
        %v2003 = vpop.f32.mrf.mxu0
        %2004 = vmatprep.mubr.f32.mxu0 0.0
        %2005 = vmatmul.mubr.f32.gmra.mxu0 %v735
        %v2006 = vpop.f32.mrf.mxu0
        %v2007 = vadd.f32 0.0, %v2006
        %v2008 = vpop.f32.mrf.mxu0
        %2009 = vmatprep.mubr.f32.mxu0 0.0
        %2010 = vmatmul.mubr.f32.gmra.mxu0 %v651
        %v2011 = vpop.f32.mrf.mxu0
        %v2012 = vadd.f32 0.0, %v2011
        %v2013 = vpop.f32.mrf.mxu0
        %2014 = vdwg.mxu0
        %v2015 = vadd.f32 %v1741, %v1857
        %v2016 = vadd.f32 %v1742, %v1862
        %v2017 = vadd.f32 %v1743, %v1867
        %v2018 = vadd.f32 %v1744, %v1872
        %v2019 = vadd.f32 %v1745, %v1877
        %v2020 = vadd.f32 %v1746, %v1882
        %v2021 = vadd.f32 %v1747, %v1887
        %v2022 = vadd.f32 %v1748, %v1892
        %v2023 = vadd.f32 %v1749, %v1897
        %v2024 = vadd.f32 %v1750, %v1902
        %v2025 = vadd.f32 %v1751, %v1907
        %v2026 = vadd.f32 %v1752, %v1912
        %v2027 = vadd.f32 %v1753, %v1917
        %v2028 = vadd.f32 %v1754, %v1922
        %v2029 = vadd.f32 %v1755, %v1927
        %v2030 = vadd.f32 %v1756, %v1932
        %v2031 = vadd.f32 %v1757, %v1937
        %v2032 = vadd.f32 %v1758, %v1942
        %v2033 = vadd.f32 %v1759, %v1947
        %v2034 = vadd.f32 %v1760, %v1952
        %v2035 = vadd.f32 %v1761, %v1957
        %v2036 = vadd.f32 %v1762, %v1962
        %v2037 = vadd.f32 %v1763, %v1967
        %v2038 = vadd.f32 %v1764, %v1972
        %v2039 = vadd.f32 %v1765, %v1977
        %v2040 = vadd.f32 %v1766, %v1982
        %v2041 = vadd.f32 %v1767, %v1987
        %v2042 = vadd.f32 %v1768, %v1992
        %v2043 = vadd.f32 %v1769, %v1997
        %v2044 = vadd.f32 %v1770, %v2002
        %v2045 = vadd.f32 %v1771, %v2007
        %v2046 = vadd.f32 %v1772, %v2012
        %v2051 = vrot.slane %v734, 2
        %v2052 = vrot.slane %v648, 2
        %v2053 = vsel %vm806, %v2051, %v2052
        %v2054 = vrot.slane %v754, 2
        %v2055 = vsel %vm806, %v2052, %v2054
        %v2056 = vrot.slane %v735, 2
        %v2057 = vrot.slane %v651, 2
        %v2058 = vsel %vm806, %v2056, %v2057
        %v2059 = vrot.slane %v755, 2
        %v2060 = vsel %vm806, %v2057, %v2059
        %s2065 = scalar_lea.vmem [#allocation8], 512
        %v2066 = vld [vmem:[%s2065] sm:$0xff]
        %v2067 = vld [vmem:[%s2065 + $0x8] sm:$0xff]
        %v2068 = vld [vmem:[%s2065 + $0x10] sm:$0xff]
        %v2069 = vld [vmem:[%s2065 + $0x18] sm:$0xff]
        %v2070 = vld [vmem:[%s2065 + $0x20] sm:$0xff]
        %v2071 = vld [vmem:[%s2065 + $0x28] sm:$0xff]
        %v2072 = vld [vmem:[%s2065 + $0x30] sm:$0xff]
        %v2073 = vld [vmem:[%s2065 + $0x38] sm:$0xff]
        %v2074 = vld [vmem:[%s2065 + $0x40] sm:$0xff]
        %v2075 = vld [vmem:[%s2065 + $0x48] sm:$0xff]
        %v2076 = vld [vmem:[%s2065 + $0x50] sm:$0xff]
        %v2077 = vld [vmem:[%s2065 + $0x58] sm:$0xff]
        %v2078 = vld [vmem:[%s2065 + $0x60] sm:$0xff]
        %v2079 = vld [vmem:[%s2065 + $0x68] sm:$0xff]
        %v2080 = vld [vmem:[%s2065 + $0x70] sm:$0xff]
        %v2081 = vld [vmem:[%s2065 + $0x78] sm:$0xff]
        %2082 = vmatprep.subr.mxu0 0.0
        %2083 = vmatpush1.msra.mxu0 %v2081
        %2084 = vmatprep.subr.mxu0 0.0
        %2085 = vmatpush1.msra.mxu0 %v2080
        %2086 = vmatprep.subr.mxu0 0.0
        %2087 = vmatpush1.msra.mxu0 %v2079
        %2088 = vmatprep.subr.mxu0 0.0
        %2089 = vmatpush1.msra.mxu0 %v2078
        %2090 = vmatprep.subr.mxu0 0.0
        %2091 = vmatpush1.msra.mxu0 %v2077
        %2092 = vmatprep.subr.mxu0 0.0
        %2093 = vmatpush1.msra.mxu0 %v2076
        %2094 = vmatprep.subr.mxu0 0.0
        %2095 = vmatpush1.msra.mxu0 %v2075
        %2096 = vmatprep.subr.mxu0 0.0
        %2097 = vmatpush1.msra.mxu0 %v2074
        %2098 = vmatprep.subr.mxu0 0.0
        %2099 = vmatpush1.msra.mxu0 %v2073
        %2100 = vmatprep.subr.mxu0 0.0
        %2101 = vmatpush1.msra.mxu0 %v2072
        %2102 = vmatprep.subr.mxu0 0.0
        %2103 = vmatpush1.msra.mxu0 %v2071
        %2104 = vmatprep.subr.mxu0 0.0
        %2105 = vmatpush1.msra.mxu0 %v2070
        %2106 = vmatprep.subr.mxu0 0.0
        %2107 = vmatpush1.msra.mxu0 %v2069
        %2108 = vmatprep.subr.mxu0 0.0
        %2109 = vmatpush1.msra.mxu0 %v2068
        %2110 = vmatprep.subr.mxu0 0.0
        %2111 = vmatpush1.msra.mxu0 %v2067
        %2112 = vmatprep.subr.mxu0 0.0
        %2113 = vmatpush1.msra.mxu0 %v2066
        %2114 = vmatprep.subr.mxu0 0.0
        %2115 = vmatpush2.msra.mxu0 0.0
        %2116 = vmatprep.subr.mxu0 0.0
        %2117 = vmatpush2.msra.mxu0 0.0
        %2118 = vmatprep.subr.mxu0 0.0
        %2119 = vmatpush2.msra.mxu0 0.0
        %2120 = vmatprep.subr.mxu0 0.0
        %2121 = vmatpush2.msra.mxu0 0.0
        %2122 = vmatprep.subr.mxu0 0.0
        %2123 = vmatpush2.msra.mxu0 0.0
        %2124 = vmatprep.subr.mxu0 0.0
        %2125 = vmatpush2.msra.mxu0 0.0
        %2126 = vmatprep.subr.mxu0 0.0
        %2127 = vmatpush2.msra.mxu0 0.0
        %2128 = vmatprep.subr.mxu0 0.0
        %2129 = vmatpush2.msra.mxu0 0.0
        %2130 = vmatprep.subr.mxu0 0.0
        %2131 = vmatpush2.msra.mxu0 0.0
        %2132 = vmatprep.subr.mxu0 0.0
        %2133 = vmatpush2.msra.mxu0 0.0
        %2134 = vmatprep.subr.mxu0 0.0
        %2135 = vmatpush2.msra.mxu0 0.0
        %2136 = vmatprep.subr.mxu0 0.0
        %2137 = vmatpush2.msra.mxu0 0.0
        %2138 = vmatprep.subr.mxu0 0.0
        %2139 = vmatpush2.msra.mxu0 0.0
        %2140 = vmatprep.subr.mxu0 0.0
        %2141 = vmatpush2.msra.mxu0 0.0
        %2142 = vmatprep.subr.mxu0 0.0
        %2143 = vmatpush2.msra.mxu0 0.0
        %2144 = vmatprep.subr.mxu0 0.0
        %2145 = vmatpush2.msra.mxu0 0.0
        %2146 = vmatprep.mubr.f32.mxu0 0.0
        %2147 = vmatmul.mubr.f32.gmra.mxu0 %v819
        %v2148 = vpop.f32.mrf.mxu0
        %v2149 = vadd.f32 0.0, %v2148
        %v2150 = vpop.f32.mrf.mxu0
        %2151 = vmatprep.mubr.f32.mxu0 0.0
        %2152 = vmatmul.mubr.f32.gmra.mxu0 %v821
        %v2153 = vpop.f32.mrf.mxu0
        %v2154 = vadd.f32 0.0, %v2153
        %v2155 = vpop.f32.mrf.mxu0
        %2156 = vmatprep.mubr.f32.mxu0 0.0
        %2157 = vmatmul.mubr.f32.gmra.mxu0 %v824
        %v2158 = vpop.f32.mrf.mxu0
        %v2159 = vadd.f32 0.0, %v2158
        %v2160 = vpop.f32.mrf.mxu0
        %2161 = vmatprep.mubr.f32.mxu0 0.0
        %2162 = vmatmul.mubr.f32.gmra.mxu0 %v826
        %v2163 = vpop.f32.mrf.mxu0
        %v2164 = vadd.f32 0.0, %v2163
        %v2165 = vpop.f32.mrf.mxu0
        %2166 = vmatprep.mubr.f32.mxu0 0.0
        %2167 = vmatmul.mubr.f32.gmra.mxu0 %v829
        %v2168 = vpop.f32.mrf.mxu0
        %v2169 = vadd.f32 0.0, %v2168
        %v2170 = vpop.f32.mrf.mxu0
        %2171 = vmatprep.mubr.f32.mxu0 0.0
        %2172 = vmatmul.mubr.f32.gmra.mxu0 %v831
        %v2173 = vpop.f32.mrf.mxu0
        %v2174 = vadd.f32 0.0, %v2173
        %v2175 = vpop.f32.mrf.mxu0
        %2176 = vmatprep.mubr.f32.mxu0 0.0
        %2177 = vmatmul.mubr.f32.gmra.mxu0 %v834
        %v2178 = vpop.f32.mrf.mxu0
        %v2179 = vadd.f32 0.0, %v2178
        %v2180 = vpop.f32.mrf.mxu0
        %2181 = vmatprep.mubr.f32.mxu0 0.0
        %2182 = vmatmul.mubr.f32.gmra.mxu0 %v836
        %v2183 = vpop.f32.mrf.mxu0
        %v2184 = vadd.f32 0.0, %v2183
        %v2185 = vpop.f32.mrf.mxu0
        %2186 = vmatprep.mubr.f32.mxu0 0.0
        %2187 = vmatmul.mubr.f32.gmra.mxu0 %v839
        %v2188 = vpop.f32.mrf.mxu0
        %v2189 = vadd.f32 0.0, %v2188
        %v2190 = vpop.f32.mrf.mxu0
        %2191 = vmatprep.mubr.f32.mxu0 0.0
        %2192 = vmatmul.mubr.f32.gmra.mxu0 %v841
        %v2193 = vpop.f32.mrf.mxu0
        %v2194 = vadd.f32 0.0, %v2193
        %v2195 = vpop.f32.mrf.mxu0
        %2196 = vmatprep.mubr.f32.mxu0 0.0
        %2197 = vmatmul.mubr.f32.gmra.mxu0 %v844
        %v2198 = vpop.f32.mrf.mxu0
        %v2199 = vadd.f32 0.0, %v2198
        %v2200 = vpop.f32.mrf.mxu0
        %2201 = vmatprep.mubr.f32.mxu0 0.0
        %2202 = vmatmul.mubr.f32.gmra.mxu0 %v846
        %v2203 = vpop.f32.mrf.mxu0
        %v2204 = vadd.f32 0.0, %v2203
        %v2205 = vpop.f32.mrf.mxu0
        %2206 = vmatprep.mubr.f32.mxu0 0.0
        %2207 = vmatmul.mubr.f32.gmra.mxu0 %v849
        %v2208 = vpop.f32.mrf.mxu0
        %v2209 = vadd.f32 0.0, %v2208
        %v2210 = vpop.f32.mrf.mxu0
        %2211 = vmatprep.mubr.f32.mxu0 0.0
        %2212 = vmatmul.mubr.f32.gmra.mxu0 %v851
        %v2213 = vpop.f32.mrf.mxu0
        %v2214 = vadd.f32 0.0, %v2213
        %v2215 = vpop.f32.mrf.mxu0
        %2216 = vmatprep.mubr.f32.mxu0 0.0
        %2217 = vmatmul.mubr.f32.gmra.mxu0 %v854
        %v2218 = vpop.f32.mrf.mxu0
        %v2219 = vadd.f32 0.0, %v2218
        %v2220 = vpop.f32.mrf.mxu0
        %2221 = vmatprep.mubr.f32.mxu0 0.0
        %2222 = vmatmul.mubr.f32.gmra.mxu0 %v856
        %v2223 = vpop.f32.mrf.mxu0
        %v2224 = vadd.f32 0.0, %v2223
        %v2225 = vpop.f32.mrf.mxu0
        %2226 = vmatprep.mubr.f32.mxu0 0.0
        %2227 = vmatmul.mubr.f32.gmra.mxu0 %v859
        %v2228 = vpop.f32.mrf.mxu0
        %v2229 = vadd.f32 0.0, %v2228
        %v2230 = vpop.f32.mrf.mxu0
        %2231 = vmatprep.mubr.f32.mxu0 0.0
        %2232 = vmatmul.mubr.f32.gmra.mxu0 %v861
        %v2233 = vpop.f32.mrf.mxu0
        %v2234 = vadd.f32 0.0, %v2233
        %v2235 = vpop.f32.mrf.mxu0
        %2236 = vmatprep.mubr.f32.mxu0 0.0
        %2237 = vmatmul.mubr.f32.gmra.mxu0 %v864
        %v2238 = vpop.f32.mrf.mxu0
        %v2239 = vadd.f32 0.0, %v2238
        %v2240 = vpop.f32.mrf.mxu0
        %2241 = vmatprep.mubr.f32.mxu0 0.0
        %2242 = vmatmul.mubr.f32.gmra.mxu0 %v866
        %v2243 = vpop.f32.mrf.mxu0
        %v2244 = vadd.f32 0.0, %v2243
        %v2245 = vpop.f32.mrf.mxu0
        %2246 = vmatprep.mubr.f32.mxu0 0.0
        %2247 = vmatmul.mubr.f32.gmra.mxu0 %v869
        %v2248 = vpop.f32.mrf.mxu0
        %v2249 = vadd.f32 0.0, %v2248
        %v2250 = vpop.f32.mrf.mxu0
        %2251 = vmatprep.mubr.f32.mxu0 0.0
        %2252 = vmatmul.mubr.f32.gmra.mxu0 %v871
        %v2253 = vpop.f32.mrf.mxu0
        %v2254 = vadd.f32 0.0, %v2253
        %v2255 = vpop.f32.mrf.mxu0
        %2256 = vmatprep.mubr.f32.mxu0 0.0
        %2257 = vmatmul.mubr.f32.gmra.mxu0 %v874
        %v2258 = vpop.f32.mrf.mxu0
        %v2259 = vadd.f32 0.0, %v2258
        %v2260 = vpop.f32.mrf.mxu0
        %2261 = vmatprep.mubr.f32.mxu0 0.0
        %2262 = vmatmul.mubr.f32.gmra.mxu0 %v876
        %v2263 = vpop.f32.mrf.mxu0
        %v2264 = vadd.f32 0.0, %v2263
        %v2265 = vpop.f32.mrf.mxu0
        %2266 = vmatprep.mubr.f32.mxu0 0.0
        %2267 = vmatmul.mubr.f32.gmra.mxu0 %v879
        %v2268 = vpop.f32.mrf.mxu0
        %v2269 = vadd.f32 0.0, %v2268
        %v2270 = vpop.f32.mrf.mxu0
        %2271 = vmatprep.mubr.f32.mxu0 0.0
        %2272 = vmatmul.mubr.f32.gmra.mxu0 %v881
        %v2273 = vpop.f32.mrf.mxu0
        %v2274 = vadd.f32 0.0, %v2273
        %v2275 = vpop.f32.mrf.mxu0
        %2276 = vmatprep.mubr.f32.mxu0 0.0
        %2277 = vmatmul.mubr.f32.gmra.mxu0 %v884
        %v2278 = vpop.f32.mrf.mxu0
        %v2279 = vadd.f32 0.0, %v2278
        %v2280 = vpop.f32.mrf.mxu0
        %2281 = vmatprep.mubr.f32.mxu0 0.0
        %2282 = vmatmul.mubr.f32.gmra.mxu0 %v886
        %v2283 = vpop.f32.mrf.mxu0
        %v2284 = vadd.f32 0.0, %v2283
        %v2285 = vpop.f32.mrf.mxu0
        %2286 = vmatprep.mubr.f32.mxu0 0.0
        %2287 = vmatmul.mubr.f32.gmra.mxu0 %v2053
        %v2288 = vpop.f32.mrf.mxu0
        %v2289 = vadd.f32 0.0, %v2288
        %v2290 = vpop.f32.mrf.mxu0
        %2291 = vmatprep.mubr.f32.mxu0 0.0
        %2292 = vmatmul.mubr.f32.gmra.mxu0 %v2055
        %v2293 = vpop.f32.mrf.mxu0
        %v2294 = vadd.f32 0.0, %v2293
        %v2295 = vpop.f32.mrf.mxu0
        %2296 = vmatprep.mubr.f32.mxu0 0.0
        %2297 = vmatmul.mubr.f32.gmra.mxu0 %v2058
        %v2298 = vpop.f32.mrf.mxu0
        %v2299 = vadd.f32 0.0, %v2298
        %v2300 = vpop.f32.mrf.mxu0
        %2301 = vmatprep.mubr.f32.mxu0 0.0
        %2302 = vmatmul.mubr.f32.gmra.mxu0 %v2060
        %v2303 = vpop.f32.mrf.mxu0
        %v2304 = vadd.f32 0.0, %v2303
        %v2305 = vpop.f32.mrf.mxu0
        %2306 = vdwg.mxu0
        %v2307 = vadd.f32 %v2015, %v2149
        %v2308 = vadd.f32 %v2016, %v2154
        %v2309 = vadd.f32 %v2017, %v2159
        %v2310 = vadd.f32 %v2018, %v2164
        %v2311 = vadd.f32 %v2019, %v2169
        %v2312 = vadd.f32 %v2020, %v2174
        %v2313 = vadd.f32 %v2021, %v2179
        %v2314 = vadd.f32 %v2022, %v2184
        %v2315 = vadd.f32 %v2023, %v2189
        %v2316 = vadd.f32 %v2024, %v2194
        %v2317 = vadd.f32 %v2025, %v2199
        %v2318 = vadd.f32 %v2026, %v2204
        %v2319 = vadd.f32 %v2027, %v2209
        %v2320 = vadd.f32 %v2028, %v2214
        %v2321 = vadd.f32 %v2029, %v2219
        %v2322 = vadd.f32 %v2030, %v2224
        %v2323 = vadd.f32 %v2031, %v2229
        %v2324 = vadd.f32 %v2032, %v2234
        %v2325 = vadd.f32 %v2033, %v2239
        %v2326 = vadd.f32 %v2034, %v2244
        %v2327 = vadd.f32 %v2035, %v2249
        %v2328 = vadd.f32 %v2036, %v2254
        %v2329 = vadd.f32 %v2037, %v2259
        %v2330 = vadd.f32 %v2038, %v2264
        %v2331 = vadd.f32 %v2039, %v2269
        %v2332 = vadd.f32 %v2040, %v2274
        %v2333 = vadd.f32 %v2041, %v2279
        %v2334 = vadd.f32 %v2042, %v2284
        %v2335 = vadd.f32 %v2043, %v2289
        %v2336 = vadd.f32 %v2044, %v2294
        %v2337 = vadd.f32 %v2045, %v2299
        %v2338 = vadd.f32 %v2046, %v2304
        %v2339 = vrot.slane %v734, 4
        %v2340 = vrot.slane %v648, 4
        %v2341 = vsel %vm1386, %v2339, %v2340
        %v2342 = vrot.slane %v754, 4
        %v2343 = vsel %vm1386, %v2340, %v2342
        %v2344 = vrot.slane %v735, 4
        %v2345 = vrot.slane %v651, 4
        %v2346 = vsel %vm1386, %v2344, %v2345
        %v2347 = vrot.slane %v755, 4
        %v2348 = vsel %vm1386, %v2345, %v2347
        %s2353 = scalar_lea.vmem [#allocation8], 640
        %v2354 = vld [vmem:[%s2353] sm:$0xff]
        %v2355 = vld [vmem:[%s2353 + $0x8] sm:$0xff]
        %v2356 = vld [vmem:[%s2353 + $0x10] sm:$0xff]
        %v2357 = vld [vmem:[%s2353 + $0x18] sm:$0xff]
        %v2358 = vld [vmem:[%s2353 + $0x20] sm:$0xff]
        %v2359 = vld [vmem:[%s2353 + $0x28] sm:$0xff]
        %v2360 = vld [vmem:[%s2353 + $0x30] sm:$0xff]
        %v2361 = vld [vmem:[%s2353 + $0x38] sm:$0xff]
        %v2362 = vld [vmem:[%s2353 + $0x40] sm:$0xff]
        %v2363 = vld [vmem:[%s2353 + $0x48] sm:$0xff]
        %v2364 = vld [vmem:[%s2353 + $0x50] sm:$0xff]
        %v2365 = vld [vmem:[%s2353 + $0x58] sm:$0xff]
        %v2366 = vld [vmem:[%s2353 + $0x60] sm:$0xff]
        %v2367 = vld [vmem:[%s2353 + $0x68] sm:$0xff]
        %v2368 = vld [vmem:[%s2353 + $0x70] sm:$0xff]
        %v2369 = vld [vmem:[%s2353 + $0x78] sm:$0xff]
        %2370 = vmatprep.subr.mxu0 0.0
        %2371 = vmatpush1.msra.mxu0 %v2369
        %2372 = vmatprep.subr.mxu0 0.0
        %2373 = vmatpush1.msra.mxu0 %v2368
        %2374 = vmatprep.subr.mxu0 0.0
        %2375 = vmatpush1.msra.mxu0 %v2367
        %2376 = vmatprep.subr.mxu0 0.0
        %2377 = vmatpush1.msra.mxu0 %v2366
        %2378 = vmatprep.subr.mxu0 0.0
        %2379 = vmatpush1.msra.mxu0 %v2365
        %2380 = vmatprep.subr.mxu0 0.0
        %2381 = vmatpush1.msra.mxu0 %v2364
        %2382 = vmatprep.subr.mxu0 0.0
        %2383 = vmatpush1.msra.mxu0 %v2363
        %2384 = vmatprep.subr.mxu0 0.0
        %2385 = vmatpush1.msra.mxu0 %v2362
        %2386 = vmatprep.subr.mxu0 0.0
        %2387 = vmatpush1.msra.mxu0 %v2361
        %2388 = vmatprep.subr.mxu0 0.0
        %2389 = vmatpush1.msra.mxu0 %v2360
        %2390 = vmatprep.subr.mxu0 0.0
        %2391 = vmatpush1.msra.mxu0 %v2359
        %2392 = vmatprep.subr.mxu0 0.0
        %2393 = vmatpush1.msra.mxu0 %v2358
        %2394 = vmatprep.subr.mxu0 0.0
        %2395 = vmatpush1.msra.mxu0 %v2357
        %2396 = vmatprep.subr.mxu0 0.0
        %2397 = vmatpush1.msra.mxu0 %v2356
        %2398 = vmatprep.subr.mxu0 0.0
        %2399 = vmatpush1.msra.mxu0 %v2355
        %2400 = vmatprep.subr.mxu0 0.0
        %2401 = vmatpush1.msra.mxu0 %v2354
        %2402 = vmatprep.subr.mxu0 0.0
        %2403 = vmatpush2.msra.mxu0 0.0
        %2404 = vmatprep.subr.mxu0 0.0
        %2405 = vmatpush2.msra.mxu0 0.0
        %2406 = vmatprep.subr.mxu0 0.0
        %2407 = vmatpush2.msra.mxu0 0.0
        %2408 = vmatprep.subr.mxu0 0.0
        %2409 = vmatpush2.msra.mxu0 0.0
        %2410 = vmatprep.subr.mxu0 0.0
        %2411 = vmatpush2.msra.mxu0 0.0
        %2412 = vmatprep.subr.mxu0 0.0
        %2413 = vmatpush2.msra.mxu0 0.0
        %2414 = vmatprep.subr.mxu0 0.0
        %2415 = vmatpush2.msra.mxu0 0.0
        %2416 = vmatprep.subr.mxu0 0.0
        %2417 = vmatpush2.msra.mxu0 0.0
        %2418 = vmatprep.subr.mxu0 0.0
        %2419 = vmatpush2.msra.mxu0 0.0
        %2420 = vmatprep.subr.mxu0 0.0
        %2421 = vmatpush2.msra.mxu0 0.0
        %2422 = vmatprep.subr.mxu0 0.0
        %2423 = vmatpush2.msra.mxu0 0.0
        %2424 = vmatprep.subr.mxu0 0.0
        %2425 = vmatpush2.msra.mxu0 0.0
        %2426 = vmatprep.subr.mxu0 0.0
        %2427 = vmatpush2.msra.mxu0 0.0
        %2428 = vmatprep.subr.mxu0 0.0
        %2429 = vmatpush2.msra.mxu0 0.0
        %2430 = vmatprep.subr.mxu0 0.0
        %2431 = vmatpush2.msra.mxu0 0.0
        %2432 = vmatprep.subr.mxu0 0.0
        %2433 = vmatpush2.msra.mxu0 0.0
        %2434 = vmatprep.mubr.f32.mxu0 0.0
        %2435 = vmatmul.mubr.f32.gmra.mxu0 %v1399
        %v2436 = vpop.f32.mrf.mxu0
        %v2437 = vadd.f32 0.0, %v2436
        %v2438 = vpop.f32.mrf.mxu0
        %2439 = vmatprep.mubr.f32.mxu0 0.0
        %2440 = vmatmul.mubr.f32.gmra.mxu0 %v1401
        %v2441 = vpop.f32.mrf.mxu0
        %v2442 = vadd.f32 0.0, %v2441
        %v2443 = vpop.f32.mrf.mxu0
        %2444 = vmatprep.mubr.f32.mxu0 0.0
        %2445 = vmatmul.mubr.f32.gmra.mxu0 %v1404
        %v2446 = vpop.f32.mrf.mxu0
        %v2447 = vadd.f32 0.0, %v2446
        %v2448 = vpop.f32.mrf.mxu0
        %2449 = vmatprep.mubr.f32.mxu0 0.0
        %2450 = vmatmul.mubr.f32.gmra.mxu0 %v1406
        %v2451 = vpop.f32.mrf.mxu0
        %v2452 = vadd.f32 0.0, %v2451
        %v2453 = vpop.f32.mrf.mxu0
        %2454 = vmatprep.mubr.f32.mxu0 0.0
        %2455 = vmatmul.mubr.f32.gmra.mxu0 %v1409
        %v2456 = vpop.f32.mrf.mxu0
        %v2457 = vadd.f32 0.0, %v2456
        %v2458 = vpop.f32.mrf.mxu0
        %2459 = vmatprep.mubr.f32.mxu0 0.0
        %2460 = vmatmul.mubr.f32.gmra.mxu0 %v1411
        %v2461 = vpop.f32.mrf.mxu0
        %v2462 = vadd.f32 0.0, %v2461
        %v2463 = vpop.f32.mrf.mxu0
        %2464 = vmatprep.mubr.f32.mxu0 0.0
        %2465 = vmatmul.mubr.f32.gmra.mxu0 %v1414
        %v2466 = vpop.f32.mrf.mxu0
        %v2467 = vadd.f32 0.0, %v2466
        %v2468 = vpop.f32.mrf.mxu0
        %2469 = vmatprep.mubr.f32.mxu0 0.0
        %2470 = vmatmul.mubr.f32.gmra.mxu0 %v1416
        %v2471 = vpop.f32.mrf.mxu0
        %v2472 = vadd.f32 0.0, %v2471
        %v2473 = vpop.f32.mrf.mxu0
        %2474 = vmatprep.mubr.f32.mxu0 0.0
        %2475 = vmatmul.mubr.f32.gmra.mxu0 %v1419
        %v2476 = vpop.f32.mrf.mxu0
        %v2477 = vadd.f32 0.0, %v2476
        %v2478 = vpop.f32.mrf.mxu0
        %2479 = vmatprep.mubr.f32.mxu0 0.0
        %2480 = vmatmul.mubr.f32.gmra.mxu0 %v1421
        %v2481 = vpop.f32.mrf.mxu0
        %v2482 = vadd.f32 0.0, %v2481
        %v2483 = vpop.f32.mrf.mxu0
        %2484 = vmatprep.mubr.f32.mxu0 0.0
        %2485 = vmatmul.mubr.f32.gmra.mxu0 %v1424
        %v2486 = vpop.f32.mrf.mxu0
        %v2487 = vadd.f32 0.0, %v2486
        %v2488 = vpop.f32.mrf.mxu0
        %2489 = vmatprep.mubr.f32.mxu0 0.0
        %2490 = vmatmul.mubr.f32.gmra.mxu0 %v1426
        %v2491 = vpop.f32.mrf.mxu0
        %v2492 = vadd.f32 0.0, %v2491
        %v2493 = vpop.f32.mrf.mxu0
        %2494 = vmatprep.mubr.f32.mxu0 0.0
        %2495 = vmatmul.mubr.f32.gmra.mxu0 %v1429
        %v2496 = vpop.f32.mrf.mxu0
        %v2497 = vadd.f32 0.0, %v2496
        %v2498 = vpop.f32.mrf.mxu0
        %2499 = vmatprep.mubr.f32.mxu0 0.0
        %2500 = vmatmul.mubr.f32.gmra.mxu0 %v1431
        %v2501 = vpop.f32.mrf.mxu0
        %v2502 = vadd.f32 0.0, %v2501
        %v2503 = vpop.f32.mrf.mxu0
        %2504 = vmatprep.mubr.f32.mxu0 0.0
        %2505 = vmatmul.mubr.f32.gmra.mxu0 %v1434
        %v2506 = vpop.f32.mrf.mxu0
        %v2507 = vadd.f32 0.0, %v2506
        %v2508 = vpop.f32.mrf.mxu0
        %2509 = vmatprep.mubr.f32.mxu0 0.0
        %2510 = vmatmul.mubr.f32.gmra.mxu0 %v1436
        %v2511 = vpop.f32.mrf.mxu0
        %v2512 = vadd.f32 0.0, %v2511
        %v2513 = vpop.f32.mrf.mxu0
        %2514 = vmatprep.mubr.f32.mxu0 0.0
        %2515 = vmatmul.mubr.f32.gmra.mxu0 %v1439
        %v2516 = vpop.f32.mrf.mxu0
        %v2517 = vadd.f32 0.0, %v2516
        %v2518 = vpop.f32.mrf.mxu0
        %2519 = vmatprep.mubr.f32.mxu0 0.0
        %2520 = vmatmul.mubr.f32.gmra.mxu0 %v1441
        %v2521 = vpop.f32.mrf.mxu0
        %v2522 = vadd.f32 0.0, %v2521
        %v2523 = vpop.f32.mrf.mxu0
        %2524 = vmatprep.mubr.f32.mxu0 0.0
        %2525 = vmatmul.mubr.f32.gmra.mxu0 %v1444
        %v2526 = vpop.f32.mrf.mxu0
        %v2527 = vadd.f32 0.0, %v2526
        %v2528 = vpop.f32.mrf.mxu0
        %2529 = vmatprep.mubr.f32.mxu0 0.0
        %2530 = vmatmul.mubr.f32.gmra.mxu0 %v1446
        %v2531 = vpop.f32.mrf.mxu0
        %v2532 = vadd.f32 0.0, %v2531
        %v2533 = vpop.f32.mrf.mxu0
        %2534 = vmatprep.mubr.f32.mxu0 0.0
        %2535 = vmatmul.mubr.f32.gmra.mxu0 %v1449
        %v2536 = vpop.f32.mrf.mxu0
        %v2537 = vadd.f32 0.0, %v2536
        %v2538 = vpop.f32.mrf.mxu0
        %2539 = vmatprep.mubr.f32.mxu0 0.0
        %2540 = vmatmul.mubr.f32.gmra.mxu0 %v1451
        %v2541 = vpop.f32.mrf.mxu0
        %v2542 = vadd.f32 0.0, %v2541
        %v2543 = vpop.f32.mrf.mxu0
        %2544 = vmatprep.mubr.f32.mxu0 0.0
        %2545 = vmatmul.mubr.f32.gmra.mxu0 %v1454
        %v2546 = vpop.f32.mrf.mxu0
        %v2547 = vadd.f32 0.0, %v2546
        %v2548 = vpop.f32.mrf.mxu0
        %2549 = vmatprep.mubr.f32.mxu0 0.0
        %2550 = vmatmul.mubr.f32.gmra.mxu0 %v1456
        %v2551 = vpop.f32.mrf.mxu0
        %v2552 = vadd.f32 0.0, %v2551
        %v2553 = vpop.f32.mrf.mxu0
        %2554 = vmatprep.mubr.f32.mxu0 0.0
        %2555 = vmatmul.mubr.f32.gmra.mxu0 %v1459
        %v2556 = vpop.f32.mrf.mxu0
        %v2557 = vadd.f32 0.0, %v2556
        %v2558 = vpop.f32.mrf.mxu0
        %2559 = vmatprep.mubr.f32.mxu0 0.0
        %2560 = vmatmul.mubr.f32.gmra.mxu0 %v1461
        %v2561 = vpop.f32.mrf.mxu0
        %v2562 = vadd.f32 0.0, %v2561
        %v2563 = vpop.f32.mrf.mxu0
        %2564 = vmatprep.mubr.f32.mxu0 0.0
        %2565 = vmatmul.mubr.f32.gmra.mxu0 %v1464
        %v2566 = vpop.f32.mrf.mxu0
        %v2567 = vadd.f32 0.0, %v2566
        %v2568 = vpop.f32.mrf.mxu0
        %2569 = vmatprep.mubr.f32.mxu0 0.0
        %2570 = vmatmul.mubr.f32.gmra.mxu0 %v1466
        %v2571 = vpop.f32.mrf.mxu0
        %v2572 = vadd.f32 0.0, %v2571
        %v2573 = vpop.f32.mrf.mxu0
        %2574 = vmatprep.mubr.f32.mxu0 0.0
        %2575 = vmatmul.mubr.f32.gmra.mxu0 %v2341
        %v2576 = vpop.f32.mrf.mxu0
        %v2577 = vadd.f32 0.0, %v2576
        %v2578 = vpop.f32.mrf.mxu0
        %2579 = vmatprep.mubr.f32.mxu0 0.0
        %2580 = vmatmul.mubr.f32.gmra.mxu0 %v2343
        %v2581 = vpop.f32.mrf.mxu0
        %v2582 = vadd.f32 0.0, %v2581
        %v2583 = vpop.f32.mrf.mxu0
        %2584 = vmatprep.mubr.f32.mxu0 0.0
        %2585 = vmatmul.mubr.f32.gmra.mxu0 %v2346
        %v2586 = vpop.f32.mrf.mxu0
        %v2587 = vadd.f32 0.0, %v2586
        %v2588 = vpop.f32.mrf.mxu0
        %2589 = vmatprep.mubr.f32.mxu0 0.0
        %2590 = vmatmul.mubr.f32.gmra.mxu0 %v2348
        %v2591 = vpop.f32.mrf.mxu0
        %v2592 = vadd.f32 0.0, %v2591
        %v2593 = vpop.f32.mrf.mxu0
        %2594 = vdwg.mxu0
        %v2595 = vadd.f32 %v2307, %v2437
        %v2596 = vadd.f32 %v2308, %v2442
        %v2597 = vadd.f32 %v2309, %v2447
        %v2598 = vadd.f32 %v2310, %v2452
        %v2599 = vadd.f32 %v2311, %v2457
        %v2600 = vadd.f32 %v2312, %v2462
        %v2601 = vadd.f32 %v2313, %v2467
        %v2602 = vadd.f32 %v2314, %v2472
        %v2603 = vadd.f32 %v2315, %v2477
        %v2604 = vadd.f32 %v2316, %v2482
        %v2605 = vadd.f32 %v2317, %v2487
        %v2606 = vadd.f32 %v2318, %v2492
        %v2607 = vadd.f32 %v2319, %v2497
        %v2608 = vadd.f32 %v2320, %v2502
        %v2609 = vadd.f32 %v2321, %v2507
        %v2610 = vadd.f32 %v2322, %v2512
        %v2611 = vadd.f32 %v2323, %v2517
        %v2612 = vadd.f32 %v2324, %v2522
        %v2613 = vadd.f32 %v2325, %v2527
        %v2614 = vadd.f32 %v2326, %v2532
        %v2615 = vadd.f32 %v2327, %v2537
        %v2616 = vadd.f32 %v2328, %v2542
        %v2617 = vadd.f32 %v2329, %v2547
        %v2618 = vadd.f32 %v2330, %v2552
        %v2619 = vadd.f32 %v2331, %v2557
        %v2620 = vadd.f32 %v2332, %v2562
        %v2621 = vadd.f32 %v2333, %v2567
        %v2622 = vadd.f32 %v2334, %v2572
        %v2623 = vadd.f32 %v2335, %v2577
        %v2624 = vadd.f32 %v2336, %v2582
        %v2625 = vadd.f32 %v2337, %v2587
        %v2626 = vadd.f32 %v2338, %v2592
        %s2627 = scalar_lea.vmem [#allocation8], 768
        %v2628 = vld [vmem:[%s2627] sm:$0xff]
        %v2629 = vld [vmem:[%s2627 + $0x8] sm:$0xff]
        %v2630 = vld [vmem:[%s2627 + $0x10] sm:$0xff]
        %v2631 = vld [vmem:[%s2627 + $0x18] sm:$0xff]
        %v2632 = vld [vmem:[%s2627 + $0x20] sm:$0xff]
        %v2633 = vld [vmem:[%s2627 + $0x28] sm:$0xff]
        %v2634 = vld [vmem:[%s2627 + $0x30] sm:$0xff]
        %v2635 = vld [vmem:[%s2627 + $0x38] sm:$0xff]
        %v2636 = vld [vmem:[%s2627 + $0x40] sm:$0xff]
        %v2637 = vld [vmem:[%s2627 + $0x48] sm:$0xff]
        %v2638 = vld [vmem:[%s2627 + $0x50] sm:$0xff]
        %v2639 = vld [vmem:[%s2627 + $0x58] sm:$0xff]
        %v2640 = vld [vmem:[%s2627 + $0x60] sm:$0xff]
        %v2641 = vld [vmem:[%s2627 + $0x68] sm:$0xff]
        %v2642 = vld [vmem:[%s2627 + $0x70] sm:$0xff]
        %v2643 = vld [vmem:[%s2627 + $0x78] sm:$0xff]
        %2644 = vmatprep.subr.mxu0 0.0
        %2645 = vmatpush1.msra.mxu0 %v2643
        %2646 = vmatprep.subr.mxu0 0.0
        %2647 = vmatpush1.msra.mxu0 %v2642
        %2648 = vmatprep.subr.mxu0 0.0
        %2649 = vmatpush1.msra.mxu0 %v2641
        %2650 = vmatprep.subr.mxu0 0.0
        %2651 = vmatpush1.msra.mxu0 %v2640
        %2652 = vmatprep.subr.mxu0 0.0
        %2653 = vmatpush1.msra.mxu0 %v2639
        %2654 = vmatprep.subr.mxu0 0.0
        %2655 = vmatpush1.msra.mxu0 %v2638
        %2656 = vmatprep.subr.mxu0 0.0
        %2657 = vmatpush1.msra.mxu0 %v2637
        %2658 = vmatprep.subr.mxu0 0.0
        %2659 = vmatpush1.msra.mxu0 %v2636
        %2660 = vmatprep.subr.mxu0 0.0
        %2661 = vmatpush1.msra.mxu0 %v2635
        %2662 = vmatprep.subr.mxu0 0.0
        %2663 = vmatpush1.msra.mxu0 %v2634
        %2664 = vmatprep.subr.mxu0 0.0
        %2665 = vmatpush1.msra.mxu0 %v2633
        %2666 = vmatprep.subr.mxu0 0.0
        %2667 = vmatpush1.msra.mxu0 %v2632
        %2668 = vmatprep.subr.mxu0 0.0
        %2669 = vmatpush1.msra.mxu0 %v2631
        %2670 = vmatprep.subr.mxu0 0.0
        %2671 = vmatpush1.msra.mxu0 %v2630
        %2672 = vmatprep.subr.mxu0 0.0
        %2673 = vmatpush1.msra.mxu0 %v2629
        %2674 = vmatprep.subr.mxu0 0.0
        %2675 = vmatpush1.msra.mxu0 %v2628
        %2676 = vmatprep.subr.mxu0 0.0
        %2677 = vmatpush2.msra.mxu0 0.0
        %2678 = vmatprep.subr.mxu0 0.0
        %2679 = vmatpush2.msra.mxu0 0.0
        %2680 = vmatprep.subr.mxu0 0.0
        %2681 = vmatpush2.msra.mxu0 0.0
        %2682 = vmatprep.subr.mxu0 0.0
        %2683 = vmatpush2.msra.mxu0 0.0
        %2684 = vmatprep.subr.mxu0 0.0
        %2685 = vmatpush2.msra.mxu0 0.0
        %2686 = vmatprep.subr.mxu0 0.0
        %2687 = vmatpush2.msra.mxu0 0.0
        %2688 = vmatprep.subr.mxu0 0.0
        %2689 = vmatpush2.msra.mxu0 0.0
        %2690 = vmatprep.subr.mxu0 0.0
        %2691 = vmatpush2.msra.mxu0 0.0
        %2692 = vmatprep.subr.mxu0 0.0
        %2693 = vmatpush2.msra.mxu0 0.0
        %2694 = vmatprep.subr.mxu0 0.0
        %2695 = vmatpush2.msra.mxu0 0.0
        %2696 = vmatprep.subr.mxu0 0.0
        %2697 = vmatpush2.msra.mxu0 0.0
        %2698 = vmatprep.subr.mxu0 0.0
        %2699 = vmatpush2.msra.mxu0 0.0
        %2700 = vmatprep.subr.mxu0 0.0
        %2701 = vmatpush2.msra.mxu0 0.0
        %2702 = vmatprep.subr.mxu0 0.0
        %2703 = vmatpush2.msra.mxu0 0.0
        %2704 = vmatprep.subr.mxu0 0.0
        %2705 = vmatpush2.msra.mxu0 0.0
        %2706 = vmatprep.subr.mxu0 0.0
        %2707 = vmatpush2.msra.mxu0 0.0
        %2708 = vmatprep.mubr.f32.mxu0 0.0
        %2709 = vmatmul.mubr.f32.gmra.mxu0 %v722
        %v2710 = vpop.f32.mrf.mxu0
        %v2711 = vadd.f32 0.0, %v2710
        %v2712 = vpop.f32.mrf.mxu0
        %2713 = vmatprep.mubr.f32.mxu0 0.0
        %2714 = vmatmul.mubr.f32.gmra.mxu0 %v612
        %v2715 = vpop.f32.mrf.mxu0
        %v2716 = vadd.f32 0.0, %v2715
        %v2717 = vpop.f32.mrf.mxu0
        %2718 = vmatprep.mubr.f32.mxu0 0.0
        %2719 = vmatmul.mubr.f32.gmra.mxu0 %v723
        %v2720 = vpop.f32.mrf.mxu0
        %v2721 = vadd.f32 0.0, %v2720
        %v2722 = vpop.f32.mrf.mxu0
        %2723 = vmatprep.mubr.f32.mxu0 0.0
        %2724 = vmatmul.mubr.f32.gmra.mxu0 %v615
        %v2725 = vpop.f32.mrf.mxu0
        %v2726 = vadd.f32 0.0, %v2725
        %v2727 = vpop.f32.mrf.mxu0
        %2728 = vmatprep.mubr.f32.mxu0 0.0
        %2729 = vmatmul.mubr.f32.gmra.mxu0 %v724
        %v2730 = vpop.f32.mrf.mxu0
        %v2731 = vadd.f32 0.0, %v2730
        %v2732 = vpop.f32.mrf.mxu0
        %2733 = vmatprep.mubr.f32.mxu0 0.0
        %2734 = vmatmul.mubr.f32.gmra.mxu0 %v618
        %v2735 = vpop.f32.mrf.mxu0
        %v2736 = vadd.f32 0.0, %v2735
        %v2737 = vpop.f32.mrf.mxu0
        %2738 = vmatprep.mubr.f32.mxu0 0.0
        %2739 = vmatmul.mubr.f32.gmra.mxu0 %v725
        %v2740 = vpop.f32.mrf.mxu0
        %v2741 = vadd.f32 0.0, %v2740
        %v2742 = vpop.f32.mrf.mxu0
        %2743 = vmatprep.mubr.f32.mxu0 0.0
        %2744 = vmatmul.mubr.f32.gmra.mxu0 %v621
        %v2745 = vpop.f32.mrf.mxu0
        %v2746 = vadd.f32 0.0, %v2745
        %v2747 = vpop.f32.mrf.mxu0
        %2748 = vmatprep.mubr.f32.mxu0 0.0
        %2749 = vmatmul.mubr.f32.gmra.mxu0 %v726
        %v2750 = vpop.f32.mrf.mxu0
        %v2751 = vadd.f32 0.0, %v2750
        %v2752 = vpop.f32.mrf.mxu0
        %2753 = vmatprep.mubr.f32.mxu0 0.0
        %2754 = vmatmul.mubr.f32.gmra.mxu0 %v624
        %v2755 = vpop.f32.mrf.mxu0
        %v2756 = vadd.f32 0.0, %v2755
        %v2757 = vpop.f32.mrf.mxu0
        %2758 = vmatprep.mubr.f32.mxu0 0.0
        %2759 = vmatmul.mubr.f32.gmra.mxu0 %v727
        %v2760 = vpop.f32.mrf.mxu0
        %v2761 = vadd.f32 0.0, %v2760
        %v2762 = vpop.f32.mrf.mxu0
        %2763 = vmatprep.mubr.f32.mxu0 0.0
        %2764 = vmatmul.mubr.f32.gmra.mxu0 %v627
        %v2765 = vpop.f32.mrf.mxu0
        %v2766 = vadd.f32 0.0, %v2765
        %v2767 = vpop.f32.mrf.mxu0
        %2768 = vmatprep.mubr.f32.mxu0 0.0
        %2769 = vmatmul.mubr.f32.gmra.mxu0 %v728
        %v2770 = vpop.f32.mrf.mxu0
        %v2771 = vadd.f32 0.0, %v2770
        %v2772 = vpop.f32.mrf.mxu0
        %2773 = vmatprep.mubr.f32.mxu0 0.0
        %2774 = vmatmul.mubr.f32.gmra.mxu0 %v630
        %v2775 = vpop.f32.mrf.mxu0
        %v2776 = vadd.f32 0.0, %v2775
        %v2777 = vpop.f32.mrf.mxu0
        %2778 = vmatprep.mubr.f32.mxu0 0.0
        %2779 = vmatmul.mubr.f32.gmra.mxu0 %v729
        %v2780 = vpop.f32.mrf.mxu0
        %v2781 = vadd.f32 0.0, %v2780
        %v2782 = vpop.f32.mrf.mxu0
        %2783 = vmatprep.mubr.f32.mxu0 0.0
        %2784 = vmatmul.mubr.f32.gmra.mxu0 %v633
        %v2785 = vpop.f32.mrf.mxu0
        %v2786 = vadd.f32 0.0, %v2785
        %v2787 = vpop.f32.mrf.mxu0
        %2788 = vmatprep.mubr.f32.mxu0 0.0
        %2789 = vmatmul.mubr.f32.gmra.mxu0 %v730
        %v2790 = vpop.f32.mrf.mxu0
        %v2791 = vadd.f32 0.0, %v2790
        %v2792 = vpop.f32.mrf.mxu0
        %2793 = vmatprep.mubr.f32.mxu0 0.0
        %2794 = vmatmul.mubr.f32.gmra.mxu0 %v636
        %v2795 = vpop.f32.mrf.mxu0
        %v2796 = vadd.f32 0.0, %v2795
        %v2797 = vpop.f32.mrf.mxu0
        %2798 = vmatprep.mubr.f32.mxu0 0.0
        %2799 = vmatmul.mubr.f32.gmra.mxu0 %v731
        %v2800 = vpop.f32.mrf.mxu0
        %v2801 = vadd.f32 0.0, %v2800
        %v2802 = vpop.f32.mrf.mxu0
        %2803 = vmatprep.mubr.f32.mxu0 0.0
        %2804 = vmatmul.mubr.f32.gmra.mxu0 %v639
        %v2805 = vpop.f32.mrf.mxu0
        %v2806 = vadd.f32 0.0, %v2805
        %v2807 = vpop.f32.mrf.mxu0
        %2808 = vmatprep.mubr.f32.mxu0 0.0
        %2809 = vmatmul.mubr.f32.gmra.mxu0 %v732
        %v2810 = vpop.f32.mrf.mxu0
        %v2811 = vadd.f32 0.0, %v2810
        %v2812 = vpop.f32.mrf.mxu0
        %2813 = vmatprep.mubr.f32.mxu0 0.0
        %2814 = vmatmul.mubr.f32.gmra.mxu0 %v642
        %v2815 = vpop.f32.mrf.mxu0
        %v2816 = vadd.f32 0.0, %v2815
        %v2817 = vpop.f32.mrf.mxu0
        %2818 = vmatprep.mubr.f32.mxu0 0.0
        %2819 = vmatmul.mubr.f32.gmra.mxu0 %v733
        %v2820 = vpop.f32.mrf.mxu0
        %v2821 = vadd.f32 0.0, %v2820
        %v2822 = vpop.f32.mrf.mxu0
        %2823 = vmatprep.mubr.f32.mxu0 0.0
        %2824 = vmatmul.mubr.f32.gmra.mxu0 %v645
        %v2825 = vpop.f32.mrf.mxu0
        %v2826 = vadd.f32 0.0, %v2825
        %v2827 = vpop.f32.mrf.mxu0
        %2828 = vmatprep.mubr.f32.mxu0 0.0
        %2829 = vmatmul.mubr.f32.gmra.mxu0 %v734
        %v2830 = vpop.f32.mrf.mxu0
        %v2831 = vadd.f32 0.0, %v2830
        %v2832 = vpop.f32.mrf.mxu0
        %2833 = vmatprep.mubr.f32.mxu0 0.0
        %2834 = vmatmul.mubr.f32.gmra.mxu0 %v648
        %v2835 = vpop.f32.mrf.mxu0
        %v2836 = vadd.f32 0.0, %v2835
        %v2837 = vpop.f32.mrf.mxu0
        %2838 = vmatprep.mubr.f32.mxu0 0.0
        %2839 = vmatmul.mubr.f32.gmra.mxu0 %v735
        %v2840 = vpop.f32.mrf.mxu0
        %v2841 = vadd.f32 0.0, %v2840
        %v2842 = vpop.f32.mrf.mxu0
        %2843 = vmatprep.mubr.f32.mxu0 0.0
        %2844 = vmatmul.mubr.f32.gmra.mxu0 %v651
        %v2845 = vpop.f32.mrf.mxu0
        %v2846 = vadd.f32 0.0, %v2845
        %v2847 = vpop.f32.mrf.mxu0
        %2848 = vmatprep.mubr.f32.mxu0 0.0
        %2849 = vmatmul.mubr.f32.gmra.mxu0 %v736
        %v2850 = vpop.f32.mrf.mxu0
        %v2851 = vadd.f32 0.0, %v2850
        %v2852 = vpop.f32.mrf.mxu0
        %2853 = vmatprep.mubr.f32.mxu0 0.0
        %2854 = vmatmul.mubr.f32.gmra.mxu0 %v654
        %v2855 = vpop.f32.mrf.mxu0
        %v2856 = vadd.f32 0.0, %v2855
        %v2857 = vpop.f32.mrf.mxu0
        %2858 = vmatprep.mubr.f32.mxu0 0.0
        %2859 = vmatmul.mubr.f32.gmra.mxu0 %v737
        %v2860 = vpop.f32.mrf.mxu0
        %v2861 = vadd.f32 0.0, %v2860
        %v2862 = vpop.f32.mrf.mxu0
        %2863 = vmatprep.mubr.f32.mxu0 0.0
        %2864 = vmatmul.mubr.f32.gmra.mxu0 %v657
        %v2865 = vpop.f32.mrf.mxu0
        %v2866 = vadd.f32 0.0, %v2865
        %v2867 = vpop.f32.mrf.mxu0
        %2868 = vdwg.mxu0
        %v2869 = vadd.f32 %v2595, %v2711
        %v2870 = vadd.f32 %v2596, %v2716
        %v2871 = vadd.f32 %v2597, %v2721
        %v2872 = vadd.f32 %v2598, %v2726
        %v2873 = vadd.f32 %v2599, %v2731
        %v2874 = vadd.f32 %v2600, %v2736
        %v2875 = vadd.f32 %v2601, %v2741
        %v2876 = vadd.f32 %v2602, %v2746
        %v2877 = vadd.f32 %v2603, %v2751
        %v2878 = vadd.f32 %v2604, %v2756
        %v2879 = vadd.f32 %v2605, %v2761
        %v2880 = vadd.f32 %v2606, %v2766
        %v2881 = vadd.f32 %v2607, %v2771
        %v2882 = vadd.f32 %v2608, %v2776
        %v2883 = vadd.f32 %v2609, %v2781
        %v2884 = vadd.f32 %v2610, %v2786
        %v2885 = vadd.f32 %v2611, %v2791
        %v2886 = vadd.f32 %v2612, %v2796
        %v2887 = vadd.f32 %v2613, %v2801
        %v2888 = vadd.f32 %v2614, %v2806
        %v2889 = vadd.f32 %v2615, %v2811
        %v2890 = vadd.f32 %v2616, %v2816
        %v2891 = vadd.f32 %v2617, %v2821
        %v2892 = vadd.f32 %v2618, %v2826
        %v2893 = vadd.f32 %v2619, %v2831
        %v2894 = vadd.f32 %v2620, %v2836
        %v2895 = vadd.f32 %v2621, %v2841
        %v2896 = vadd.f32 %v2622, %v2846
        %v2897 = vadd.f32 %v2623, %v2851
        %v2898 = vadd.f32 %v2624, %v2856
        %v2899 = vadd.f32 %v2625, %v2861
        %v2900 = vadd.f32 %v2626, %v2866
        %v2905 = vrot.slane %v736, 2
        %v2906 = vrot.slane %v654, 2
        %v2907 = vsel %vm806, %v2905, %v2906
        %v2908 = vrot.slane %v756, 2
        %v2909 = vsel %vm806, %v2906, %v2908
        %v2910 = vrot.slane %v737, 2
        %v2911 = vrot.slane %v657, 2
        %v2912 = vsel %vm806, %v2910, %v2911
        %v2913 = vrot.slane %v757, 2
        %v2914 = vsel %vm806, %v2911, %v2913
        %s2919 = scalar_lea.vmem [#allocation8], 896
        %v2920 = vld [vmem:[%s2919] sm:$0xff]
        %v2921 = vld [vmem:[%s2919 + $0x8] sm:$0xff]
        %v2922 = vld [vmem:[%s2919 + $0x10] sm:$0xff]
        %v2923 = vld [vmem:[%s2919 + $0x18] sm:$0xff]
        %v2924 = vld [vmem:[%s2919 + $0x20] sm:$0xff]
        %v2925 = vld [vmem:[%s2919 + $0x28] sm:$0xff]
        %v2926 = vld [vmem:[%s2919 + $0x30] sm:$0xff]
        %v2927 = vld [vmem:[%s2919 + $0x38] sm:$0xff]
        %v2928 = vld [vmem:[%s2919 + $0x40] sm:$0xff]
        %v2929 = vld [vmem:[%s2919 + $0x48] sm:$0xff]
        %v2930 = vld [vmem:[%s2919 + $0x50] sm:$0xff]
        %v2931 = vld [vmem:[%s2919 + $0x58] sm:$0xff]
        %v2932 = vld [vmem:[%s2919 + $0x60] sm:$0xff]
        %v2933 = vld [vmem:[%s2919 + $0x68] sm:$0xff]
        %v2934 = vld [vmem:[%s2919 + $0x70] sm:$0xff]
        %v2935 = vld [vmem:[%s2919 + $0x78] sm:$0xff]
        %2936 = vmatprep.subr.mxu0 0.0
        %2937 = vmatpush1.msra.mxu0 %v2935
        %2938 = vmatprep.subr.mxu0 0.0
        %2939 = vmatpush1.msra.mxu0 %v2934
        %2940 = vmatprep.subr.mxu0 0.0
        %2941 = vmatpush1.msra.mxu0 %v2933
        %2942 = vmatprep.subr.mxu0 0.0
        %2943 = vmatpush1.msra.mxu0 %v2932
        %2944 = vmatprep.subr.mxu0 0.0
        %2945 = vmatpush1.msra.mxu0 %v2931
        %2946 = vmatprep.subr.mxu0 0.0
        %2947 = vmatpush1.msra.mxu0 %v2930
        %2948 = vmatprep.subr.mxu0 0.0
        %2949 = vmatpush1.msra.mxu0 %v2929
        %2950 = vmatprep.subr.mxu0 0.0
        %2951 = vmatpush1.msra.mxu0 %v2928
        %2952 = vmatprep.subr.mxu0 0.0
        %2953 = vmatpush1.msra.mxu0 %v2927
        %2954 = vmatprep.subr.mxu0 0.0
        %2955 = vmatpush1.msra.mxu0 %v2926
        %2956 = vmatprep.subr.mxu0 0.0
        %2957 = vmatpush1.msra.mxu0 %v2925
        %2958 = vmatprep.subr.mxu0 0.0
        %2959 = vmatpush1.msra.mxu0 %v2924
        %2960 = vmatprep.subr.mxu0 0.0
        %2961 = vmatpush1.msra.mxu0 %v2923
        %2962 = vmatprep.subr.mxu0 0.0
        %2963 = vmatpush1.msra.mxu0 %v2922
        %2964 = vmatprep.subr.mxu0 0.0
        %2965 = vmatpush1.msra.mxu0 %v2921
        %2966 = vmatprep.subr.mxu0 0.0
        %2967 = vmatpush1.msra.mxu0 %v2920
        %2968 = vmatprep.subr.mxu0 0.0
        %2969 = vmatpush2.msra.mxu0 0.0
        %2970 = vmatprep.subr.mxu0 0.0
        %2971 = vmatpush2.msra.mxu0 0.0
        %2972 = vmatprep.subr.mxu0 0.0
        %2973 = vmatpush2.msra.mxu0 0.0
        %2974 = vmatprep.subr.mxu0 0.0
        %2975 = vmatpush2.msra.mxu0 0.0
        %2976 = vmatprep.subr.mxu0 0.0
        %2977 = vmatpush2.msra.mxu0 0.0
        %2978 = vmatprep.subr.mxu0 0.0
        %2979 = vmatpush2.msra.mxu0 0.0
        %2980 = vmatprep.subr.mxu0 0.0
        %2981 = vmatpush2.msra.mxu0 0.0
        %2982 = vmatprep.subr.mxu0 0.0
        %2983 = vmatpush2.msra.mxu0 0.0
        %2984 = vmatprep.subr.mxu0 0.0
        %2985 = vmatpush2.msra.mxu0 0.0
        %2986 = vmatprep.subr.mxu0 0.0
        %2987 = vmatpush2.msra.mxu0 0.0
        %2988 = vmatprep.subr.mxu0 0.0
        %2989 = vmatpush2.msra.mxu0 0.0
        %2990 = vmatprep.subr.mxu0 0.0
        %2991 = vmatpush2.msra.mxu0 0.0
        %2992 = vmatprep.subr.mxu0 0.0
        %2993 = vmatpush2.msra.mxu0 0.0
        %2994 = vmatprep.subr.mxu0 0.0
        %2995 = vmatpush2.msra.mxu0 0.0
        %2996 = vmatprep.subr.mxu0 0.0
        %2997 = vmatpush2.msra.mxu0 0.0
        %2998 = vmatprep.subr.mxu0 0.0
        %2999 = vmatpush2.msra.mxu0 0.0
        %3000 = vmatprep.mubr.f32.mxu0 0.0
        %3001 = vmatmul.mubr.f32.gmra.mxu0 %v829
        %v3002 = vpop.f32.mrf.mxu0
        %v3003 = vadd.f32 0.0, %v3002
        %v3004 = vpop.f32.mrf.mxu0
        %3005 = vmatprep.mubr.f32.mxu0 0.0
        %3006 = vmatmul.mubr.f32.gmra.mxu0 %v831
        %v3007 = vpop.f32.mrf.mxu0
        %v3008 = vadd.f32 0.0, %v3007
        %v3009 = vpop.f32.mrf.mxu0
        %3010 = vmatprep.mubr.f32.mxu0 0.0
        %3011 = vmatmul.mubr.f32.gmra.mxu0 %v834
        %v3012 = vpop.f32.mrf.mxu0
        %v3013 = vadd.f32 0.0, %v3012
        %v3014 = vpop.f32.mrf.mxu0
        %3015 = vmatprep.mubr.f32.mxu0 0.0
        %3016 = vmatmul.mubr.f32.gmra.mxu0 %v836
        %v3017 = vpop.f32.mrf.mxu0
        %v3018 = vadd.f32 0.0, %v3017
        %v3019 = vpop.f32.mrf.mxu0
        %3020 = vmatprep.mubr.f32.mxu0 0.0
        %3021 = vmatmul.mubr.f32.gmra.mxu0 %v839
        %v3022 = vpop.f32.mrf.mxu0
        %v3023 = vadd.f32 0.0, %v3022
        %v3024 = vpop.f32.mrf.mxu0
        %3025 = vmatprep.mubr.f32.mxu0 0.0
        %3026 = vmatmul.mubr.f32.gmra.mxu0 %v841
        %v3027 = vpop.f32.mrf.mxu0
        %v3028 = vadd.f32 0.0, %v3027
        %v3029 = vpop.f32.mrf.mxu0
        %3030 = vmatprep.mubr.f32.mxu0 0.0
        %3031 = vmatmul.mubr.f32.gmra.mxu0 %v844
        %v3032 = vpop.f32.mrf.mxu0
        %v3033 = vadd.f32 0.0, %v3032
        %v3034 = vpop.f32.mrf.mxu0
        %3035 = vmatprep.mubr.f32.mxu0 0.0
        %3036 = vmatmul.mubr.f32.gmra.mxu0 %v846
        %v3037 = vpop.f32.mrf.mxu0
        %v3038 = vadd.f32 0.0, %v3037
        %v3039 = vpop.f32.mrf.mxu0
        %3040 = vmatprep.mubr.f32.mxu0 0.0
        %3041 = vmatmul.mubr.f32.gmra.mxu0 %v849
        %v3042 = vpop.f32.mrf.mxu0
        %v3043 = vadd.f32 0.0, %v3042
        %v3044 = vpop.f32.mrf.mxu0
        %3045 = vmatprep.mubr.f32.mxu0 0.0
        %3046 = vmatmul.mubr.f32.gmra.mxu0 %v851
        %v3047 = vpop.f32.mrf.mxu0
        %v3048 = vadd.f32 0.0, %v3047
        %v3049 = vpop.f32.mrf.mxu0
        %3050 = vmatprep.mubr.f32.mxu0 0.0
        %3051 = vmatmul.mubr.f32.gmra.mxu0 %v854
        %v3052 = vpop.f32.mrf.mxu0
        %v3053 = vadd.f32 0.0, %v3052
        %v3054 = vpop.f32.mrf.mxu0
        %3055 = vmatprep.mubr.f32.mxu0 0.0
        %3056 = vmatmul.mubr.f32.gmra.mxu0 %v856
        %v3057 = vpop.f32.mrf.mxu0
        %v3058 = vadd.f32 0.0, %v3057
        %v3059 = vpop.f32.mrf.mxu0
        %3060 = vmatprep.mubr.f32.mxu0 0.0
        %3061 = vmatmul.mubr.f32.gmra.mxu0 %v859
        %v3062 = vpop.f32.mrf.mxu0
        %v3063 = vadd.f32 0.0, %v3062
        %v3064 = vpop.f32.mrf.mxu0
        %3065 = vmatprep.mubr.f32.mxu0 0.0
        %3066 = vmatmul.mubr.f32.gmra.mxu0 %v861
        %v3067 = vpop.f32.mrf.mxu0
        %v3068 = vadd.f32 0.0, %v3067
        %v3069 = vpop.f32.mrf.mxu0
        %3070 = vmatprep.mubr.f32.mxu0 0.0
        %3071 = vmatmul.mubr.f32.gmra.mxu0 %v864
        %v3072 = vpop.f32.mrf.mxu0
        %v3073 = vadd.f32 0.0, %v3072
        %v3074 = vpop.f32.mrf.mxu0
        %3075 = vmatprep.mubr.f32.mxu0 0.0
        %3076 = vmatmul.mubr.f32.gmra.mxu0 %v866
        %v3077 = vpop.f32.mrf.mxu0
        %v3078 = vadd.f32 0.0, %v3077
        %v3079 = vpop.f32.mrf.mxu0
        %3080 = vmatprep.mubr.f32.mxu0 0.0
        %3081 = vmatmul.mubr.f32.gmra.mxu0 %v869
        %v3082 = vpop.f32.mrf.mxu0
        %v3083 = vadd.f32 0.0, %v3082
        %v3084 = vpop.f32.mrf.mxu0
        %3085 = vmatprep.mubr.f32.mxu0 0.0
        %3086 = vmatmul.mubr.f32.gmra.mxu0 %v871
        %v3087 = vpop.f32.mrf.mxu0
        %v3088 = vadd.f32 0.0, %v3087
        %v3089 = vpop.f32.mrf.mxu0
        %3090 = vmatprep.mubr.f32.mxu0 0.0
        %3091 = vmatmul.mubr.f32.gmra.mxu0 %v874
        %v3092 = vpop.f32.mrf.mxu0
        %v3093 = vadd.f32 0.0, %v3092
        %v3094 = vpop.f32.mrf.mxu0
        %3095 = vmatprep.mubr.f32.mxu0 0.0
        %3096 = vmatmul.mubr.f32.gmra.mxu0 %v876
        %v3097 = vpop.f32.mrf.mxu0
        %v3098 = vadd.f32 0.0, %v3097
        %v3099 = vpop.f32.mrf.mxu0
        %3100 = vmatprep.mubr.f32.mxu0 0.0
        %3101 = vmatmul.mubr.f32.gmra.mxu0 %v879
        %v3102 = vpop.f32.mrf.mxu0
        %v3103 = vadd.f32 0.0, %v3102
        %v3104 = vpop.f32.mrf.mxu0
        %3105 = vmatprep.mubr.f32.mxu0 0.0
        %3106 = vmatmul.mubr.f32.gmra.mxu0 %v881
        %v3107 = vpop.f32.mrf.mxu0
        %v3108 = vadd.f32 0.0, %v3107
        %v3109 = vpop.f32.mrf.mxu0
        %3110 = vmatprep.mubr.f32.mxu0 0.0
        %3111 = vmatmul.mubr.f32.gmra.mxu0 %v884
        %v3112 = vpop.f32.mrf.mxu0
        %v3113 = vadd.f32 0.0, %v3112
        %v3114 = vpop.f32.mrf.mxu0
        %3115 = vmatprep.mubr.f32.mxu0 0.0
        %3116 = vmatmul.mubr.f32.gmra.mxu0 %v886
        %v3117 = vpop.f32.mrf.mxu0
        %v3118 = vadd.f32 0.0, %v3117
        %v3119 = vpop.f32.mrf.mxu0
        %3120 = vmatprep.mubr.f32.mxu0 0.0
        %3121 = vmatmul.mubr.f32.gmra.mxu0 %v2053
        %v3122 = vpop.f32.mrf.mxu0
        %v3123 = vadd.f32 0.0, %v3122
        %v3124 = vpop.f32.mrf.mxu0
        %3125 = vmatprep.mubr.f32.mxu0 0.0
        %3126 = vmatmul.mubr.f32.gmra.mxu0 %v2055
        %v3127 = vpop.f32.mrf.mxu0
        %v3128 = vadd.f32 0.0, %v3127
        %v3129 = vpop.f32.mrf.mxu0
        %3130 = vmatprep.mubr.f32.mxu0 0.0
        %3131 = vmatmul.mubr.f32.gmra.mxu0 %v2058
        %v3132 = vpop.f32.mrf.mxu0
        %v3133 = vadd.f32 0.0, %v3132
        %v3134 = vpop.f32.mrf.mxu0
        %3135 = vmatprep.mubr.f32.mxu0 0.0
        %3136 = vmatmul.mubr.f32.gmra.mxu0 %v2060
        %v3137 = vpop.f32.mrf.mxu0
        %v3138 = vadd.f32 0.0, %v3137
        %v3139 = vpop.f32.mrf.mxu0
        %3140 = vmatprep.mubr.f32.mxu0 0.0
        %3141 = vmatmul.mubr.f32.gmra.mxu0 %v2907
        %v3142 = vpop.f32.mrf.mxu0
        %v3143 = vadd.f32 0.0, %v3142
        %v3144 = vpop.f32.mrf.mxu0
        %3145 = vmatprep.mubr.f32.mxu0 0.0
        %3146 = vmatmul.mubr.f32.gmra.mxu0 %v2909
        %v3147 = vpop.f32.mrf.mxu0
        %v3148 = vadd.f32 0.0, %v3147
        %v3149 = vpop.f32.mrf.mxu0
        %3150 = vmatprep.mubr.f32.mxu0 0.0
        %3151 = vmatmul.mubr.f32.gmra.mxu0 %v2912
        %v3152 = vpop.f32.mrf.mxu0
        %v3153 = vadd.f32 0.0, %v3152
        %v3154 = vpop.f32.mrf.mxu0
        %3155 = vmatprep.mubr.f32.mxu0 0.0
        %3156 = vmatmul.mubr.f32.gmra.mxu0 %v2914
        %v3157 = vpop.f32.mrf.mxu0
        %v3158 = vadd.f32 0.0, %v3157
        %v3159 = vpop.f32.mrf.mxu0
        %3160 = vdwg.mxu0
        %v3161 = vadd.f32 %v2869, %v3003
        %v3162 = vadd.f32 %v2870, %v3008
        %v3163 = vadd.f32 %v2871, %v3013
        %v3164 = vadd.f32 %v2872, %v3018
        %v3165 = vadd.f32 %v2873, %v3023
        %v3166 = vadd.f32 %v2874, %v3028
        %v3167 = vadd.f32 %v2875, %v3033
        %v3168 = vadd.f32 %v2876, %v3038
        %v3169 = vadd.f32 %v2877, %v3043
        %v3170 = vadd.f32 %v2878, %v3048
        %v3171 = vadd.f32 %v2879, %v3053
        %v3172 = vadd.f32 %v2880, %v3058
        %v3173 = vadd.f32 %v2881, %v3063
        %v3174 = vadd.f32 %v2882, %v3068
        %v3175 = vadd.f32 %v2883, %v3073
        %v3176 = vadd.f32 %v2884, %v3078
        %v3177 = vadd.f32 %v2885, %v3083
        %v3178 = vadd.f32 %v2886, %v3088
        %v3179 = vadd.f32 %v2887, %v3093
        %v3180 = vadd.f32 %v2888, %v3098
        %v3181 = vadd.f32 %v2889, %v3103
        %v3182 = vadd.f32 %v2890, %v3108
        %v3183 = vadd.f32 %v2891, %v3113
        %v3184 = vadd.f32 %v2892, %v3118
        %v3185 = vadd.f32 %v2893, %v3123
        %v3186 = vadd.f32 %v2894, %v3128
        %v3187 = vadd.f32 %v2895, %v3133
        %v3188 = vadd.f32 %v2896, %v3138
        %v3189 = vadd.f32 %v2897, %v3143
        %v3190 = vadd.f32 %v2898, %v3148
        %v3191 = vadd.f32 %v2899, %v3153
        %v3192 = vadd.f32 %v2900, %v3158
        %v3193 = vrot.slane %v736, 4
        %v3194 = vrot.slane %v654, 4
        %v3195 = vsel %vm1386, %v3193, %v3194
        %v3196 = vrot.slane %v756, 4
        %v3197 = vsel %vm1386, %v3194, %v3196
        %v3198 = vrot.slane %v737, 4
        %v3199 = vrot.slane %v657, 4
        %v3200 = vsel %vm1386, %v3198, %v3199
        %v3201 = vrot.slane %v757, 4
        %v3202 = vsel %vm1386, %v3199, %v3201
        %s3207 = scalar_lea.vmem [#allocation8], 1024
        %v3208 = vld [vmem:[%s3207] sm:$0xff]
        %v3209 = vld [vmem:[%s3207 + $0x8] sm:$0xff]
        %v3210 = vld [vmem:[%s3207 + $0x10] sm:$0xff]
        %v3211 = vld [vmem:[%s3207 + $0x18] sm:$0xff]
        %v3212 = vld [vmem:[%s3207 + $0x20] sm:$0xff]
        %v3213 = vld [vmem:[%s3207 + $0x28] sm:$0xff]
        %v3214 = vld [vmem:[%s3207 + $0x30] sm:$0xff]
        %v3215 = vld [vmem:[%s3207 + $0x38] sm:$0xff]
        %v3216 = vld [vmem:[%s3207 + $0x40] sm:$0xff]
        %v3217 = vld [vmem:[%s3207 + $0x48] sm:$0xff]
        %v3218 = vld [vmem:[%s3207 + $0x50] sm:$0xff]
        %v3219 = vld [vmem:[%s3207 + $0x58] sm:$0xff]
        %v3220 = vld [vmem:[%s3207 + $0x60] sm:$0xff]
        %v3221 = vld [vmem:[%s3207 + $0x68] sm:$0xff]
        %v3222 = vld [vmem:[%s3207 + $0x70] sm:$0xff]
        %v3223 = vld [vmem:[%s3207 + $0x78] sm:$0xff]
        %3224 = vmatprep.subr.mxu0 0.0
        %3225 = vmatpush1.msra.mxu0 %v3223
        %3226 = vmatprep.subr.mxu0 0.0
        %3227 = vmatpush1.msra.mxu0 %v3222
        %3228 = vmatprep.subr.mxu0 0.0
        %3229 = vmatpush1.msra.mxu0 %v3221
        %3230 = vmatprep.subr.mxu0 0.0
        %3231 = vmatpush1.msra.mxu0 %v3220
        %3232 = vmatprep.subr.mxu0 0.0
        %3233 = vmatpush1.msra.mxu0 %v3219
        %3234 = vmatprep.subr.mxu0 0.0
        %3235 = vmatpush1.msra.mxu0 %v3218
        %3236 = vmatprep.subr.mxu0 0.0
        %3237 = vmatpush1.msra.mxu0 %v3217
        %3238 = vmatprep.subr.mxu0 0.0
        %3239 = vmatpush1.msra.mxu0 %v3216
        %3240 = vmatprep.subr.mxu0 0.0
        %3241 = vmatpush1.msra.mxu0 %v3215
        %3242 = vmatprep.subr.mxu0 0.0
        %3243 = vmatpush1.msra.mxu0 %v3214
        %3244 = vmatprep.subr.mxu0 0.0
        %3245 = vmatpush1.msra.mxu0 %v3213
        %3246 = vmatprep.subr.mxu0 0.0
        %3247 = vmatpush1.msra.mxu0 %v3212
        %3248 = vmatprep.subr.mxu0 0.0
        %3249 = vmatpush1.msra.mxu0 %v3211
        %3250 = vmatprep.subr.mxu0 0.0
        %3251 = vmatpush1.msra.mxu0 %v3210
        %3252 = vmatprep.subr.mxu0 0.0
        %3253 = vmatpush1.msra.mxu0 %v3209
        %3254 = vmatprep.subr.mxu0 0.0
        %3255 = vmatpush1.msra.mxu0 %v3208
        %3256 = vmatprep.subr.mxu0 0.0
        %3257 = vmatpush2.msra.mxu0 0.0
        %3258 = vmatprep.subr.mxu0 0.0
        %3259 = vmatpush2.msra.mxu0 0.0
        %3260 = vmatprep.subr.mxu0 0.0
        %3261 = vmatpush2.msra.mxu0 0.0
        %3262 = vmatprep.subr.mxu0 0.0
        %3263 = vmatpush2.msra.mxu0 0.0
        %3264 = vmatprep.subr.mxu0 0.0
        %3265 = vmatpush2.msra.mxu0 0.0
        %3266 = vmatprep.subr.mxu0 0.0
        %3267 = vmatpush2.msra.mxu0 0.0
        %3268 = vmatprep.subr.mxu0 0.0
        %3269 = vmatpush2.msra.mxu0 0.0
        %3270 = vmatprep.subr.mxu0 0.0
        %3271 = vmatpush2.msra.mxu0 0.0
        %3272 = vmatprep.subr.mxu0 0.0
        %3273 = vmatpush2.msra.mxu0 0.0
        %3274 = vmatprep.subr.mxu0 0.0
        %3275 = vmatpush2.msra.mxu0 0.0
        %3276 = vmatprep.subr.mxu0 0.0
        %3277 = vmatpush2.msra.mxu0 0.0
        %3278 = vmatprep.subr.mxu0 0.0
        %3279 = vmatpush2.msra.mxu0 0.0
        %3280 = vmatprep.subr.mxu0 0.0
        %3281 = vmatpush2.msra.mxu0 0.0
        %3282 = vmatprep.subr.mxu0 0.0
        %3283 = vmatpush2.msra.mxu0 0.0
        %3284 = vmatprep.subr.mxu0 0.0
        %3285 = vmatpush2.msra.mxu0 0.0
        %3286 = vmatprep.subr.mxu0 0.0
        %3287 = vmatpush2.msra.mxu0 0.0
        %3288 = vmatprep.mubr.f32.mxu0 0.0
        %3289 = vmatmul.mubr.f32.gmra.mxu0 %v1409
        %v3290 = vpop.f32.mrf.mxu0
        %v3291 = vadd.f32 0.0, %v3290
        %v3292 = vpop.f32.mrf.mxu0
        %3293 = vmatprep.mubr.f32.mxu0 0.0
        %3294 = vmatmul.mubr.f32.gmra.mxu0 %v1411
        %v3295 = vpop.f32.mrf.mxu0
        %v3296 = vadd.f32 0.0, %v3295
        %v3297 = vpop.f32.mrf.mxu0
        %3298 = vmatprep.mubr.f32.mxu0 0.0
        %3299 = vmatmul.mubr.f32.gmra.mxu0 %v1414
        %v3300 = vpop.f32.mrf.mxu0
        %v3301 = vadd.f32 0.0, %v3300
        %v3302 = vpop.f32.mrf.mxu0
        %3303 = vmatprep.mubr.f32.mxu0 0.0
        %3304 = vmatmul.mubr.f32.gmra.mxu0 %v1416
        %v3305 = vpop.f32.mrf.mxu0
        %v3306 = vadd.f32 0.0, %v3305
        %v3307 = vpop.f32.mrf.mxu0
        %3308 = vmatprep.mubr.f32.mxu0 0.0
        %3309 = vmatmul.mubr.f32.gmra.mxu0 %v1419
        %v3310 = vpop.f32.mrf.mxu0
        %v3311 = vadd.f32 0.0, %v3310
        %v3312 = vpop.f32.mrf.mxu0
        %3313 = vmatprep.mubr.f32.mxu0 0.0
        %3314 = vmatmul.mubr.f32.gmra.mxu0 %v1421
        %v3315 = vpop.f32.mrf.mxu0
        %v3316 = vadd.f32 0.0, %v3315
        %v3317 = vpop.f32.mrf.mxu0
        %3318 = vmatprep.mubr.f32.mxu0 0.0
        %3319 = vmatmul.mubr.f32.gmra.mxu0 %v1424
        %v3320 = vpop.f32.mrf.mxu0
        %v3321 = vadd.f32 0.0, %v3320
        %v3322 = vpop.f32.mrf.mxu0
        %3323 = vmatprep.mubr.f32.mxu0 0.0
        %3324 = vmatmul.mubr.f32.gmra.mxu0 %v1426
        %v3325 = vpop.f32.mrf.mxu0
        %v3326 = vadd.f32 0.0, %v3325
        %v3327 = vpop.f32.mrf.mxu0
        %3328 = vmatprep.mubr.f32.mxu0 0.0
        %3329 = vmatmul.mubr.f32.gmra.mxu0 %v1429
        %v3330 = vpop.f32.mrf.mxu0
        %v3331 = vadd.f32 0.0, %v3330
        %v3332 = vpop.f32.mrf.mxu0
        %3333 = vmatprep.mubr.f32.mxu0 0.0
        %3334 = vmatmul.mubr.f32.gmra.mxu0 %v1431
        %v3335 = vpop.f32.mrf.mxu0
        %v3336 = vadd.f32 0.0, %v3335
        %v3337 = vpop.f32.mrf.mxu0
        %3338 = vmatprep.mubr.f32.mxu0 0.0
        %3339 = vmatmul.mubr.f32.gmra.mxu0 %v1434
        %v3340 = vpop.f32.mrf.mxu0
        %v3341 = vadd.f32 0.0, %v3340
        %v3342 = vpop.f32.mrf.mxu0
        %3343 = vmatprep.mubr.f32.mxu0 0.0
        %3344 = vmatmul.mubr.f32.gmra.mxu0 %v1436
        %v3345 = vpop.f32.mrf.mxu0
        %v3346 = vadd.f32 0.0, %v3345
        %v3347 = vpop.f32.mrf.mxu0
        %3348 = vmatprep.mubr.f32.mxu0 0.0
        %3349 = vmatmul.mubr.f32.gmra.mxu0 %v1439
        %v3350 = vpop.f32.mrf.mxu0
        %v3351 = vadd.f32 0.0, %v3350
        %v3352 = vpop.f32.mrf.mxu0
        %3353 = vmatprep.mubr.f32.mxu0 0.0
        %3354 = vmatmul.mubr.f32.gmra.mxu0 %v1441
        %v3355 = vpop.f32.mrf.mxu0
        %v3356 = vadd.f32 0.0, %v3355
        %v3357 = vpop.f32.mrf.mxu0
        %3358 = vmatprep.mubr.f32.mxu0 0.0
        %3359 = vmatmul.mubr.f32.gmra.mxu0 %v1444
        %v3360 = vpop.f32.mrf.mxu0
        %v3361 = vadd.f32 0.0, %v3360
        %v3362 = vpop.f32.mrf.mxu0
        %3363 = vmatprep.mubr.f32.mxu0 0.0
        %3364 = vmatmul.mubr.f32.gmra.mxu0 %v1446
        %v3365 = vpop.f32.mrf.mxu0
        %v3366 = vadd.f32 0.0, %v3365
        %v3367 = vpop.f32.mrf.mxu0
        %3368 = vmatprep.mubr.f32.mxu0 0.0
        %3369 = vmatmul.mubr.f32.gmra.mxu0 %v1449
        %v3370 = vpop.f32.mrf.mxu0
        %v3371 = vadd.f32 0.0, %v3370
        %v3372 = vpop.f32.mrf.mxu0
        %3373 = vmatprep.mubr.f32.mxu0 0.0
        %3374 = vmatmul.mubr.f32.gmra.mxu0 %v1451
        %v3375 = vpop.f32.mrf.mxu0
        %v3376 = vadd.f32 0.0, %v3375
        %v3377 = vpop.f32.mrf.mxu0
        %3378 = vmatprep.mubr.f32.mxu0 0.0
        %3379 = vmatmul.mubr.f32.gmra.mxu0 %v1454
        %v3380 = vpop.f32.mrf.mxu0
        %v3381 = vadd.f32 0.0, %v3380
        %v3382 = vpop.f32.mrf.mxu0
        %3383 = vmatprep.mubr.f32.mxu0 0.0
        %3384 = vmatmul.mubr.f32.gmra.mxu0 %v1456
        %v3385 = vpop.f32.mrf.mxu0
        %v3386 = vadd.f32 0.0, %v3385
        %v3387 = vpop.f32.mrf.mxu0
        %3388 = vmatprep.mubr.f32.mxu0 0.0
        %3389 = vmatmul.mubr.f32.gmra.mxu0 %v1459
        %v3390 = vpop.f32.mrf.mxu0
        %v3391 = vadd.f32 0.0, %v3390
        %v3392 = vpop.f32.mrf.mxu0
        %3393 = vmatprep.mubr.f32.mxu0 0.0
        %3394 = vmatmul.mubr.f32.gmra.mxu0 %v1461
        %v3395 = vpop.f32.mrf.mxu0
        %v3396 = vadd.f32 0.0, %v3395
        %v3397 = vpop.f32.mrf.mxu0
        %3398 = vmatprep.mubr.f32.mxu0 0.0
        %3399 = vmatmul.mubr.f32.gmra.mxu0 %v1464
        %v3400 = vpop.f32.mrf.mxu0
        %v3401 = vadd.f32 0.0, %v3400
        %v3402 = vpop.f32.mrf.mxu0
        %3403 = vmatprep.mubr.f32.mxu0 0.0
        %3404 = vmatmul.mubr.f32.gmra.mxu0 %v1466
        %v3405 = vpop.f32.mrf.mxu0
        %v3406 = vadd.f32 0.0, %v3405
        %v3407 = vpop.f32.mrf.mxu0
        %3408 = vmatprep.mubr.f32.mxu0 0.0
        %3409 = vmatmul.mubr.f32.gmra.mxu0 %v2341
        %v3410 = vpop.f32.mrf.mxu0
        %v3411 = vadd.f32 0.0, %v3410
        %v3412 = vpop.f32.mrf.mxu0
        %3413 = vmatprep.mubr.f32.mxu0 0.0
        %3414 = vmatmul.mubr.f32.gmra.mxu0 %v2343
        %v3415 = vpop.f32.mrf.mxu0
        %v3416 = vadd.f32 0.0, %v3415
        %v3417 = vpop.f32.mrf.mxu0
        %3418 = vmatprep.mubr.f32.mxu0 0.0
        %3419 = vmatmul.mubr.f32.gmra.mxu0 %v2346
        %v3420 = vpop.f32.mrf.mxu0
        %v3421 = vadd.f32 0.0, %v3420
        %v3422 = vpop.f32.mrf.mxu0
        %3423 = vmatprep.mubr.f32.mxu0 0.0
        %3424 = vmatmul.mubr.f32.gmra.mxu0 %v2348
        %v3425 = vpop.f32.mrf.mxu0
        %v3426 = vadd.f32 0.0, %v3425
        %v3427 = vpop.f32.mrf.mxu0
        %3428 = vmatprep.mubr.f32.mxu0 0.0
        %3429 = vmatmul.mubr.f32.gmra.mxu0 %v3195
        %v3430 = vpop.f32.mrf.mxu0
        %v3431 = vadd.f32 0.0, %v3430
        %v3432 = vpop.f32.mrf.mxu0
        %3433 = vmatprep.mubr.f32.mxu0 0.0
        %3434 = vmatmul.mubr.f32.gmra.mxu0 %v3197
        %v3435 = vpop.f32.mrf.mxu0
        %v3436 = vadd.f32 0.0, %v3435
        %v3437 = vpop.f32.mrf.mxu0
        %3438 = vmatprep.mubr.f32.mxu0 0.0
        %3439 = vmatmul.mubr.f32.gmra.mxu0 %v3200
        %v3440 = vpop.f32.mrf.mxu0
        %v3441 = vadd.f32 0.0, %v3440
        %v3442 = vpop.f32.mrf.mxu0
        %3443 = vmatprep.mubr.f32.mxu0 0.0
        %3444 = vmatmul.mubr.f32.gmra.mxu0 %v3202
        %v3445 = vpop.f32.mrf.mxu0
        %v3446 = vadd.f32 0.0, %v3445
        %v3447 = vpop.f32.mrf.mxu0
        %3448 = vdwg.mxu0
        %v3449 = vadd.f32 %v3161, %v3291
        %v3450 = vadd.f32 %v3162, %v3296
        %v3451 = vadd.f32 %v3163, %v3301
        %v3452 = vadd.f32 %v3164, %v3306
        %v3453 = vadd.f32 %v3165, %v3311
        %v3454 = vadd.f32 %v3166, %v3316
        %v3455 = vadd.f32 %v3167, %v3321
        %v3456 = vadd.f32 %v3168, %v3326
        %v3457 = vadd.f32 %v3169, %v3331
        %v3458 = vadd.f32 %v3170, %v3336
        %v3459 = vadd.f32 %v3171, %v3341
        %v3460 = vadd.f32 %v3172, %v3346
        %v3461 = vadd.f32 %v3173, %v3351
        %v3462 = vadd.f32 %v3174, %v3356
        %v3463 = vadd.f32 %v3175, %v3361
        %v3464 = vadd.f32 %v3176, %v3366
        %v3465 = vadd.f32 %v3177, %v3371
        %v3466 = vadd.f32 %v3178, %v3376
        %v3467 = vadd.f32 %v3179, %v3381
        %v3468 = vadd.f32 %v3180, %v3386
        %v3469 = vadd.f32 %v3181, %v3391
        %v3470 = vadd.f32 %v3182, %v3396
        %v3471 = vadd.f32 %v3183, %v3401
        %v3472 = vadd.f32 %v3184, %v3406
        %v3473 = vadd.f32 %v3185, %v3411
        %v3474 = vadd.f32 %v3186, %v3416
        %v3475 = vadd.f32 %v3187, %v3421
        %v3476 = vadd.f32 %v3188, %v3426
        %v3477 = vadd.f32 %v3189, %v3431
        %v3478 = vadd.f32 %v3190, %v3436
        %v3479 = vadd.f32 %v3191, %v3441
        %v3480 = vadd.f32 %v3192, %v3446
        %3481 = vst [vmem:[%s476] sm:$0xff] %v3449
        %3482 = vst [vmem:[%s476 + $0x8] sm:$0xff] %v3450
        %3483 = vst [vmem:[%s476 + $0x10] sm:$0xff] %v3451
        %3484 = vst [vmem:[%s476 + $0x18] sm:$0xff] %v3452
        %3485 = vst [vmem:[%s476 + $0x20] sm:$0xff] %v3453
        %3486 = vst [vmem:[%s476 + $0x28] sm:$0xff] %v3454
        %3487 = vst [vmem:[%s476 + $0x30] sm:$0xff] %v3455
        %3488 = vst [vmem:[%s476 + $0x38] sm:$0xff] %v3456
        %3489 = vst [vmem:[%s476 + $0x40] sm:$0xff] %v3457
        %3490 = vst [vmem:[%s476 + $0x48] sm:$0xff] %v3458
        %3491 = vst [vmem:[%s476 + $0x50] sm:$0xff] %v3459
        %3492 = vst [vmem:[%s476 + $0x58] sm:$0xff] %v3460
        %3493 = vst [vmem:[%s476 + $0x60] sm:$0xff] %v3461
        %3494 = vst [vmem:[%s476 + $0x68] sm:$0xff] %v3462
        %3495 = vst [vmem:[%s476 + $0x70] sm:$0xff] %v3463
        %3496 = vst [vmem:[%s476 + $0x78] sm:$0xff] %v3464
        %3497 = vst [vmem:[%s476 + $0x80] sm:$0xff] %v3465
        %3498 = vst [vmem:[%s476 + $0x88] sm:$0xff] %v3466
        %3499 = vst [vmem:[%s476 + $0x90] sm:$0xff] %v3467
        %3500 = vst [vmem:[%s476 + $0x98] sm:$0xff] %v3468
        %3501 = vst [vmem:[%s476 + $0xa0] sm:$0xff] %v3469
        %3502 = vst [vmem:[%s476 + $0xa8] sm:$0xff] %v3470
        %3503 = vst [vmem:[%s476 + $0xb0] sm:$0xff] %v3471
        %3504 = vst [vmem:[%s476 + $0xb8] sm:$0xff] %v3472
        %3505 = vst [vmem:[%s476 + $0xc0] sm:$0xff] %v3473
        %3506 = vst [vmem:[%s476 + $0xc8] sm:$0xff] %v3474
        %3507 = vst [vmem:[%s476 + $0xd0] sm:$0xff] %v3475
        %3508 = vst [vmem:[%s476 + $0xd8] sm:$0xff] %v3476
        %3509 = vst [vmem:[%s476 + $0xe0] sm:$0xff] %v3477
        %3510 = vst [vmem:[%s476 + $0xe8] sm:$0xff] %v3478
        %3511 = vst [vmem:[%s476 + $0xf0] sm:$0xff] %v3479
        %3512 = vst [vmem:[%s476 + $0xf8] sm:$0xff] %v3480
        %v3513 = vadd.f32 %v3449, %v3450
        %v3514 = vadd.f32 %v3513, %v3451
        %v3515 = vadd.f32 %v3514, %v3452
        %v3516 = vadd.f32 %v3515, %v3453
        %v3517 = vadd.f32 %v3516, %v3454
        %v3518 = vadd.f32 %v3517, %v3455
        %v3519 = vadd.f32 %v3518, %v3456
        %v3520 = vadd.f32 %v3519, %v3457
        %v3521 = vadd.f32 %v3520, %v3458
        %v3522 = vadd.f32 %v3521, %v3459
        %v3523 = vadd.f32 %v3522, %v3460
        %v3524 = vadd.f32 %v3523, %v3461
        %v3525 = vadd.f32 %v3524, %v3462
        %v3526 = vadd.f32 %v3525, %v3463
        %v3527 = vadd.f32 %v3526, %v3464
        %v3528 = vadd.f32 %v3527, %v3465
        %v3529 = vadd.f32 %v3528, %v3466
        %v3530 = vadd.f32 %v3529, %v3467
        %v3531 = vadd.f32 %v3530, %v3468
        %v3532 = vadd.f32 %v3531, %v3469
        %v3533 = vadd.f32 %v3532, %v3470
        %v3534 = vadd.f32 %v3533, %v3471
        %v3535 = vadd.f32 %v3534, %v3472
        %v3536 = vadd.f32 %v3535, %v3473
        %v3537 = vadd.f32 %v3536, %v3474
        %v3538 = vadd.f32 %v3537, %v3475
        %v3539 = vadd.f32 %v3538, %v3476
        %v3540 = vadd.f32 %v3539, %v3477
        %v3541 = vadd.f32 %v3540, %v3478
        %v3542 = vadd.f32 %v3541, %v3479
        %v3543 = vadd.f32 %v3542, %v3480
        %v3544 = vrot.slane %v3543, 4
        %v3545 = vadd.f32 %v3543, %v3544
        %v3546 = vrot.slane %v3545, 2
        %v3547 = vadd.f32 %v3545, %v3546
        %v3548 = vrot.slane %v3547, 1
        %v3549 = vadd.f32 %v3547, %v3548
        %3550 = vst [vmem:[%s482] sm:$0x1] %v3549
        %v3551 = vmul.f32 %v3449, %v3449
        %v3552 = vmul.f32 %v3450, %v3450
        %v3553 = vmul.f32 %v3451, %v3451
        %v3554 = vmul.f32 %v3452, %v3452
        %v3555 = vmul.f32 %v3453, %v3453
        %v3556 = vmul.f32 %v3454, %v3454
        %v3557 = vmul.f32 %v3455, %v3455
        %v3558 = vmul.f32 %v3456, %v3456
        %v3559 = vmul.f32 %v3457, %v3457
        %v3560 = vmul.f32 %v3458, %v3458
        %v3561 = vmul.f32 %v3459, %v3459
        %v3562 = vmul.f32 %v3460, %v3460
        %v3563 = vmul.f32 %v3461, %v3461
        %v3564 = vmul.f32 %v3462, %v3462
        %v3565 = vmul.f32 %v3463, %v3463
        %v3566 = vmul.f32 %v3464, %v3464
        %v3567 = vmul.f32 %v3465, %v3465
        %v3568 = vmul.f32 %v3466, %v3466
        %v3569 = vmul.f32 %v3467, %v3467
        %v3570 = vmul.f32 %v3468, %v3468
        %v3571 = vmul.f32 %v3469, %v3469
        %v3572 = vmul.f32 %v3470, %v3470
        %v3573 = vmul.f32 %v3471, %v3471
        %v3574 = vmul.f32 %v3472, %v3472
        %v3575 = vmul.f32 %v3473, %v3473
        %v3576 = vmul.f32 %v3474, %v3474
        %v3577 = vmul.f32 %v3475, %v3475
        %v3578 = vmul.f32 %v3476, %v3476
        %v3579 = vmul.f32 %v3477, %v3477
        %v3580 = vmul.f32 %v3478, %v3478
        %v3581 = vmul.f32 %v3479, %v3479
        %v3582 = vmul.f32 %v3480, %v3480
        %v3583 = vadd.f32 %v3551, %v3552
        %v3584 = vadd.f32 %v3583, %v3553
        %v3585 = vadd.f32 %v3584, %v3554
        %v3586 = vadd.f32 %v3585, %v3555
        %v3587 = vadd.f32 %v3586, %v3556
        %v3588 = vadd.f32 %v3587, %v3557
        %v3589 = vadd.f32 %v3588, %v3558
        %v3590 = vadd.f32 %v3589, %v3559
        %v3591 = vadd.f32 %v3590, %v3560
        %v3592 = vadd.f32 %v3591, %v3561
        %v3593 = vadd.f32 %v3592, %v3562
        %v3594 = vadd.f32 %v3593, %v3563
        %v3595 = vadd.f32 %v3594, %v3564
        %v3596 = vadd.f32 %v3595, %v3565
        %v3597 = vadd.f32 %v3596, %v3566
        %v3598 = vadd.f32 %v3597, %v3567
        %v3599 = vadd.f32 %v3598, %v3568
        %v3600 = vadd.f32 %v3599, %v3569
        %v3601 = vadd.f32 %v3600, %v3570
        %v3602 = vadd.f32 %v3601, %v3571
        %v3603 = vadd.f32 %v3602, %v3572
        %v3604 = vadd.f32 %v3603, %v3573
        %v3605 = vadd.f32 %v3604, %v3574
        %v3606 = vadd.f32 %v3605, %v3575
        %v3607 = vadd.f32 %v3606, %v3576
        %v3608 = vadd.f32 %v3607, %v3577
        %v3609 = vadd.f32 %v3608, %v3578
        %v3610 = vadd.f32 %v3609, %v3579
        %v3611 = vadd.f32 %v3610, %v3580
        %v3612 = vadd.f32 %v3611, %v3581
        %v3613 = vadd.f32 %v3612, %v3582
        %v3614 = vrot.slane %v3613, 4
        %v3615 = vadd.f32 %v3613, %v3614
        %v3616 = vrot.slane %v3615, 2
        %v3617 = vadd.f32 %v3615, %v3616
        %v3618 = vrot.slane %v3617, 1
        %v3619 = vadd.f32 %v3617, %v3618
        %3620 = vst [vmem:[%s488] sm:$0x1] %v3619
        %s3621 = sand.u32 %s218, 1
        %s3622 = scalar_lea.sflag [#allocation4], %s3621
        %s3623 = sand.u32 %s218, 1
        %s3624 = smul.addr %s3623, 256
        %s3625 = scalar_lea.vmem [#allocation10], %s3624
        %s3626 = sand.u32 %s33, 1
        %s3627 = scalar_lea.sflag [#allocation12], %s3626
        %s3628 = sand.u32 %s246, 1
        %s3629 = scalar_lea.vmem [#allocation11], %s3628
        %s3630 = sand.u32 %s33, 1
        %s3631 = scalar_lea.sflag [#allocation12], %s3630
        %s3632 = sand.u32 %s274, 1
        %s3633 = scalar_lea.vmem [#allocation13], %s3632
        // Predicated region
        $region61: #{tpu_custom_call.1} parent=43 // pred_check
          %p3634 = pneg %p228
        $region62: #{tpu_custom_call.1} parent=43 // pred_check_branch
          %3636 = sbr.rel (%p3634) target = $region64
        $region63: #{tpu_custom_call.1} parent=43 // pred_region
          %s3637 = smul.u32 16, %s38
          %s3639 = ssub.s32 4096, 4096
          %3640 = vsyncadd %s3622, %s3639
          %s3641 = smul.addr %s3637, 2
          %s3642 = smul.addr %s37, 32
          %s3643 = sadd.s32 %s3641, %s3642
          %s3644 = smul.addr %s3643, 128
          %s3645 = scalar_lea.hbm %s6, %s3644
          %s3646 = sshll.u32 %s3625, 4
          %s3647 = int_to_ptr.vmem [resolvable:$true] %s3646
          %3652 = dma.vmem_to_hbm [thread:$0]  %s3647, 4096, %s3645, %s3622, 128, 128, 8
        $region64: #{tpu_custom_call.1} parent=43 // pred_fallthru
          _
        // Predicated region
        $region65: #{tpu_custom_call.1} parent=43 // pred_check
          %p3653 = pneg %p256
        $region66: #{tpu_custom_call.1} parent=43 // pred_check_branch
          %3655 = sbr.rel (%p3653) target = $region68
        $region67: #{tpu_custom_call.1} parent=43 // pred_region
          %s3657 = ssub.s32 16, 16
          %3658 = vsyncadd %s3627, %s3657
          %s3659 = sadd.s32 %s38, %s37
          %s3660 = smul.addr %s3659, 16
          %s3661 = scalar_lea.hbm %s7, %s3660
          %s3663 = sshll.u32 %s3629, 4
          %s3664 = int_to_ptr.vmem [resolvable:$true] %s3663
          %3666 = dma.vmem_to_hbm [thread:$0]  %s3664, 16, %s3661, %s3627
        $region68: #{tpu_custom_call.1} parent=43 // pred_fallthru
          _
        // Predicated region
        $region69: #{tpu_custom_call.1} parent=43 // pred_check
          %p3667 = pneg %p284
        $region70: #{tpu_custom_call.1} parent=43 // pred_check_branch
          %3669 = sbr.rel (%p3667) target = $region72
        $region71: #{tpu_custom_call.1} parent=43 // pred_region
          %s3671 = ssub.s32 16, 16
          %3672 = vsyncadd %s3631, %s3671
          %s3673 = sadd.s32 %s38, %s37
          %s3674 = smul.addr %s3673, 16
          %s3675 = scalar_lea.hbm %s8, %s3674
          %s3677 = sshll.u32 %s3633, 4
          %s3678 = int_to_ptr.vmem [resolvable:$true] %s3677
          %3680 = dma.vmem_to_hbm [thread:$0]  %s3678, 16, %s3675, %s3631
        $region72: #{tpu_custom_call.1} parent=43 // pred_fallthru
          _
      $region44: #{tpu_custom_call.1} parent=5 // pred_fallthru
        _
      %p3681 = scmp.le.s32.totalorder 2, %s28
      // Predicated region
      $region73: #{tpu_custom_call.1} parent=5 // pred_check
        %p3682 = pneg %p3681
      $region74: #{tpu_custom_call.1} parent=5 // pred_check_branch
        %3684 = sbr.rel (%p3682) target = $region76
      $region75: #{tpu_custom_call.1} parent=5 // pred_region
        %s3685 = ssub.s32 %s28, 2
        // Predicated region
        $region77: #{tpu_custom_call.1} parent=75 // pred_check
          %p3686 = pneg %p234
        $region78: #{tpu_custom_call.1} parent=75 // pred_check_branch
          %3688 = sbr.rel (%p3686) target = $region80
        $region79: #{tpu_custom_call.1} parent=75 // pred_region
          %s3689 = sand.u32 %s219, 1
          %s3690 = scalar_lea.sflag [#allocation4], %s3689
          %s3691 = sand.u32 %s219, 1
          %s3692 = smul.addr %s3691, 256
          %s3693 = scalar_lea.vmem [#allocation10], %s3692
          %3694 = dma.done %s3690, 4096
        $region80: #{tpu_custom_call.1} parent=75 // pred_fallthru
          _
        // Predicated region
        $region81: #{tpu_custom_call.1} parent=75 // pred_check
          %p3695 = pneg %p262
        $region82: #{tpu_custom_call.1} parent=75 // pred_check_branch
          %3697 = sbr.rel (%p3695) target = $region84
        $region83: #{tpu_custom_call.1} parent=75 // pred_region
          %s3698 = sand.u32 %s34, 1
          %s3699 = scalar_lea.sflag [#allocation12], %s3698
          %s3700 = sand.u32 %s247, 1
          %s3701 = scalar_lea.vmem [#allocation11], %s3700
          %3702 = dma.done %s3699, 16
        $region84: #{tpu_custom_call.1} parent=75 // pred_fallthru
          _
        // Predicated region
        $region85: #{tpu_custom_call.1} parent=75 // pred_check
          %p3703 = pneg %p290
        $region86: #{tpu_custom_call.1} parent=75 // pred_check_branch
          %3705 = sbr.rel (%p3703) target = $region88
        $region87: #{tpu_custom_call.1} parent=75 // pred_region
          %s3706 = sand.u32 %s34, 1
          %s3707 = scalar_lea.sflag [#allocation12], %s3706
          %s3708 = sand.u32 %s275, 1
          %s3709 = scalar_lea.vmem [#allocation13], %s3708
          %3710 = dma.done %s3707, 16
        $region88: #{tpu_custom_call.1} parent=75 // pred_fallthru
          _
      $region76: #{tpu_custom_call.1} parent=5 // pred_fallthru
        _
    $region6: #{tpu_custom_call.1} parent=1 // loop_footer
      %s32 = sadd.s32 1, %s28
    $region7: #{tpu_custom_call.1} parent=1 // loop_footer_branch
      %27 = sbr.rel target = $region3
    $region8: #{tpu_custom_call.1} parent=1 // loop_exit
      _
    %3711 = vsyncpa [#allocation3], 1
    %s3712 = scalar_lea.sflag [#allocation3], 1
    %3713 = vsyncpa %s3712, 1
    %3714 = vsyncpa [#allocation6], 1
    %s3715 = scalar_lea.sflag [#allocation6], 1
    %3716 = vsyncpa %s3715, 1
    %3717 = vsyncpa [#allocation9], 1
    %3718 = vsyncpa [#allocation4], 1
    %s3719 = scalar_lea.sflag [#allocation4], 1
    %3720 = vsyncpa %s3719, 1
    %3721 = vsyncpa [#allocation12], 1
    %s3722 = scalar_lea.sflag [#allocation12], 1
    %3723 = vsyncpa %s3722, 1

</llo_original>
